<compile_context>
chip_gen: v7x
topology: tpu7x:2x2x1
jax: 0.10.0
libtpu: 0.0.40
codegen_flags: <defaults>
</compile_context>

<pallas_src>
import functools
import math

import jax
import jax.numpy as jnp
from jax.experimental import pallas as pl
from jax.experimental.pallas import tpu as pltpu

# ----------------------------- model config ---------------------------------
IN_DIM = 32            # input feature dim; hidden is overwritten to in_dim
HIDDEN = IN_DIM
OUT_DIM = 16
NHEAD = int(math.ceil(HIDDEN / 64))
if HIDDEN % NHEAD != 0:
    NHEAD = 1
assert NHEAD == 1      # kernels below elide head split/merge.  TODO(synk): generalize to NHEAD > 1.
FFN_DIM = HIDDEN * 8
ENC_LAYERS = 3
DEC_LAYERS = 1
DYM_LAYERS = 2
VOCAB_SIZE = 20
DYN_EMB_SIZE = 8       # dynamics_embedding_size (seq length of data_src)
DYN_DIM = 4            # dynamics_dimension
MAX_LEN = 64
OUTPUT_PDT = 1         # pad token id for tgt
NEG = -1e9             # additive mask value (stands in for -inf)
LN_EPS = 1e-5


# ----------------------------- in-kernel helpers ------------------------------
def _ln(x, gb, eps=LN_EPS):
    """LayerNorm over the last axis.  gb: (2, E) packed [gamma; beta]."""
    g = gb[0:1, :]
    b = gb[1:2, :]
    mu = jnp.mean(x, axis=-1, keepdims=True)
    xc = x - mu
    var = jnp.mean(xc * xc, axis=-1, keepdims=True)
    return xc * jax.lax.rsqrt(var + eps) * g + b


def _batched_attn(q, k, v, nbatch, lq, lk, scale, add_mask):
    """Single-head attention, one (tiny) batch element at a time (statically unrolled).

    q: (nbatch*lq, E), k/v: (nbatch*lk, E), add_mask: (nbatch*lq, lk) or None.
    Returns (nbatch*lq, E).
    """
    outs = []
    for b in range(nbatch):
        qb = q[b * lq:(b + 1) * lq, :]
        kb = k[b * lk:(b + 1) * lk, :]
        vb = v[b * lk:(b + 1) * lk, :]
        # q @ k^T without materializing a transpose.
        s = jax.lax.dot_general(qb, kb, (((1,), (1,)), ((), ())),
                                preferred_element_type=jnp.float32) * scale
        if add_mask is not None:
            s = s + add_mask[b * lq:(b + 1) * lq, :]
        s = s - jnp.max(s, axis=-1, keepdims=True)
        p = jnp.exp(s)
        p = p / jnp.sum(p, axis=-1, keepdims=True)
        outs.append(jnp.dot(p, vb, preferred_element_type=jnp.float32))
    return jnp.concatenate(outs, axis=0)


# ----------------------------- fused encoder-stack kernel --------------------
def _enc_stack_kernel(x_ref, wqkv_ref, bqkv_ref, wo_ref, bo_ref,
                      ln1_ref, ln2_ref, wff1_ref, bff1_ref, wff2_ref, bff2_ref,
                      fln_ref, o_ref, *, nlayers, final_ln, nbatch, seqlen, scale):
    """One grid step == one post-norm TransformerEncoderLayer (relu, eval mode).

    The running activation lives in o_ref (same output block for every layer ->
    resident in VMEM across the whole stack)."""
    E = x_ref.shape[-1]
    l = pl.program_id(0)

    @pl.when(l == 0)
    def _():
        o_ref[...] = x_ref[...]

    x = o_ref[...]                                               # (nbatch*seqlen, E)

    # --- self-attention: fused QKV matmul, single head, no mask ---
    qkv = jnp.dot(x, wqkv_ref[0], preferred_element_type=jnp.float32) + bqkv_ref[0]
    q = qkv[:, 0 * E:1 * E]
    k = qkv[:, 1 * E:2 * E]
    v = qkv[:, 2 * E:3 * E]
    a = _batched_attn(q, k, v, nbatch, seqlen, seqlen, scale, None)
    a = jnp.dot(a, wo_ref[0], preferred_element_type=jnp.float32) + bo_ref[0]
    x = _ln(x + a, ln1_ref[0])

    # --- feed-forward (relu) ---
    h = jnp.maximum(jnp.dot(x, wff1_ref[0], preferred_element_type=jnp.float32)
                    + bff1_ref[0], 0.0)
    h = jnp.dot(h, wff2_ref[0], preferred_element_type=jnp.float32) + bff2_ref[0]
    x = _ln(x + h, ln2_ref[0])

    if final_ln:
        @pl.when(l == nlayers - 1)
        def _():
            o_ref[...] = _ln(x, fln_ref[...])

        @pl.when(l < nlayers - 1)
        def _():
            o_ref[...] = x
    else:
        o_ref[...] = x


def _full_spec(shape):
    zeros = (0,) * len(shape)
    return pl.BlockSpec(shape, lambda l: zeros)


def _layer_spec(shape):
    block = (1,) + tuple(shape[1:])
    trailing = (0,) * (len(shape) - 1)
    return pl.BlockSpec(block, lambda l: (l,) + trailing)


_ENC_ORDER = ('wqkv', 'bqkv', 'wo', 'bo', 'ln1', 'ln2', 'wff1', 'bff1', 'wff2', 'bff2')


def encoder_stack_pallas(x2d, sp, *, nbatch, seqlen, final_ln):
    """Run a whole stack of encoder layers (optionally + final LN) in one pallas_call."""
    rows, E = x2d.shape
    nlayers = sp['wqkv'].shape[0]
    scale = 1.0 / math.sqrt(E // NHEAD)
    weights = [sp[k] for k in _ENC_ORDER]
    in_specs = ([_full_spec(x2d.shape)]
                + [_layer_spec(w.shape) for w in weights]
                + [_full_spec(sp['fln'].shape)])
    kernel = functools.partial(_enc_stack_kernel, nlayers=nlayers, final_ln=final_ln,
                               nbatch=nbatch, seqlen=seqlen, scale=scale)
    return pl.pallas_call(
        kernel,
        out_shape=jax.ShapeDtypeStruct((rows, E), jnp.float32),
        grid=(nlayers,),
        in_specs=in_specs,
        out_specs=_full_spec((rows, E)),
        compiler_params=pltpu.CompilerParams(dimension_semantics=("arbitrary",)),
    )(x2d, *weights, sp['fln'])


# ----------------------------- fused decoder kernel --------------------------
_DEC_ORDER = ('sa_wqkv', 'sa_bqkv', 'sa_wo', 'sa_bo',
              'ca_wq', 'ca_bq', 'ca_wkv', 'ca_bkv', 'ca_wo', 'ca_bo',
              'wff1', 'bff1', 'wff2', 'bff2',
              'ln1', 'ln2', 'ln3', 'fln', 'fc_w', 'fc_b')


def _decoder_kernel(y_ref, mem_ref, mask_ref,
                    sa_wqkv, sa_bqkv, sa_wo, sa_bo,
                    ca_wq, ca_bq, ca_wkv, ca_bkv, ca_wo, ca_bo,
                    wff1, bff1, wff2, bff2,
                    ln1, ln2, ln3, fln, fc_w, fc_b,
                    o_ref, *, nbatch, tlen, mlen, scale):
    """Post-norm TransformerDecoderLayer + final decoder LayerNorm + fc_out (eval mode)."""
    E = y_ref.shape[-1]
    y = y_ref[...]                                   # (nbatch*tlen, E)
    mem = mem_ref[...]                               # (nbatch*mlen, E)

    # --- masked self-attention (causal + tgt key-padding, additive mask) ---
    qkv = jnp.dot(y, sa_wqkv[...], preferred_element_type=jnp.float32) + sa_bqkv[...]
    q = qkv[:, 0 * E:1 * E]
    k = qkv[:, 1 * E:2 * E]
    v = qkv[:, 2 * E:3 * E]
    a = _batched_attn(q, k, v, nbatch, tlen, tlen, scale, mask_ref[...])
    a = jnp.dot(a, sa_wo[...], preferred_element_type=jnp.float32) + sa_bo[...]
    y = _ln(y + a, ln1[...])

    # --- cross-attention over memory (no memory mask in the reference) ---
    qc = jnp.dot(y, ca_wq[...], preferred_element_type=jnp.float32) + ca_bq[...]
    kv = jnp.dot(mem, ca_wkv[...], preferred_element_type=jnp.float32) + ca_bkv[...]
    kc = kv[:, 0:E]
    vc = kv[:, E:2 * E]
    a = _batched_attn(qc, kc, vc, nbatch, tlen, mlen, scale, None)
    a = jnp.dot(a, ca_wo[...], preferred_element_type=jnp.float32) + ca_bo[...]
    y = _ln(y + a, ln2[...])

    # --- feed-forward (relu) ---
    h = jnp.maximum(jnp.dot(y, wff1[...], preferred_element_type=jnp.float32) + bff1[...], 0.0)
    h = jnp.dot(h, wff2[...], preferred_element_type=jnp.float32) + bff2[...]
    y = _ln(y + h, ln3[...])

    # --- final decoder LayerNorm (nn.Transformer) + fc_out ---
    y = _ln(y, fln[...])
    o_ref[...] = jnp.dot(y, fc_w[...], preferred_element_type=jnp.float32) + fc_b[...]


def decoder_pallas(y2d, mem2d, mask2d, dp, *, nbatch, tlen, mlen):
    scale = 1.0 / math.sqrt(y2d.shape[-1] // NHEAD)
    weights = [dp[k] for k in _DEC_ORDER]
    args = [y2d, mem2d, mask2d] + weights
    in_specs = [_full_spec(a.shape) for a in args]
    kernel = functools.partial(_decoder_kernel, nbatch=nbatch, tlen=tlen, mlen=mlen,
                               scale=scale)
    return pl.pallas_call(
        kernel,
        out_shape=jax.ShapeDtypeStruct((nbatch * tlen, OUT_DIM), jnp.float32),
        grid=(1,),
        in_specs=in_specs,
        out_specs=_full_spec((nbatch * tlen, OUT_DIM)),
    )(*args)


# ----------------------------- parameter init --------------------------------
def init_linear(key, din, dout):
    k1, k2 = jax.random.split(key)
    return {'w': jax.random.normal(k1, (din, dout), jnp.float32) / math.sqrt(din),
            'b': jax.random.normal(k2, (dout,), jnp.float32) * 0.01}


def init_mha(key, E):
    kq, kk, kv, ko = jax.random.split(key, 4)
    return {'q': init_linear(kq, E, E), 'k': init_linear(kk, E, E),
            'v': init_linear(kv, E, E), 'o': init_linear(ko, E, E)}


def init_enc_layer(key, E, F):
    ka, k1, k2 = jax.random.split(key, 3)
    return {'attn': init_mha(ka, E), 'ff1': init_linear(k1, E, F),
            'ff2': init_linear(k2, F, E)}


def _ln_pair(E):
    return jnp.stack([jnp.ones((E,), jnp.float32), jnp.zeros((E,), jnp.float32)])


def stack_enc_layers(layers, E, final_ln_pair=None):
    """Stack per-layer weights into (L, ...) arrays for the layer-grid kernel."""
    def cat_qkv_w(l):
        a = l['attn']
        return jnp.concatenate([a['q']['w'], a['k']['w'], a['v']['w']], axis=1)

    def cat_qkv_b(l):
        a = l['attn']
        return jnp.concatenate([a['q']['b'], a['k']['b'], a['v']['b']])[None, :]

    return {
        'wqkv': jnp.stack([cat_qkv_w(l) for l in layers]),                 # (L, E, 3E)
        'bqkv': jnp.stack([cat_qkv_b(l) for l in layers]),                 # (L, 1, 3E)
        'wo':   jnp.stack([l['attn']['o']['w'] for l in layers]),          # (L, E, E)
        'bo':   jnp.stack([l['attn']['o']['b'][None, :] for l in layers]), # (L, 1, E)
        'ln1':  jnp.stack([_ln_pair(E) for _ in layers]),                  # (L, 2, E)
        'ln2':  jnp.stack([_ln_pair(E) for _ in layers]),                  # (L, 2, E)
        'wff1': jnp.stack([l['ff1']['w'] for l in layers]),                # (L, E, F)
        'bff1': jnp.stack([l['ff1']['b'][None, :] for l in layers]),       # (L, 1, F)
        'wff2': jnp.stack([l['ff2']['w'] for l in layers]),                # (L, F, E)
        'bff2': jnp.stack([l['ff2']['b'][None, :] for l in layers]),       # (L, 1, E)
        'fln':  final_ln_pair if final_ln_pair is not None else _ln_pair(E),
    }


def make_pe(max_len, d_model):
    """Same math as PositionalEncoding.__init__ (d_model even here)."""
    position = jnp.arange(max_len, dtype=jnp.float32)[:, None]
    div_term = jnp.exp(jnp.arange(0, d_model, 2, dtype=jnp.float32) *
                       (-math.log(10000.0) / d_model))
    pe = jnp.zeros((max_len, d_model), jnp.float32)
    pe = pe.at[:, 0::2].set(jnp.sin(position * div_term))
    pe = pe.at[:, 1::2].set(jnp.cos(position * div_term))
    return pe[:, None, :]                # (max_len, 1, d_model)


def init_model(key):
    keys = jax.random.split(key, 8)
    E, F = HIDDEN, FFN_DIM

    enc_layers = [init_enc_layer(k, E, F) for k in jax.random.split(keys[2], ENC_LAYERS)]
    dym_layers = [init_enc_layer(k, E, F) for k in jax.random.split(keys[3], DYM_LAYERS)]

    ks, kc, k1, k2 = jax.random.split(keys[4], 4)
    sa, ca = init_mha(ks, E), init_mha(kc, E)
    ff1, ff2 = init_linear(k1, E, F), init_linear(k2, F, E)
    fc = init_linear(keys[6], E, OUT_DIM)
    dec = {
        'sa_wqkv': jnp.concatenate([sa['q']['w'], sa['k']['w'], sa['v']['w']], axis=1),
        'sa_bqkv': jnp.concatenate([sa['q']['b'], sa['k']['b'], sa['v']['b']])[None, :],
        'sa_wo': sa['o']['w'], 'sa_bo': sa['o']['b'][None, :],
        'ca_wq': ca['q']['w'], 'ca_bq': ca['q']['b'][None, :],
        'ca_wkv': jnp.concatenate([ca['k']['w'], ca['v']['w']], axis=1),
        'ca_bkv': jnp.concatenate([ca['k']['b'], ca['v']['b']])[None, :],
        'ca_wo': ca['o']['w'], 'ca_bo': ca['o']['b'][None, :],
        'wff1': ff1['w'], 'bff1': ff1['b'][None, :],
        'wff2': ff2['w'], 'bff2': ff2['b'][None, :],
        'ln1': _ln_pair(E), 'ln2': _ln_pair(E), 'ln3': _ln_pair(E),
        'fln': _ln_pair(E),                 # nn.Transformer decoder final LayerNorm
        'fc_w': fc['w'], 'fc_b': fc['b'][None, :],
    }

    return {
        'dec_emb': jax.random.normal(keys[0], (OUT_DIM, HIDDEN), jnp.float32) * 0.1,
        'dym_emb': jax.random.normal(keys[1], (VOCAB_SIZE, HIDDEN), jnp.float32) * 0.1,
        'pos_enc_scale': jnp.ones((1,), jnp.float32),
        'pos_dec_scale': jnp.ones((1,), jnp.float32),
        'pe': make_pe(MAX_LEN, HIDDEN),
        'enc_stack': stack_enc_layers(enc_layers, E, _ln_pair(E)),   # + final encoder LN
        'dym_stack': stack_enc_layers(dym_layers, E, None),          # no final LN (fln unused)
        'reduce': init_linear(keys[5], DYN_EMB_SIZE, DYN_DIM * 2),
        'dec': dec,
    }


# ----------------------------- full forward pass -----------------------------
def model_forward(params, data_src, src, tgt):
    T, B = tgt.shape
    S = src.shape[0]
    E = HIDDEN

    # --- target side: pad mask, embedding, pos_decoder ---
    tgt_pad = (tgt == OUTPUT_PDT).T                              # (B, T) bool
    tgt_emb = jnp.take(params['dec_emb'], tgt, axis=0)           # (T, B, E)
    tgt_emb = tgt_emb + params['pos_dec_scale'] * params['pe'][:T]
    # TODO(synk): nn.Dropout (PositionalEncoding & transformer layers) — eval-mode identity.

    # --- source memory: pos_encoder + 3-layer encoder + final LN (one fused kernel) ---
    src_pe = src + params['pos_enc_scale'] * params['pe'][:S]    # (S, B, E)
    x2d = jnp.transpose(src_pe, (1, 0, 2)).reshape(B * S, E)     # batch-first, flattened
    mem2d = encoder_stack_pallas(x2d, params['enc_stack'],
                                 nbatch=B, seqlen=S, final_ln=True)
    memory_enc = mem2d.reshape(B, S, E)

    # --- dynamics memory: dym_encoder + pos_encoder + 2-layer encoder (one fused kernel) ---
    dm = jnp.take(params['dym_emb'], data_src, axis=0)           # (B, Ld, E)
    Ld = dm.shape[1]
    # NB: replicates PyTorch's broadcast of pe over the *batch* axis
    # (pos_encoder assumes seq-first but data_memory is batch-first in the reference).
    dm = dm + params['pos_enc_scale'] * params['pe'][:B]
    dm2d = encoder_stack_pallas(dm.reshape(B * Ld, E), params['dym_stack'],
                                nbatch=B, seqlen=Ld, final_ln=False)
    dm = dm2d.reshape(B, Ld, E)

    # --- dym_reduce_dim along the sequence axis (tiny op; plain JAX per perf review) ---
    dmr = (jnp.einsum('ble,lr->bre', dm, params['reduce']['w'])
           + params['reduce']['b'][None, :, None])               # (B, 2*dyn_dim, E)

    mem_bf = jnp.concatenate([dmr, memory_enc], axis=1)          # (B, M, E)
    M = mem_bf.shape[1]

    # --- decoder masks: causal + tgt key-padding (additive) ---
    idx = jnp.arange(T)
    causal = jnp.where(idx[None, :] > idx[:, None], NEG, 0.0)    # (T, T)
    pad_add = jnp.where(tgt_pad[:, None, :], NEG, 0.0)           # (B, 1, T)
    self_mask = (causal[None, :, :] + pad_add).reshape(B * T, T)

    # --- fused decoder layer + final LN + fc_out ---
    y2d = jnp.transpose(tgt_emb, (1, 0, 2)).reshape(B * T, E)
    out2d = decoder_pallas(y2d, mem_bf.reshape(B * M, E), self_mask, params['dec'],
                           nbatch=B, tlen=T, mlen=M)
    out = out2d.reshape(B, T, OUT_DIM)
    return jnp.transpose(out, (1, 0, 2))                         # (T, B, out_dim)


# ----------------------------- driver ----------------------------------------
if __name__ == "__main__":
    B, S, T = 2, 8, 8

    key = jax.random.PRNGKey(0)
    kp, kd, ks, kt = jax.random.split(key, 4)

    params = init_model(kp)

    data_src = jax.random.randint(kd, (B, DYN_EMB_SIZE), 0, VOCAB_SIZE, dtype=jnp.int32)
    src = jax.random.normal(ks, (S, B, IN_DIM), jnp.float32)
    tgt = jax.random.randint(kt, (T, B), 2, OUT_DIM, dtype=jnp.int32)
    tgt = tgt.at[T - 1, 0].set(OUTPUT_PDT)   # exercise the tgt key-padding mask

    fwd = jax.jit(model_forward)
    out = fwd(params, data_src, src, tgt)
    out = jax.block_until_ready(out)

    assert out.shape == (T, B, OUT_DIM), out.shape
    assert not bool(jnp.isnan(out).any()), "NaNs in output"
    print("KERNEL_OK")
</pallas_src>

<mosaic_0001>
module attributes {stable_mosaic.version = 11 : i64} {
  func.func @_enc_stack_kernel(%arg0: i32, %arg1: memref<16x32xf32, #tpu.memory_space<vmem>>, %arg2: memref<1x32x96xf32, #tpu.memory_space<vmem>>, %arg3: memref<1x1x96xf32, #tpu.memory_space<vmem>>, %arg4: memref<1x32x32xf32, #tpu.memory_space<vmem>>, %arg5: memref<1x1x32xf32, #tpu.memory_space<vmem>>, %arg6: memref<1x2x32xf32, #tpu.memory_space<vmem>>, %arg7: memref<1x2x32xf32, #tpu.memory_space<vmem>>, %arg8: memref<1x32x256xf32, #tpu.memory_space<vmem>>, %arg9: memref<1x1x256xf32, #tpu.memory_space<vmem>>, %arg10: memref<1x256x32xf32, #tpu.memory_space<vmem>>, %arg11: memref<1x1x32xf32, #tpu.memory_space<vmem>>, %arg12: memref<2x32xf32, #tpu.memory_space<vmem>>, %arg13: memref<16x32xf32, #tpu.memory_space<vmem>>) attributes {dimension_semantics = [#tpu.dimension_semantics<arbitrary>], iteration_bounds = array<i64: 3>, scalar_prefetch = 0 : i64, scratch_operands = 0 : i64, tpu.core_type = #tpu.core_type<tc>, window_params = [{pipeline_mode = #tpu.pipeline_mode<synchronous>, transform_indices = @transform_0, window_bounds = array<i64: 16, 32>}, {transform_indices = @transform_1, window_bounds = array<i64: 1, 32, 96>}, {transform_indices = @transform_2, window_bounds = array<i64: 1, 1, 96>}, {transform_indices = @transform_3, window_bounds = array<i64: 1, 32, 32>}, {transform_indices = @transform_4, window_bounds = array<i64: 1, 1, 32>}, {transform_indices = @transform_5, window_bounds = array<i64: 1, 2, 32>}, {transform_indices = @transform_6, window_bounds = array<i64: 1, 2, 32>}, {transform_indices = @transform_7, window_bounds = array<i64: 1, 32, 256>}, {transform_indices = @transform_8, window_bounds = array<i64: 1, 1, 256>}, {transform_indices = @transform_9, window_bounds = array<i64: 1, 256, 32>}, {transform_indices = @transform_10, window_bounds = array<i64: 1, 1, 32>}, {pipeline_mode = #tpu.pipeline_mode<synchronous>, transform_indices = @transform_11, window_bounds = array<i64: 2, 32>}, {pipeline_mode = #tpu.pipeline_mode<synchronous>, transform_indices = @transform_12, window_bounds = array<i64: 16, 32>}]} {
    %c0_i32 = arith.constant 0 : i32
    %0 = arith.cmpi eq, %arg0, %c0_i32 : i32
    %1 = arith.extui %0 : i1 to i32
    %c0_i32_0 = arith.constant 0 : i32
    %2 = arith.cmpi ne, %1, %c0_i32_0 : i32
    scf.if %2 {
      %c0_59 = arith.constant 0 : index
      %c0_60 = arith.constant 0 : index
      %126 = vector.load %arg1[%c0_59, %c0_60] : memref<16x32xf32, #tpu.memory_space<vmem>>, vector<16x32xf32>
      %c0_61 = arith.constant 0 : index
      %c0_62 = arith.constant 0 : index
      %127 = vector.load %arg13[%c0_61, %c0_62] : memref<16x32xf32, #tpu.memory_space<vmem>>, vector<16x32xf32>
      tpu.vector_store %arg13[%c0_61, %c0_62], %126 {strides = array<i32>} : memref<16x32xf32, #tpu.memory_space<vmem>>, vector<16x32xf32>,
    } else {
    }
    %c0 = arith.constant 0 : index
    %c0_1 = arith.constant 0 : index
    %3 = vector.load %arg13[%c0, %c0_1] : memref<16x32xf32, #tpu.memory_space<vmem>>, vector<16x32xf32>
    %c0_2 = arith.constant 0 : index
    %c0_3 = arith.constant 0 : index
    %c0_4 = arith.constant 0 : index
    %4 = vector.load %arg2[%c0_2, %c0_3, %c0_4] : memref<1x32x96xf32, #tpu.memory_space<vmem>>, vector<1x32x96xf32>
    %5 = vector.shape_cast %4 : vector<1x32x96xf32> to vector<32x96xf32>
    %cst = arith.constant dense<0.000000e+00> : vector<16x96xf32>
    %6 = tpu.matmul %3, %5, %cst {dimension_numbers = #tpu.dot_dimension_numbers<[1], [0], [0], [1], [0, 0, 1, 1], [], []>} : vector<16x32xf32>, vector<32x96xf32>, vector<16x96xf32> -> vector<16x96xf32>
    %c0_5 = arith.constant 0 : index
    %c0_6 = arith.constant 0 : index
    %c0_7 = arith.constant 0 : index
    %7 = vector.load %arg3[%c0_5, %c0_6, %c0_7] : memref<1x1x96xf32, #tpu.memory_space<vmem>>, vector<1x1x96xf32>
    %8 = vector.shape_cast %7 : vector<1x1x96xf32> to vector<1x96xf32>
    %9 = vector.broadcast %8 : vector<1x96xf32> to vector<16x96xf32>
    %10 = arith.addf %6, %9 : vector<16x96xf32>
    %11 = vector.extract_strided_slice %10 {offsets = [0, 0], sizes = [16, 32], strides = [1, 1]} : vector<16x96xf32> to vector<16x32xf32>
    %12 = vector.extract_strided_slice %10 {offsets = [0, 32], sizes = [16, 32], strides = [1, 1]} : vector<16x96xf32> to vector<16x32xf32>
    %13 = vector.extract_strided_slice %10 {offsets = [0, 64], sizes = [16, 32], strides = [1, 1]} : vector<16x96xf32> to vector<16x32xf32>
    %14 = vector.extract_strided_slice %11 {offsets = [0, 0], sizes = [8, 32], strides = [1, 1]} : vector<16x32xf32> to vector<8x32xf32>
    %15 = vector.extract_strided_slice %12 {offsets = [0, 0], sizes = [8, 32], strides = [1, 1]} : vector<16x32xf32> to vector<8x32xf32>
    %16 = vector.extract_strided_slice %13 {offsets = [0, 0], sizes = [8, 32], strides = [1, 1]} : vector<16x32xf32> to vector<8x32xf32>
    %cst_8 = arith.constant dense<0.000000e+00> : vector<8x8xf32>
    %17 = tpu.matmul %14, %15, %cst_8 {dimension_numbers = #tpu.dot_dimension_numbers<[1], [1], [0], [0], [0, 0, 1, 0], [], []>} : vector<8x32xf32>, vector<8x32xf32>, vector<8x8xf32> -> vector<8x8xf32>
    %cst_9 = arith.constant 0.176776692 : f32
    %18 = vector.broadcast %cst_9 : f32 to vector<8x8xf32>
    %19 = arith.mulf %17, %18 : vector<8x8xf32>
    %cst_10 = arith.constant dense<0xFF800000> : vector<8xf32>
    %20 = vector.multi_reduction <maximumf>, %19, %cst_10 [1] : vector<8x8xf32> to vector<8xf32>
    %21 = vector.shape_cast %20 : vector<8xf32> to vector<8x1xf32>
    %22 = vector.broadcast %21 : vector<8x1xf32> to vector<8x8xf32>
    %23 = arith.subf %19, %22 : vector<8x8xf32>
    %24 = math.exp %23 : vector<8x8xf32>
    %cst_11 = arith.constant dense<0.000000e+00> : vector<8xf32>
    %25 = vector.multi_reduction <add>, %24, %cst_11 [1] : vector<8x8xf32> to vector<8xf32>
    %26 = vector.shape_cast %25 : vector<8xf32> to vector<8x1xf32>
    %27 = vector.broadcast %26 : vector<8x1xf32> to vector<8x8xf32>
    %28 = arith.divf %24, %27 : vector<8x8xf32>
    %cst_12 = arith.constant dense<0.000000e+00> : vector<8x32xf32>
    %29 = tpu.matmul %28, %16, %cst_12 {dimension_numbers = #tpu.dot_dimension_numbers<[1], [0], [0], [1], [0, 0, 1, 1], [], []>} : vector<8x8xf32>, vector<8x32xf32>, vector<8x32xf32> -> vector<8x32xf32>
    %30 = vector.extract_strided_slice %11 {offsets = [8, 0], sizes = [8, 32], strides = [1, 1]} : vector<16x32xf32> to vector<8x32xf32>
    %31 = vector.extract_strided_slice %12 {offsets = [8, 0], sizes = [8, 32], strides = [1, 1]} : vector<16x32xf32> to vector<8x32xf32>
    %32 = vector.extract_strided_slice %13 {offsets = [8, 0], sizes = [8, 32], strides = [1, 1]} : vector<16x32xf32> to vector<8x32xf32>
    %cst_13 = arith.constant dense<0.000000e+00> : vector<8x8xf32>
    %33 = tpu.matmul %30, %31, %cst_13 {dimension_numbers = #tpu.dot_dimension_numbers<[1], [1], [0], [0], [0, 0, 1, 0], [], []>} : vector<8x32xf32>, vector<8x32xf32>, vector<8x8xf32> -> vector<8x8xf32>
    %cst_14 = arith.constant 0.176776692 : f32
    %34 = vector.broadcast %cst_14 : f32 to vector<8x8xf32>
    %35 = arith.mulf %33, %34 : vector<8x8xf32>
    %cst_15 = arith.constant dense<0xFF800000> : vector<8xf32>
    %36 = vector.multi_reduction <maximumf>, %35, %cst_15 [1] : vector<8x8xf32> to vector<8xf32>
    %37 = vector.shape_cast %36 : vector<8xf32> to vector<8x1xf32>
    %38 = vector.broadcast %37 : vector<8x1xf32> to vector<8x8xf32>
    %39 = arith.subf %35, %38 : vector<8x8xf32>
    %40 = math.exp %39 : vector<8x8xf32>
    %cst_16 = arith.constant dense<0.000000e+00> : vector<8xf32>
    %41 = vector.multi_reduction <add>, %40, %cst_16 [1] : vector<8x8xf32> to vector<8xf32>
    %42 = vector.shape_cast %41 : vector<8xf32> to vector<8x1xf32>
    %43 = vector.broadcast %42 : vector<8x1xf32> to vector<8x8xf32>
    %44 = arith.divf %40, %43 : vector<8x8xf32>
    %cst_17 = arith.constant dense<0.000000e+00> : vector<8x32xf32>
    %45 = tpu.matmul %44, %32, %cst_17 {dimension_numbers = #tpu.dot_dimension_numbers<[1], [0], [0], [1], [0, 0, 1, 1], [], []>} : vector<8x8xf32>, vector<8x32xf32>, vector<8x32xf32> -> vector<8x32xf32>
    %46 = tpu.concatenate %29, %45 in 0 : vector<8x32xf32>, vector<8x32xf32> -> vector<16x32xf32>
    %c0_18 = arith.constant 0 : index
    %c0_19 = arith.constant 0 : index
    %c0_20 = arith.constant 0 : index
    %47 = vector.load %arg4[%c0_18, %c0_19, %c0_20] : memref<1x32x32xf32, #tpu.memory_space<vmem>>, vector<1x32x32xf32>
    %48 = vector.shape_cast %47 : vector<1x32x32xf32> to vector<32x32xf32>
    %cst_21 = arith.constant dense<0.000000e+00> : vector<16x32xf32>
    %49 = tpu.matmul %46, %48, %cst_21 {dimension_numbers = #tpu.dot_dimension_numbers<[1], [0], [0], [1], [0, 0, 1, 1], [], []>} : vector<16x32xf32>, vector<32x32xf32>, vector<16x32xf32> -> vector<16x32xf32>
    %c0_22 = arith.constant 0 : index
    %c0_23 = arith.constant 0 : index
    %c0_24 = arith.constant 0 : index
    %50 = vector.load %arg5[%c0_22, %c0_23, %c0_24] : memref<1x1x32xf32, #tpu.memory_space<vmem>>, vector<1x1x32xf32>
    %51 = vector.shape_cast %50 : vector<1x1x32xf32> to vector<1x32xf32>
    %52 = vector.broadcast %51 : vector<1x32xf32> to vector<16x32xf32>
    %53 = arith.addf %49, %52 : vector<16x32xf32>
    %54 = arith.addf %3, %53 : vector<16x32xf32>
    %c0_25 = arith.constant 0 : index
    %c0_26 = arith.constant 0 : index
    %c0_27 = arith.constant 0 : index
    %55 = vector.load %arg6[%c0_25, %c0_26, %c0_27] : memref<1x2x32xf32, #tpu.memory_space<vmem>>, vector<1x2x32xf32>
    %56 = vector.shape_cast %55 : vector<1x2x32xf32> to vector<2x32xf32>
    %57 = vector.extract_strided_slice %56 {offsets = [0, 0], sizes = [1, 32], strides = [1, 1]} : vector<2x32xf32> to vector<1x32xf32>
    %58 = vector.extract_strided_slice %56 {offsets = [1, 0], sizes = [1, 32], strides = [1, 1]} : vector<2x32xf32> to vector<1x32xf32>
    %cst_28 = arith.constant dense<0.000000e+00> : vector<16xf32>
    %59 = vector.multi_reduction <add>, %54, %cst_28 [1] : vector<16x32xf32> to vector<16xf32>
    %60 = vector.shape_cast %59 : vector<16xf32> to vector<16x1xf32>
    %cst_29 = arith.constant 3.200000e+01 : f32
    %61 = vector.broadcast %cst_29 : f32 to vector<16x1xf32>
    %62 = arith.divf %60, %61 : vector<16x1xf32>
    %63 = vector.broadcast %62 : vector<16x1xf32> to vector<16x32xf32>
    %64 = arith.subf %54, %63 : vector<16x32xf32>
    %65 = arith.mulf %64, %64 : vector<16x32xf32>
    %cst_30 = arith.constant dense<0.000000e+00> : vector<16xf32>
    %66 = vector.multi_reduction <add>, %65, %cst_30 [1] : vector<16x32xf32> to vector<16xf32>
    %67 = vector.shape_cast %66 : vector<16xf32> to vector<16x1xf32>
    %cst_31 = arith.constant 3.200000e+01 : f32
    %68 = vector.broadcast %cst_31 : f32 to vector<16x1xf32>
    %69 = arith.divf %67, %68 : vector<16x1xf32>
    %cst_32 = arith.constant 9.99999974E-6 : f32
    %70 = vector.broadcast %cst_32 : f32 to vector<16x1xf32>
    %71 = arith.addf %69, %70 : vector<16x1xf32>
    %72 = math.rsqrt %71 : vector<16x1xf32>
    %73 = vector.broadcast %72 : vector<16x1xf32> to vector<16x32xf32>
    %74 = arith.mulf %64, %73 : vector<16x32xf32>
    %75 = vector.broadcast %57 : vector<1x32xf32> to vector<16x32xf32>
    %76 = arith.mulf %74, %75 : vector<16x32xf32>
    %77 = vector.broadcast %58 : vector<1x32xf32> to vector<16x32xf32>
    %78 = arith.addf %76, %77 : vector<16x32xf32>
    %c0_33 = arith.constant 0 : index
    %c0_34 = arith.constant 0 : index
    %c0_35 = arith.constant 0 : index
    %79 = vector.load %arg8[%c0_33, %c0_34, %c0_35] : memref<1x32x256xf32, #tpu.memory_space<vmem>>, vector<1x32x256xf32>
    %80 = vector.shape_cast %79 : vector<1x32x256xf32> to vector<32x256xf32>
    %cst_36 = arith.constant dense<0.000000e+00> : vector<16x256xf32>
    %81 = tpu.matmul %78, %80, %cst_36 {dimension_numbers = #tpu.dot_dimension_numbers<[1], [0], [0], [1], [0, 0, 1, 1], [], []>} : vector<16x32xf32>, vector<32x256xf32>, vector<16x256xf32> -> vector<16x256xf32>
    %c0_37 = arith.constant 0 : index
    %c0_38 = arith.constant 0 : index
    %c0_39 = arith.constant 0 : index
    %82 = vector.load %arg9[%c0_37, %c0_38, %c0_39] : memref<1x1x256xf32, #tpu.memory_space<vmem>>, vector<1x1x256xf32>
    %83 = vector.shape_cast %82 : vector<1x1x256xf32> to vector<1x256xf32>
    %84 = vector.broadcast %83 : vector<1x256xf32> to vector<16x256xf32>
    %85 = arith.addf %81, %84 : vector<16x256xf32>
    %cst_40 = arith.constant 0.000000e+00 : f32
    %86 = vector.broadcast %cst_40 : f32 to vector<16x256xf32>
    %87 = arith.maximumf %85, %86 : vector<16x256xf32>
    %c0_41 = arith.constant 0 : index
    %c0_42 = arith.constant 0 : index
    %c0_43 = arith.constant 0 : index
    %88 = vector.load %arg10[%c0_41, %c0_42, %c0_43] : memref<1x256x32xf32, #tpu.memory_space<vmem>>, vector<1x256x32xf32>
    %89 = vector.shape_cast %88 : vector<1x256x32xf32> to vector<256x32xf32>
    %cst_44 = arith.constant dense<0.000000e+00> : vector<16x32xf32>
    %90 = tpu.matmul %87, %89, %cst_44 {dimension_numbers = #tpu.dot_dimension_numbers<[1], [0], [0], [1], [0, 0, 1, 1], [], []>} : vector<16x256xf32>, vector<256x32xf32>, vector<16x32xf32> -> vector<16x32xf32>
    %c0_45 = arith.constant 0 : index
    %c0_46 = arith.constant 0 : index
    %c0_47 = arith.constant 0 : index
    %91 = vector.load %arg11[%c0_45, %c0_46, %c0_47] : memref<1x1x32xf32, #tpu.memory_space<vmem>>, vector<1x1x32xf32>
    %92 = vector.shape_cast %91 : vector<1x1x32xf32> to vector<1x32xf32>
    %93 = vector.broadcast %92 : vector<1x32xf32> to vector<16x32xf32>
    %94 = arith.addf %90, %93 : vector<16x32xf32>
    %95 = arith.addf %78, %94 : vector<16x32xf32>
    %c0_48 = arith.constant 0 : index
    %c0_49 = arith.constant 0 : index
    %c0_50 = arith.constant 0 : index
    %96 = vector.load %arg7[%c0_48, %c0_49, %c0_50] : memref<1x2x32xf32, #tpu.memory_space<vmem>>, vector<1x2x32xf32>
    %97 = vector.shape_cast %96 : vector<1x2x32xf32> to vector<2x32xf32>
    %98 = vector.extract_strided_slice %97 {offsets = [0, 0], sizes = [1, 32], strides = [1, 1]} : vector<2x32xf32> to vector<1x32xf32>
    %99 = vector.extract_strided_slice %97 {offsets = [1, 0], sizes = [1, 32], strides = [1, 1]} : vector<2x32xf32> to vector<1x32xf32>
    %cst_51 = arith.constant dense<0.000000e+00> : vector<16xf32>
    %100 = vector.multi_reduction <add>, %95, %cst_51 [1] : vector<16x32xf32> to vector<16xf32>
    %101 = vector.shape_cast %100 : vector<16xf32> to vector<16x1xf32>
    %cst_52 = arith.constant 3.200000e+01 : f32
    %102 = vector.broadcast %cst_52 : f32 to vector<16x1xf32>
    %103 = arith.divf %101, %102 : vector<16x1xf32>
    %104 = vector.broadcast %103 : vector<16x1xf32> to vector<16x32xf32>
    %105 = arith.subf %95, %104 : vector<16x32xf32>
    %106 = arith.mulf %105, %105 : vector<16x32xf32>
    %cst_53 = arith.constant dense<0.000000e+00> : vector<16xf32>
    %107 = vector.multi_reduction <add>, %106, %cst_53 [1] : vector<16x32xf32> to vector<16xf32>
    %108 = vector.shape_cast %107 : vector<16xf32> to vector<16x1xf32>
    %cst_54 = arith.constant 3.200000e+01 : f32
    %109 = vector.broadcast %cst_54 : f32 to vector<16x1xf32>
    %110 = arith.divf %108, %109 : vector<16x1xf32>
    %cst_55 = arith.constant 9.99999974E-6 : f32
    %111 = vector.broadcast %cst_55 : f32 to vector<16x1xf32>
    %112 = arith.addf %110, %111 : vector<16x1xf32>
    %113 = math.rsqrt %112 : vector<16x1xf32>
    %114 = vector.broadcast %113 : vector<16x1xf32> to vector<16x32xf32>
    %115 = arith.mulf %105, %114 : vector<16x32xf32>
    %116 = vector.broadcast %98 : vector<1x32xf32> to vector<16x32xf32>
    %117 = arith.mulf %115, %116 : vector<16x32xf32>
    %118 = vector.broadcast %99 : vector<1x32xf32> to vector<16x32xf32>
    %119 = arith.addf %117, %118 : vector<16x32xf32>
    %c2_i32 = arith.constant 2 : i32
    %120 = arith.cmpi eq, %arg0, %c2_i32 : i32
    %121 = arith.extui %120 : i1 to i32
    %c0_i32_56 = arith.constant 0 : i32
    %122 = arith.cmpi ne, %121, %c0_i32_56 : i32
    scf.if %122 {
      %c0_59 = arith.constant 0 : index
      %c0_60 = arith.constant 0 : index
      %126 = vector.load %arg12[%c0_59, %c0_60] : memref<2x32xf32, #tpu.memory_space<vmem>>, vector<2x32xf32>
      %127 = vector.extract_strided_slice %126 {offsets = [0, 0], sizes = [1, 32], strides = [1, 1]} : vector<2x32xf32> to vector<1x32xf32>
      %128 = vector.extract_strided_slice %126 {offsets = [1, 0], sizes = [1, 32], strides = [1, 1]} : vector<2x32xf32> to vector<1x32xf32>
      %cst_61 = arith.constant dense<0.000000e+00> : vector<16xf32>
      %129 = vector.multi_reduction <add>, %119, %cst_61 [1] : vector<16x32xf32> to vector<16xf32>
      %130 = vector.shape_cast %129 : vector<16xf32> to vector<16x1xf32>
      %cst_62 = arith.constant 3.200000e+01 : f32
      %131 = vector.broadcast %cst_62 : f32 to vector<16x1xf32>
      %132 = arith.divf %130, %131 : vector<16x1xf32>
      %133 = vector.broadcast %132 : vector<16x1xf32> to vector<16x32xf32>
      %134 = arith.subf %119, %133 : vector<16x32xf32>
      %135 = arith.mulf %134, %134 : vector<16x32xf32>
      %cst_63 = arith.constant dense<0.000000e+00> : vector<16xf32>
      %136 = vector.multi_reduction <add>, %135, %cst_63 [1] : vector<16x32xf32> to vector<16xf32>
      %137 = vector.shape_cast %136 : vector<16xf32> to vector<16x1xf32>
      %cst_64 = arith.constant 3.200000e+01 : f32
      %138 = vector.broadcast %cst_64 : f32 to vector<16x1xf32>
      %139 = arith.divf %137, %138 : vector<16x1xf32>
      %cst_65 = arith.constant 9.99999974E-6 : f32
      %140 = vector.broadcast %cst_65 : f32 to vector<16x1xf32>
      %141 = arith.addf %139, %140 : vector<16x1xf32>
      %142 = math.rsqrt %141 : vector<16x1xf32>
      %143 = vector.broadcast %142 : vector<16x1xf32> to vector<16x32xf32>
      %144 = arith.mulf %134, %143 : vector<16x32xf32>
      %145 = vector.broadcast %127 : vector<1x32xf32> to vector<16x32xf32>
      %146 = arith.mulf %144, %145 : vector<16x32xf32>
      %147 = vector.broadcast %128 : vector<1x32xf32> to vector<16x32xf32>
      %148 = arith.addf %146, %147 : vector<16x32xf32>
      %c0_66 = arith.constant 0 : index
      %c0_67 = arith.constant 0 : index
      %149 = vector.load %arg13[%c0_66, %c0_67] : memref<16x32xf32, #tpu.memory_space<vmem>>, vector<16x32xf32>
      tpu.vector_store %arg13[%c0_66, %c0_67], %148 {strides = array<i32>} : memref<16x32xf32, #tpu.memory_space<vmem>>, vector<16x32xf32>,
    } else {
    }
    %c2_i32_57 = arith.constant 2 : i32
    %123 = arith.cmpi slt, %arg0, %c2_i32_57 : i32
    %124 = arith.extui %123 : i1 to i32
    %c0_i32_58 = arith.constant 0 : i32
    %125 = arith.cmpi ne, %124, %c0_i32_58 : i32
    scf.if %125 {
      %c0_59 = arith.constant 0 : index
      %c0_60 = arith.constant 0 : index
      %126 = vector.load %arg13[%c0_59, %c0_60] : memref<16x32xf32, #tpu.memory_space<vmem>>, vector<16x32xf32>
      tpu.vector_store %arg13[%c0_59, %c0_60], %119 {strides = array<i32>} : memref<16x32xf32, #tpu.memory_space<vmem>>, vector<16x32xf32>,
    } else {
    }
    return
  }
  func.func @transform_0(%arg0: i32) -> (i32, i32) {
    %c0_i32 = arith.constant 0 : i32
    %c0_i32_0 = arith.constant 0 : i32
    %c0_i32_1 = arith.constant 0 : i32
    return %c0_i32, %c0_i32_0 : i32, i32
  }
  func.func @transform_1(%arg0: i32) -> (i32, i32, i32) {
    %c0_i32 = arith.constant 0 : i32
    %c0_i32_0 = arith.constant 0 : i32
    %c0_i32_1 = arith.constant 0 : i32
    return %arg0, %c0_i32, %c0_i32_0 : i32, i32, i32
  }
  func.func @transform_2(%arg0: i32) -> (i32, i32, i32) {
    %c0_i32 = arith.constant 0 : i32
    %c0_i32_0 = arith.constant 0 : i32
    %c0_i32_1 = arith.constant 0 : i32
    return %arg0, %c0_i32, %c0_i32_0 : i32, i32, i32
  }
  func.func @transform_3(%arg0: i32) -> (i32, i32, i32) {
    %c0_i32 = arith.constant 0 : i32
    %c0_i32_0 = arith.constant 0 : i32
    %c0_i32_1 = arith.constant 0 : i32
    return %arg0, %c0_i32, %c0_i32_0 : i32, i32, i32
  }
  func.func @transform_4(%arg0: i32) -> (i32, i32, i32) {
    %c0_i32 = arith.constant 0 : i32
    %c0_i32_0 = arith.constant 0 : i32
    %c0_i32_1 = arith.constant 0 : i32
    return %arg0, %c0_i32, %c0_i32_0 : i32, i32, i32
  }
  func.func @transform_5(%arg0: i32) -> (i32, i32, i32) {
    %c0_i32 = arith.constant 0 : i32
    %c0_i32_0 = arith.constant 0 : i32
    %c0_i32_1 = arith.constant 0 : i32
    return %arg0, %c0_i32, %c0_i32_0 : i32, i32, i32
  }
  func.func @transform_6(%arg0: i32) -> (i32, i32, i32) {
    %c0_i32 = arith.constant 0 : i32
    %c0_i32_0 = arith.constant 0 : i32
    %c0_i32_1 = arith.constant 0 : i32
    return %arg0, %c0_i32, %c0_i32_0 : i32, i32, i32
  }
  func.func @transform_7(%arg0: i32) -> (i32, i32, i32) {
    %c0_i32 = arith.constant 0 : i32
    %c0_i32_0 = arith.constant 0 : i32
    %c0_i32_1 = arith.constant 0 : i32
    return %arg0, %c0_i32, %c0_i32_0 : i32, i32, i32
  }
  func.func @transform_8(%arg0: i32) -> (i32, i32, i32) {
    %c0_i32 = arith.constant 0 : i32
    %c0_i32_0 = arith.constant 0 : i32
    %c0_i32_1 = arith.constant 0 : i32
    return %arg0, %c0_i32, %c0_i32_0 : i32, i32, i32
  }
  func.func @transform_9(%arg0: i32) -> (i32, i32, i32) {
    %c0_i32 = arith.constant 0 : i32
    %c0_i32_0 = arith.constant 0 : i32
    %c0_i32_1 = arith.constant 0 : i32
    return %arg0, %c0_i32, %c0_i32_0 : i32, i32, i32
  }
  func.func @transform_10(%arg0: i32) -> (i32, i32, i32) {
    %c0_i32 = arith.constant 0 : i32
    %c0_i32_0 = arith.constant 0 : i32
    %c0_i32_1 = arith.constant 0 : i32
    return %arg0, %c0_i32, %c0_i32_0 : i32, i32, i32
  }
  func.func @transform_11(%arg0: i32) -> (i32, i32) {
    %c0_i32 = arith.constant 0 : i32
    %c0_i32_0 = arith.constant 0 : i32
    %c0_i32_1 = arith.constant 0 : i32
    return %c0_i32, %c0_i32_0 : i32, i32
  }
  func.func @transform_12(%arg0: i32) -> (i32, i32) {
    %c0_i32 = arith.constant 0 : i32
    %c0_i32_0 = arith.constant 0 : i32
    %c0_i32_1 = arith.constant 0 : i32
    return %c0_i32, %c0_i32_0 : i32, i32
  }
}

module attributes {stable_mosaic.version = 11 : i64} {
  func.func @_enc_stack_kernel(%arg0: i32, %arg1: memref<16x32xf32, #tpu.memory_space<vmem>>, %arg2: memref<1x32x96xf32, #tpu.memory_space<vmem>>, %arg3: memref<1x1x96xf32, #tpu.memory_space<vmem>>, %arg4: memref<1x32x32xf32, #tpu.memory_space<vmem>>, %arg5: memref<1x1x32xf32, #tpu.memory_space<vmem>>, %arg6: memref<1x2x32xf32, #tpu.memory_space<vmem>>, %arg7: memref<1x2x32xf32, #tpu.memory_space<vmem>>, %arg8: memref<1x32x256xf32, #tpu.memory_space<vmem>>, %arg9: memref<1x1x256xf32, #tpu.memory_space<vmem>>, %arg10: memref<1x256x32xf32, #tpu.memory_space<vmem>>, %arg11: memref<1x1x32xf32, #tpu.memory_space<vmem>>, %arg12: memref<2x32xf32, #tpu.memory_space<vmem>>, %arg13: memref<16x32xf32, #tpu.memory_space<vmem>>) attributes {dimension_semantics = [#tpu.dimension_semantics<arbitrary>], iteration_bounds = array<i64: 2>, scalar_prefetch = 0 : i64, scratch_operands = 0 : i64, tpu.core_type = #tpu.core_type<tc>, window_params = [{pipeline_mode = #tpu.pipeline_mode<synchronous>, transform_indices = @transform_0, window_bounds = array<i64: 16, 32>}, {transform_indices = @transform_1, window_bounds = array<i64: 1, 32, 96>}, {transform_indices = @transform_2, window_bounds = array<i64: 1, 1, 96>}, {transform_indices = @transform_3, window_bounds = array<i64: 1, 32, 32>}, {transform_indices = @transform_4, window_bounds = array<i64: 1, 1, 32>}, {transform_indices = @transform_5, window_bounds = array<i64: 1, 2, 32>}, {transform_indices = @transform_6, window_bounds = array<i64: 1, 2, 32>}, {transform_indices = @transform_7, window_bounds = array<i64: 1, 32, 256>}, {transform_indices = @transform_8, window_bounds = array<i64: 1, 1, 256>}, {transform_indices = @transform_9, window_bounds = array<i64: 1, 256, 32>}, {transform_indices = @transform_10, window_bounds = array<i64: 1, 1, 32>}, {pipeline_mode = #tpu.pipeline_mode<synchronous>, transform_indices = @transform_11, window_bounds = array<i64: 2, 32>}, {pipeline_mode = #tpu.pipeline_mode<synchronous>, transform_indices = @transform_12, window_bounds = array<i64: 16, 32>}]} {
    %c0_i32 = arith.constant 0 : i32
    %0 = arith.cmpi eq, %arg0, %c0_i32 : i32
    %1 = arith.extui %0 : i1 to i32
    %c0_i32_0 = arith.constant 0 : i32
    %2 = arith.cmpi ne, %1, %c0_i32_0 : i32
    scf.if %2 {
      %c0_58 = arith.constant 0 : index
      %c0_59 = arith.constant 0 : index
      %121 = vector.load %arg1[%c0_58, %c0_59] : memref<16x32xf32, #tpu.memory_space<vmem>>, vector<16x32xf32>
      %c0_60 = arith.constant 0 : index
      %c0_61 = arith.constant 0 : index
      %122 = vector.load %arg13[%c0_60, %c0_61] : memref<16x32xf32, #tpu.memory_space<vmem>>, vector<16x32xf32>
      tpu.vector_store %arg13[%c0_60, %c0_61], %121 {strides = array<i32>} : memref<16x32xf32, #tpu.memory_space<vmem>>, vector<16x32xf32>,
    } else {
    }
    %c0 = arith.constant 0 : index
    %c0_1 = arith.constant 0 : index
    %3 = vector.load %arg13[%c0, %c0_1] : memref<16x32xf32, #tpu.memory_space<vmem>>, vector<16x32xf32>
    %c0_2 = arith.constant 0 : index
    %c0_3 = arith.constant 0 : index
    %c0_4 = arith.constant 0 : index
    %4 = vector.load %arg2[%c0_2, %c0_3, %c0_4] : memref<1x32x96xf32, #tpu.memory_space<vmem>>, vector<1x32x96xf32>
    %5 = vector.shape_cast %4 : vector<1x32x96xf32> to vector<32x96xf32>
    %cst = arith.constant dense<0.000000e+00> : vector<16x96xf32>
    %6 = tpu.matmul %3, %5, %cst {dimension_numbers = #tpu.dot_dimension_numbers<[1], [0], [0], [1], [0, 0, 1, 1], [], []>} : vector<16x32xf32>, vector<32x96xf32>, vector<16x96xf32> -> vector<16x96xf32>
    %c0_5 = arith.constant 0 : index
    %c0_6 = arith.constant 0 : index
    %c0_7 = arith.constant 0 : index
    %7 = vector.load %arg3[%c0_5, %c0_6, %c0_7] : memref<1x1x96xf32, #tpu.memory_space<vmem>>, vector<1x1x96xf32>
    %8 = vector.shape_cast %7 : vector<1x1x96xf32> to vector<1x96xf32>
    %9 = vector.broadcast %8 : vector<1x96xf32> to vector<16x96xf32>
    %10 = arith.addf %6, %9 : vector<16x96xf32>
    %11 = vector.extract_strided_slice %10 {offsets = [0, 0], sizes = [16, 32], strides = [1, 1]} : vector<16x96xf32> to vector<16x32xf32>
    %12 = vector.extract_strided_slice %10 {offsets = [0, 32], sizes = [16, 32], strides = [1, 1]} : vector<16x96xf32> to vector<16x32xf32>
    %13 = vector.extract_strided_slice %10 {offsets = [0, 64], sizes = [16, 32], strides = [1, 1]} : vector<16x96xf32> to vector<16x32xf32>
    %14 = vector.extract_strided_slice %11 {offsets = [0, 0], sizes = [8, 32], strides = [1, 1]} : vector<16x32xf32> to vector<8x32xf32>
    %15 = vector.extract_strided_slice %12 {offsets = [0, 0], sizes = [8, 32], strides = [1, 1]} : vector<16x32xf32> to vector<8x32xf32>
    %16 = vector.extract_strided_slice %13 {offsets = [0, 0], sizes = [8, 32], strides = [1, 1]} : vector<16x32xf32> to vector<8x32xf32>
    %cst_8 = arith.constant dense<0.000000e+00> : vector<8x8xf32>
    %17 = tpu.matmul %14, %15, %cst_8 {dimension_numbers = #tpu.dot_dimension_numbers<[1], [1], [0], [0], [0, 0, 1, 0], [], []>} : vector<8x32xf32>, vector<8x32xf32>, vector<8x8xf32> -> vector<8x8xf32>
    %cst_9 = arith.constant 0.176776692 : f32
    %18 = vector.broadcast %cst_9 : f32 to vector<8x8xf32>
    %19 = arith.mulf %17, %18 : vector<8x8xf32>
    %cst_10 = arith.constant dense<0xFF800000> : vector<8xf32>
    %20 = vector.multi_reduction <maximumf>, %19, %cst_10 [1] : vector<8x8xf32> to vector<8xf32>
    %21 = vector.shape_cast %20 : vector<8xf32> to vector<8x1xf32>
    %22 = vector.broadcast %21 : vector<8x1xf32> to vector<8x8xf32>
    %23 = arith.subf %19, %22 : vector<8x8xf32>
    %24 = math.exp %23 : vector<8x8xf32>
    %cst_11 = arith.constant dense<0.000000e+00> : vector<8xf32>
    %25 = vector.multi_reduction <add>, %24, %cst_11 [1] : vector<8x8xf32> to vector<8xf32>
    %26 = vector.shape_cast %25 : vector<8xf32> to vector<8x1xf32>
    %27 = vector.broadcast %26 : vector<8x1xf32> to vector<8x8xf32>
    %28 = arith.divf %24, %27 : vector<8x8xf32>
    %cst_12 = arith.constant dense<0.000000e+00> : vector<8x32xf32>
    %29 = tpu.matmul %28, %16, %cst_12 {dimension_numbers = #tpu.dot_dimension_numbers<[1], [0], [0], [1], [0, 0, 1, 1], [], []>} : vector<8x8xf32>, vector<8x32xf32>, vector<8x32xf32> -> vector<8x32xf32>
    %30 = vector.extract_strided_slice %11 {offsets = [8, 0], sizes = [8, 32], strides = [1, 1]} : vector<16x32xf32> to vector<8x32xf32>
    %31 = vector.extract_strided_slice %12 {offsets = [8, 0], sizes = [8, 32], strides = [1, 1]} : vector<16x32xf32> to vector<8x32xf32>
    %32 = vector.extract_strided_slice %13 {offsets = [8, 0], sizes = [8, 32], strides = [1, 1]} : vector<16x32xf32> to vector<8x32xf32>
    %cst_13 = arith.constant dense<0.000000e+00> : vector<8x8xf32>
    %33 = tpu.matmul %30, %31, %cst_13 {dimension_numbers = #tpu.dot_dimension_numbers<[1], [1], [0], [0], [0, 0, 1, 0], [], []>} : vector<8x32xf32>, vector<8x32xf32>, vector<8x8xf32> -> vector<8x8xf32>
    %cst_14 = arith.constant 0.176776692 : f32
    %34 = vector.broadcast %cst_14 : f32 to vector<8x8xf32>
    %35 = arith.mulf %33, %34 : vector<8x8xf32>
    %cst_15 = arith.constant dense<0xFF800000> : vector<8xf32>
    %36 = vector.multi_reduction <maximumf>, %35, %cst_15 [1] : vector<8x8xf32> to vector<8xf32>
    %37 = vector.shape_cast %36 : vector<8xf32> to vector<8x1xf32>
    %38 = vector.broadcast %37 : vector<8x1xf32> to vector<8x8xf32>
    %39 = arith.subf %35, %38 : vector<8x8xf32>
    %40 = math.exp %39 : vector<8x8xf32>
    %cst_16 = arith.constant dense<0.000000e+00> : vector<8xf32>
    %41 = vector.multi_reduction <add>, %40, %cst_16 [1] : vector<8x8xf32> to vector<8xf32>
    %42 = vector.shape_cast %41 : vector<8xf32> to vector<8x1xf32>
    %43 = vector.broadcast %42 : vector<8x1xf32> to vector<8x8xf32>
    %44 = arith.divf %40, %43 : vector<8x8xf32>
    %cst_17 = arith.constant dense<0.000000e+00> : vector<8x32xf32>
    %45 = tpu.matmul %44, %32, %cst_17 {dimension_numbers = #tpu.dot_dimension_numbers<[1], [0], [0], [1], [0, 0, 1, 1], [], []>} : vector<8x8xf32>, vector<8x32xf32>, vector<8x32xf32> -> vector<8x32xf32>
    %46 = tpu.concatenate %29, %45 in 0 : vector<8x32xf32>, vector<8x32xf32> -> vector<16x32xf32>
    %c0_18 = arith.constant 0 : index
    %c0_19 = arith.constant 0 : index
    %c0_20 = arith.constant 0 : index
    %47 = vector.load %arg4[%c0_18, %c0_19, %c0_20] : memref<1x32x32xf32, #tpu.memory_space<vmem>>, vector<1x32x32xf32>
    %48 = vector.shape_cast %47 : vector<1x32x32xf32> to vector<32x32xf32>
    %cst_21 = arith.constant dense<0.000000e+00> : vector<16x32xf32>
    %49 = tpu.matmul %46, %48, %cst_21 {dimension_numbers = #tpu.dot_dimension_numbers<[1], [0], [0], [1], [0, 0, 1, 1], [], []>} : vector<16x32xf32>, vector<32x32xf32>, vector<16x32xf32> -> vector<16x32xf32>
    %c0_22 = arith.constant 0 : index
    %c0_23 = arith.constant 0 : index
    %c0_24 = arith.constant 0 : index
    %50 = vector.load %arg5[%c0_22, %c0_23, %c0_24] : memref<1x1x32xf32, #tpu.memory_space<vmem>>, vector<1x1x32xf32>
    %51 = vector.shape_cast %50 : vector<1x1x32xf32> to vector<1x32xf32>
    %52 = vector.broadcast %51 : vector<1x32xf32> to vector<16x32xf32>
    %53 = arith.addf %49, %52 : vector<16x32xf32>
    %54 = arith.addf %3, %53 : vector<16x32xf32>
    %c0_25 = arith.constant 0 : index
    %c0_26 = arith.constant 0 : index
    %c0_27 = arith.constant 0 : index
    %55 = vector.load %arg6[%c0_25, %c0_26, %c0_27] : memref<1x2x32xf32, #tpu.memory_space<vmem>>, vector<1x2x32xf32>
    %56 = vector.shape_cast %55 : vector<1x2x32xf32> to vector<2x32xf32>
    %57 = vector.extract_strided_slice %56 {offsets = [0, 0], sizes = [1, 32], strides = [1, 1]} : vector<2x32xf32> to vector<1x32xf32>
    %58 = vector.extract_strided_slice %56 {offsets = [1, 0], sizes = [1, 32], strides = [1, 1]} : vector<2x32xf32> to vector<1x32xf32>
    %cst_28 = arith.constant dense<0.000000e+00> : vector<16xf32>
    %59 = vector.multi_reduction <add>, %54, %cst_28 [1] : vector<16x32xf32> to vector<16xf32>
    %60 = vector.shape_cast %59 : vector<16xf32> to vector<16x1xf32>
    %cst_29 = arith.constant 3.200000e+01 : f32
    %61 = vector.broadcast %cst_29 : f32 to vector<16x1xf32>
    %62 = arith.divf %60, %61 : vector<16x1xf32>
    %63 = vector.broadcast %62 : vector<16x1xf32> to vector<16x32xf32>
    %64 = arith.subf %54, %63 : vector<16x32xf32>
    %65 = arith.mulf %64, %64 : vector<16x32xf32>
    %cst_30 = arith.constant dense<0.000000e+00> : vector<16xf32>
    %66 = vector.multi_reduction <add>, %65, %cst_30 [1] : vector<16x32xf32> to vector<16xf32>
    %67 = vector.shape_cast %66 : vector<16xf32> to vector<16x1xf32>
    %cst_31 = arith.constant 3.200000e+01 : f32
    %68 = vector.broadcast %cst_31 : f32 to vector<16x1xf32>
    %69 = arith.divf %67, %68 : vector<16x1xf32>
    %cst_32 = arith.constant 9.99999974E-6 : f32
    %70 = vector.broadcast %cst_32 : f32 to vector<16x1xf32>
    %71 = arith.addf %69, %70 : vector<16x1xf32>
    %72 = math.rsqrt %71 : vector<16x1xf32>
    %73 = vector.broadcast %72 : vector<16x1xf32> to vector<16x32xf32>
    %74 = arith.mulf %64, %73 : vector<16x32xf32>
    %75 = vector.broadcast %57 : vector<1x32xf32> to vector<16x32xf32>
    %76 = arith.mulf %74, %75 : vector<16x32xf32>
    %77 = vector.broadcast %58 : vector<1x32xf32> to vector<16x32xf32>
    %78 = arith.addf %76, %77 : vector<16x32xf32>
    %c0_33 = arith.constant 0 : index
    %c0_34 = arith.constant 0 : index
    %c0_35 = arith.constant 0 : index
    %79 = vector.load %arg8[%c0_33, %c0_34, %c0_35] : memref<1x32x256xf32, #tpu.memory_space<vmem>>, vector<1x32x256xf32>
    %80 = vector.shape_cast %79 : vector<1x32x256xf32> to vector<32x256xf32>
    %cst_36 = arith.constant dense<0.000000e+00> : vector<16x256xf32>
    %81 = tpu.matmul %78, %80, %cst_36 {dimension_numbers = #tpu.dot_dimension_numbers<[1], [0], [0], [1], [0, 0, 1, 1], [], []>} : vector<16x32xf32>, vector<32x256xf32>, vector<16x256xf32> -> vector<16x256xf32>
    %c0_37 = arith.constant 0 : index
    %c0_38 = arith.constant 0 : index
    %c0_39 = arith.constant 0 : index
    %82 = vector.load %arg9[%c0_37, %c0_38, %c0_39] : memref<1x1x256xf32, #tpu.memory_space<vmem>>, vector<1x1x256xf32>
    %83 = vector.shape_cast %82 : vector<1x1x256xf32> to vector<1x256xf32>
    %84 = vector.broadcast %83 : vector<1x256xf32> to vector<16x256xf32>
    %85 = arith.addf %81, %84 : vector<16x256xf32>
    %cst_40 = arith.constant 0.000000e+00 : f32
    %86 = vector.broadcast %cst_40 : f32 to vector<16x256xf32>
    %87 = arith.maximumf %85, %86 : vector<16x256xf32>
    %c0_41 = arith.constant 0 : index
    %c0_42 = arith.constant 0 : index
    %c0_43 = arith.constant 0 : index
    %88 = vector.load %arg10[%c0_41, %c0_42, %c0_43] : memref<1x256x32xf32, #tpu.memory_space<vmem>>, vector<1x256x32xf32>
    %89 = vector.shape_cast %88 : vector<1x256x32xf32> to vector<256x32xf32>
    %cst_44 = arith.constant dense<0.000000e+00> : vector<16x32xf32>
    %90 = tpu.matmul %87, %89, %cst_44 {dimension_numbers = #tpu.dot_dimension_numbers<[1], [0], [0], [1], [0, 0, 1, 1], [], []>} : vector<16x256xf32>, vector<256x32xf32>, vector<16x32xf32> -> vector<16x32xf32>
    %c0_45 = arith.constant 0 : index
    %c0_46 = arith.constant 0 : index
    %c0_47 = arith.constant 0 : index
    %91 = vector.load %arg11[%c0_45, %c0_46, %c0_47] : memref<1x1x32xf32, #tpu.memory_space<vmem>>, vector<1x1x32xf32>
    %92 = vector.shape_cast %91 : vector<1x1x32xf32> to vector<1x32xf32>
    %93 = vector.broadcast %92 : vector<1x32xf32> to vector<16x32xf32>
    %94 = arith.addf %90, %93 : vector<16x32xf32>
    %95 = arith.addf %78, %94 : vector<16x32xf32>
    %c0_48 = arith.constant 0 : index
    %c0_49 = arith.constant 0 : index
    %c0_50 = arith.constant 0 : index
    %96 = vector.load %arg7[%c0_48, %c0_49, %c0_50] : memref<1x2x32xf32, #tpu.memory_space<vmem>>, vector<1x2x32xf32>
    %97 = vector.shape_cast %96 : vector<1x2x32xf32> to vector<2x32xf32>
    %98 = vector.extract_strided_slice %97 {offsets = [0, 0], sizes = [1, 32], strides = [1, 1]} : vector<2x32xf32> to vector<1x32xf32>
    %99 = vector.extract_strided_slice %97 {offsets = [1, 0], sizes = [1, 32], strides = [1, 1]} : vector<2x32xf32> to vector<1x32xf32>
    %cst_51 = arith.constant dense<0.000000e+00> : vector<16xf32>
    %100 = vector.multi_reduction <add>, %95, %cst_51 [1] : vector<16x32xf32> to vector<16xf32>
    %101 = vector.shape_cast %100 : vector<16xf32> to vector<16x1xf32>
    %cst_52 = arith.constant 3.200000e+01 : f32
    %102 = vector.broadcast %cst_52 : f32 to vector<16x1xf32>
    %103 = arith.divf %101, %102 : vector<16x1xf32>
    %104 = vector.broadcast %103 : vector<16x1xf32> to vector<16x32xf32>
    %105 = arith.subf %95, %104 : vector<16x32xf32>
    %106 = arith.mulf %105, %105 : vector<16x32xf32>
    %cst_53 = arith.constant dense<0.000000e+00> : vector<16xf32>
    %107 = vector.multi_reduction <add>, %106, %cst_53 [1] : vector<16x32xf32> to vector<16xf32>
    %108 = vector.shape_cast %107 : vector<16xf32> to vector<16x1xf32>
    %cst_54 = arith.constant 3.200000e+01 : f32
    %109 = vector.broadcast %cst_54 : f32 to vector<16x1xf32>
    %110 = arith.divf %108, %109 : vector<16x1xf32>
    %cst_55 = arith.constant 9.99999974E-6 : f32
    %111 = vector.broadcast %cst_55 : f32 to vector<16x1xf32>
    %112 = arith.addf %110, %111 : vector<16x1xf32>
    %113 = math.rsqrt %112 : vector<16x1xf32>
    %114 = vector.broadcast %113 : vector<16x1xf32> to vector<16x32xf32>
    %115 = arith.mulf %105, %114 : vector<16x32xf32>
    %116 = vector.broadcast %98 : vector<1x32xf32> to vector<16x32xf32>
    %117 = arith.mulf %115, %116 : vector<16x32xf32>
    %118 = vector.broadcast %99 : vector<1x32xf32> to vector<16x32xf32>
    %119 = arith.addf %117, %118 : vector<16x32xf32>
    %c0_56 = arith.constant 0 : index
    %c0_57 = arith.constant 0 : index
    %120 = vector.load %arg13[%c0_56, %c0_57] : memref<16x32xf32, #tpu.memory_space<vmem>>, vector<16x32xf32>
    tpu.vector_store %arg13[%c0_56, %c0_57], %119 {strides = array<i32>} : memref<16x32xf32, #tpu.memory_space<vmem>>, vector<16x32xf32>,
    return
  }
  func.func @transform_0(%arg0: i32) -> (i32, i32) {
    %c0_i32 = arith.constant 0 : i32
    %c0_i32_0 = arith.constant 0 : i32
    %c0_i32_1 = arith.constant 0 : i32
    return %c0_i32, %c0_i32_0 : i32, i32
  }
  func.func @transform_1(%arg0: i32) -> (i32, i32, i32) {
    %c0_i32 = arith.constant 0 : i32
    %c0_i32_0 = arith.constant 0 : i32
    %c0_i32_1 = arith.constant 0 : i32
    return %arg0, %c0_i32, %c0_i32_0 : i32, i32, i32
  }
  func.func @transform_2(%arg0: i32) -> (i32, i32, i32) {
    %c0_i32 = arith.constant 0 : i32
    %c0_i32_0 = arith.constant 0 : i32
    %c0_i32_1 = arith.constant 0 : i32
    return %arg0, %c0_i32, %c0_i32_0 : i32, i32, i32
  }
  func.func @transform_3(%arg0: i32) -> (i32, i32, i32) {
    %c0_i32 = arith.constant 0 : i32
    %c0_i32_0 = arith.constant 0 : i32
    %c0_i32_1 = arith.constant 0 : i32
    return %arg0, %c0_i32, %c0_i32_0 : i32, i32, i32
  }
  func.func @transform_4(%arg0: i32) -> (i32, i32, i32) {
    %c0_i32 = arith.constant 0 : i32
    %c0_i32_0 = arith.constant 0 : i32
    %c0_i32_1 = arith.constant 0 : i32
    return %arg0, %c0_i32, %c0_i32_0 : i32, i32, i32
  }
  func.func @transform_5(%arg0: i32) -> (i32, i32, i32) {
    %c0_i32 = arith.constant 0 : i32
    %c0_i32_0 = arith.constant 0 : i32
    %c0_i32_1 = arith.constant 0 : i32
    return %arg0, %c0_i32, %c0_i32_0 : i32, i32, i32
  }
  func.func @transform_6(%arg0: i32) -> (i32, i32, i32) {
    %c0_i32 = arith.constant 0 : i32
    %c0_i32_0 = arith.constant 0 : i32
    %c0_i32_1 = arith.constant 0 : i32
    return %arg0, %c0_i32, %c0_i32_0 : i32, i32, i32
  }
  func.func @transform_7(%arg0: i32) -> (i32, i32, i32) {
    %c0_i32 = arith.constant 0 : i32
    %c0_i32_0 = arith.constant 0 : i32
    %c0_i32_1 = arith.constant 0 : i32
    return %arg0, %c0_i32, %c0_i32_0 : i32, i32, i32
  }
  func.func @transform_8(%arg0: i32) -> (i32, i32, i32) {
    %c0_i32 = arith.constant 0 : i32
    %c0_i32_0 = arith.constant 0 : i32
    %c0_i32_1 = arith.constant 0 : i32
    return %arg0, %c0_i32, %c0_i32_0 : i32, i32, i32
  }
  func.func @transform_9(%arg0: i32) -> (i32, i32, i32) {
    %c0_i32 = arith.constant 0 : i32
    %c0_i32_0 = arith.constant 0 : i32
    %c0_i32_1 = arith.constant 0 : i32
    return %arg0, %c0_i32, %c0_i32_0 : i32, i32, i32
  }
  func.func @transform_10(%arg0: i32) -> (i32, i32, i32) {
    %c0_i32 = arith.constant 0 : i32
    %c0_i32_0 = arith.constant 0 : i32
    %c0_i32_1 = arith.constant 0 : i32
    return %arg0, %c0_i32, %c0_i32_0 : i32, i32, i32
  }
  func.func @transform_11(%arg0: i32) -> (i32, i32) {
    %c0_i32 = arith.constant 0 : i32
    %c0_i32_0 = arith.constant 0 : i32
    %c0_i32_1 = arith.constant 0 : i32
    return %c0_i32, %c0_i32_0 : i32, i32
  }
  func.func @transform_12(%arg0: i32) -> (i32, i32) {
    %c0_i32 = arith.constant 0 : i32
    %c0_i32_0 = arith.constant 0 : i32
    %c0_i32_1 = arith.constant 0 : i32
    return %c0_i32, %c0_i32_0 : i32, i32
  }
}

module attributes {stable_mosaic.version = 11 : i64} {
  func.func @_decoder_kernel(%arg0: i32, %arg1: memref<16x32xf32, #tpu.memory_space<vmem>>, %arg2: memref<32x32xf32, #tpu.memory_space<vmem>>, %arg3: memref<16x8xf32, #tpu.memory_space<vmem>>, %arg4: memref<32x96xf32, #tpu.memory_space<vmem>>, %arg5: memref<1x96xf32, #tpu.memory_space<vmem>>, %arg6: memref<32x32xf32, #tpu.memory_space<vmem>>, %arg7: memref<1x32xf32, #tpu.memory_space<vmem>>, %arg8: memref<32x32xf32, #tpu.memory_space<vmem>>, %arg9: memref<1x32xf32, #tpu.memory_space<vmem>>, %arg10: memref<32x64xf32, #tpu.memory_space<vmem>>, %arg11: memref<1x64xf32, #tpu.memory_space<vmem>>, %arg12: memref<32x32xf32, #tpu.memory_space<vmem>>, %arg13: memref<1x32xf32, #tpu.memory_space<vmem>>, %arg14: memref<32x256xf32, #tpu.memory_space<vmem>>, %arg15: memref<1x256xf32, #tpu.memory_space<vmem>>, %arg16: memref<256x32xf32, #tpu.memory_space<vmem>>, %arg17: memref<1x32xf32, #tpu.memory_space<vmem>>, %arg18: memref<2x32xf32, #tpu.memory_space<vmem>>, %arg19: memref<2x32xf32, #tpu.memory_space<vmem>>, %arg20: memref<2x32xf32, #tpu.memory_space<vmem>>, %arg21: memref<2x32xf32, #tpu.memory_space<vmem>>, %arg22: memref<32x16xf32, #tpu.memory_space<vmem>>, %arg23: memref<1x16xf32, #tpu.memory_space<vmem>>, %arg24: memref<16x16xf32, #tpu.memory_space<vmem>>) attributes {dimension_semantics = [#tpu.dimension_semantics<arbitrary>], iteration_bounds = array<i64: 1>, scalar_prefetch = 0 : i64, scratch_operands = 0 : i64, tpu.core_type = #tpu.core_type<tc>, window_params = [{pipeline_mode = #tpu.pipeline_mode<synchronous>, transform_indices = @transform_0, window_bounds = array<i64: 16, 32>}, {pipeline_mode = #tpu.pipeline_mode<synchronous>, transform_indices = @transform_1, window_bounds = array<i64: 32, 32>}, {pipeline_mode = #tpu.pipeline_mode<synchronous>, transform_indices = @transform_2, window_bounds = array<i64: 16, 8>}, {pipeline_mode = #tpu.pipeline_mode<synchronous>, transform_indices = @transform_3, window_bounds = array<i64: 32, 96>}, {pipeline_mode = #tpu.pipeline_mode<synchronous>, transform_indices = @transform_4, window_bounds = array<i64: 1, 96>}, {pipeline_mode = #tpu.pipeline_mode<synchronous>, transform_indices = @transform_5, window_bounds = array<i64: 32, 32>}, {pipeline_mode = #tpu.pipeline_mode<synchronous>, transform_indices = @transform_6, window_bounds = array<i64: 1, 32>}, {pipeline_mode = #tpu.pipeline_mode<synchronous>, transform_indices = @transform_7, window_bounds = array<i64: 32, 32>}, {pipeline_mode = #tpu.pipeline_mode<synchronous>, transform_indices = @transform_8, window_bounds = array<i64: 1, 32>}, {pipeline_mode = #tpu.pipeline_mode<synchronous>, transform_indices = @transform_9, window_bounds = array<i64: 32, 64>}, {pipeline_mode = #tpu.pipeline_mode<synchronous>, transform_indices = @transform_10, window_bounds = array<i64: 1, 64>}, {pipeline_mode = #tpu.pipeline_mode<synchronous>, transform_indices = @transform_11, window_bounds = array<i64: 32, 32>}, {pipeline_mode = #tpu.pipeline_mode<synchronous>, transform_indices = @transform_12, window_bounds = array<i64: 1, 32>}, {pipeline_mode = #tpu.pipeline_mode<synchronous>, transform_indices = @transform_13, window_bounds = array<i64: 32, 256>}, {pipeline_mode = #tpu.pipeline_mode<synchronous>, transform_indices = @transform_14, window_bounds = array<i64: 1, 256>}, {pipeline_mode = #tpu.pipeline_mode<synchronous>, transform_indices = @transform_15, window_bounds = array<i64: 256, 32>}, {pipeline_mode = #tpu.pipeline_mode<synchronous>, transform_indices = @transform_16, window_bounds = array<i64: 1, 32>}, {pipeline_mode = #tpu.pipeline_mode<synchronous>, transform_indices = @transform_17, window_bounds = array<i64: 2, 32>}, {pipeline_mode = #tpu.pipeline_mode<synchronous>, transform_indices = @transform_18, window_bounds = array<i64: 2, 32>}, {pipeline_mode = #tpu.pipeline_mode<synchronous>, transform_indices = @transform_19, window_bounds = array<i64: 2, 32>}, {pipeline_mode = #tpu.pipeline_mode<synchronous>, transform_indices = @transform_20, window_bounds = array<i64: 2, 32>}, {pipeline_mode = #tpu.pipeline_mode<synchronous>, transform_indices = @transform_21, window_bounds = array<i64: 32, 16>}, {pipeline_mode = #tpu.pipeline_mode<synchronous>, transform_indices = @transform_22, window_bounds = array<i64: 1, 16>}, {pipeline_mode = #tpu.pipeline_mode<synchronous>, transform_indices = @transform_23, window_bounds = array<i64: 16, 16>}]} {
    %c0 = arith.constant 0 : index
    %c0_0 = arith.constant 0 : index
    %0 = vector.load %arg1[%c0, %c0_0] : memref<16x32xf32, #tpu.memory_space<vmem>>, vector<16x32xf32>
    %c0_1 = arith.constant 0 : index
    %c0_2 = arith.constant 0 : index
    %1 = vector.load %arg2[%c0_1, %c0_2] : memref<32x32xf32, #tpu.memory_space<vmem>>, vector<32x32xf32>
    %c0_3 = arith.constant 0 : index
    %c0_4 = arith.constant 0 : index
    %2 = vector.load %arg4[%c0_3, %c0_4] : memref<32x96xf32, #tpu.memory_space<vmem>>, vector<32x96xf32>
    %cst = arith.constant dense<0.000000e+00> : vector<16x96xf32>
    %3 = tpu.matmul %0, %2, %cst {dimension_numbers = #tpu.dot_dimension_numbers<[1], [0], [0], [1], [0, 0, 1, 1], [], []>} : vector<16x32xf32>, vector<32x96xf32>, vector<16x96xf32> -> vector<16x96xf32>
    %c0_5 = arith.constant 0 : index
    %c0_6 = arith.constant 0 : index
    %4 = vector.load %arg5[%c0_5, %c0_6] : memref<1x96xf32, #tpu.memory_space<vmem>>, vector<1x96xf32>
    %5 = vector.broadcast %4 : vector<1x96xf32> to vector<16x96xf32>
    %6 = arith.addf %3, %5 : vector<16x96xf32>
    %7 = vector.extract_strided_slice %6 {offsets = [0, 0], sizes = [16, 32], strides = [1, 1]} : vector<16x96xf32> to vector<16x32xf32>
    %8 = vector.extract_strided_slice %6 {offsets = [0, 32], sizes = [16, 32], strides = [1, 1]} : vector<16x96xf32> to vector<16x32xf32>
    %9 = vector.extract_strided_slice %6 {offsets = [0, 64], sizes = [16, 32], strides = [1, 1]} : vector<16x96xf32> to vector<16x32xf32>
    %c0_7 = arith.constant 0 : index
    %c0_8 = arith.constant 0 : index
    %10 = vector.load %arg3[%c0_7, %c0_8] : memref<16x8xf32, #tpu.memory_space<vmem>>, vector<16x8xf32>
    %11 = vector.shape_cast %10 : vector<16x8xf32> to vector<16x8xf32>
    %12 = vector.extract_strided_slice %7 {offsets = [0, 0], sizes = [8, 32], strides = [1, 1]} : vector<16x32xf32> to vector<8x32xf32>
    %13 = vector.extract_strided_slice %8 {offsets = [0, 0], sizes = [8, 32], strides = [1, 1]} : vector<16x32xf32> to vector<8x32xf32>
    %14 = vector.extract_strided_slice %9 {offsets = [0, 0], sizes = [8, 32], strides = [1, 1]} : vector<16x32xf32> to vector<8x32xf32>
    %cst_9 = arith.constant dense<0.000000e+00> : vector<8x8xf32>
    %15 = tpu.matmul %12, %13, %cst_9 {dimension_numbers = #tpu.dot_dimension_numbers<[1], [1], [0], [0], [0, 0, 1, 0], [], []>} : vector<8x32xf32>, vector<8x32xf32>, vector<8x8xf32> -> vector<8x8xf32>
    %cst_10 = arith.constant 0.176776692 : f32
    %16 = vector.broadcast %cst_10 : f32 to vector<8x8xf32>
    %17 = arith.mulf %15, %16 : vector<8x8xf32>
    %18 = vector.extract_strided_slice %11 {offsets = [0, 0], sizes = [8, 8], strides = [1, 1]} : vector<16x8xf32> to vector<8x8xf32>
    %19 = arith.addf %17, %18 : vector<8x8xf32>
    %cst_11 = arith.constant dense<0xFF800000> : vector<8xf32>
    %20 = vector.multi_reduction <maximumf>, %19, %cst_11 [1] : vector<8x8xf32> to vector<8xf32>
    %21 = vector.shape_cast %20 : vector<8xf32> to vector<8x1xf32>
    %22 = vector.broadcast %21 : vector<8x1xf32> to vector<8x8xf32>
    %23 = arith.subf %19, %22 : vector<8x8xf32>
    %24 = math.exp %23 : vector<8x8xf32>
    %cst_12 = arith.constant dense<0.000000e+00> : vector<8xf32>
    %25 = vector.multi_reduction <add>, %24, %cst_12 [1] : vector<8x8xf32> to vector<8xf32>
    %26 = vector.shape_cast %25 : vector<8xf32> to vector<8x1xf32>
    %27 = vector.broadcast %26 : vector<8x1xf32> to vector<8x8xf32>
    %28 = arith.divf %24, %27 : vector<8x8xf32>
    %cst_13 = arith.constant dense<0.000000e+00> : vector<8x32xf32>
    %29 = tpu.matmul %28, %14, %cst_13 {dimension_numbers = #tpu.dot_dimension_numbers<[1], [0], [0], [1], [0, 0, 1, 1], [], []>} : vector<8x8xf32>, vector<8x32xf32>, vector<8x32xf32> -> vector<8x32xf32>
    %30 = vector.extract_strided_slice %7 {offsets = [8, 0], sizes = [8, 32], strides = [1, 1]} : vector<16x32xf32> to vector<8x32xf32>
    %31 = vector.extract_strided_slice %8 {offsets = [8, 0], sizes = [8, 32], strides = [1, 1]} : vector<16x32xf32> to vector<8x32xf32>
    %32 = vector.extract_strided_slice %9 {offsets = [8, 0], sizes = [8, 32], strides = [1, 1]} : vector<16x32xf32> to vector<8x32xf32>
    %cst_14 = arith.constant dense<0.000000e+00> : vector<8x8xf32>
    %33 = tpu.matmul %30, %31, %cst_14 {dimension_numbers = #tpu.dot_dimension_numbers<[1], [1], [0], [0], [0, 0, 1, 0], [], []>} : vector<8x32xf32>, vector<8x32xf32>, vector<8x8xf32> -> vector<8x8xf32>
    %cst_15 = arith.constant 0.176776692 : f32
    %34 = vector.broadcast %cst_15 : f32 to vector<8x8xf32>
    %35 = arith.mulf %33, %34 : vector<8x8xf32>
    %36 = vector.extract_strided_slice %11 {offsets = [8, 0], sizes = [8, 8], strides = [1, 1]} : vector<16x8xf32> to vector<8x8xf32>
    %37 = arith.addf %35, %36 : vector<8x8xf32>
    %cst_16 = arith.constant dense<0xFF800000> : vector<8xf32>
    %38 = vector.multi_reduction <maximumf>, %37, %cst_16 [1] : vector<8x8xf32> to vector<8xf32>
    %39 = vector.shape_cast %38 : vector<8xf32> to vector<8x1xf32>
    %40 = vector.broadcast %39 : vector<8x1xf32> to vector<8x8xf32>
    %41 = arith.subf %37, %40 : vector<8x8xf32>
    %42 = math.exp %41 : vector<8x8xf32>
    %cst_17 = arith.constant dense<0.000000e+00> : vector<8xf32>
    %43 = vector.multi_reduction <add>, %42, %cst_17 [1] : vector<8x8xf32> to vector<8xf32>
    %44 = vector.shape_cast %43 : vector<8xf32> to vector<8x1xf32>
    %45 = vector.broadcast %44 : vector<8x1xf32> to vector<8x8xf32>
    %46 = arith.divf %42, %45 : vector<8x8xf32>
    %cst_18 = arith.constant dense<0.000000e+00> : vector<8x32xf32>
    %47 = tpu.matmul %46, %32, %cst_18 {dimension_numbers = #tpu.dot_dimension_numbers<[1], [0], [0], [1], [0, 0, 1, 1], [], []>} : vector<8x8xf32>, vector<8x32xf32>, vector<8x32xf32> -> vector<8x32xf32>
    %48 = tpu.concatenate %29, %47 in 0 : vector<8x32xf32>, vector<8x32xf32> -> vector<16x32xf32>
    %c0_19 = arith.constant 0 : index
    %c0_20 = arith.constant 0 : index
    %49 = vector.load %arg6[%c0_19, %c0_20] : memref<32x32xf32, #tpu.memory_space<vmem>>, vector<32x32xf32>
    %cst_21 = arith.constant dense<0.000000e+00> : vector<16x32xf32>
    %50 = tpu.matmul %48, %49, %cst_21 {dimension_numbers = #tpu.dot_dimension_numbers<[1], [0], [0], [1], [0, 0, 1, 1], [], []>} : vector<16x32xf32>, vector<32x32xf32>, vector<16x32xf32> -> vector<16x32xf32>
    %c0_22 = arith.constant 0 : index
    %c0_23 = arith.constant 0 : index
    %51 = vector.load %arg7[%c0_22, %c0_23] : memref<1x32xf32, #tpu.memory_space<vmem>>, vector<1x32xf32>
    %52 = vector.broadcast %51 : vector<1x32xf32> to vector<16x32xf32>
    %53 = arith.addf %50, %52 : vector<16x32xf32>
    %54 = arith.addf %0, %53 : vector<16x32xf32>
    %c0_24 = arith.constant 0 : index
    %c0_25 = arith.constant 0 : index
    %55 = vector.load %arg18[%c0_24, %c0_25] : memref<2x32xf32, #tpu.memory_space<vmem>>, vector<2x32xf32>
    %56 = vector.extract_strided_slice %55 {offsets = [0, 0], sizes = [1, 32], strides = [1, 1]} : vector<2x32xf32> to vector<1x32xf32>
    %57 = vector.extract_strided_slice %55 {offsets = [1, 0], sizes = [1, 32], strides = [1, 1]} : vector<2x32xf32> to vector<1x32xf32>
    %cst_26 = arith.constant dense<0.000000e+00> : vector<16xf32>
    %58 = vector.multi_reduction <add>, %54, %cst_26 [1] : vector<16x32xf32> to vector<16xf32>
    %59 = vector.shape_cast %58 : vector<16xf32> to vector<16x1xf32>
    %cst_27 = arith.constant 3.200000e+01 : f32
    %60 = vector.broadcast %cst_27 : f32 to vector<16x1xf32>
    %61 = arith.divf %59, %60 : vector<16x1xf32>
    %62 = vector.broadcast %61 : vector<16x1xf32> to vector<16x32xf32>
    %63 = arith.subf %54, %62 : vector<16x32xf32>
    %64 = arith.mulf %63, %63 : vector<16x32xf32>
    %cst_28 = arith.constant dense<0.000000e+00> : vector<16xf32>
    %65 = vector.multi_reduction <add>, %64, %cst_28 [1] : vector<16x32xf32> to vector<16xf32>
    %66 = vector.shape_cast %65 : vector<16xf32> to vector<16x1xf32>
    %cst_29 = arith.constant 3.200000e+01 : f32
    %67 = vector.broadcast %cst_29 : f32 to vector<16x1xf32>
    %68 = arith.divf %66, %67 : vector<16x1xf32>
    %cst_30 = arith.constant 9.99999974E-6 : f32
    %69 = vector.broadcast %cst_30 : f32 to vector<16x1xf32>
    %70 = arith.addf %68, %69 : vector<16x1xf32>
    %71 = math.rsqrt %70 : vector<16x1xf32>
    %72 = vector.broadcast %71 : vector<16x1xf32> to vector<16x32xf32>
    %73 = arith.mulf %63, %72 : vector<16x32xf32>
    %74 = vector.broadcast %56 : vector<1x32xf32> to vector<16x32xf32>
    %75 = arith.mulf %73, %74 : vector<16x32xf32>
    %76 = vector.broadcast %57 : vector<1x32xf32> to vector<16x32xf32>
    %77 = arith.addf %75, %76 : vector<16x32xf32>
    %c0_31 = arith.constant 0 : index
    %c0_32 = arith.constant 0 : index
    %78 = vector.load %arg8[%c0_31, %c0_32] : memref<32x32xf32, #tpu.memory_space<vmem>>, vector<32x32xf32>
    %cst_33 = arith.constant dense<0.000000e+00> : vector<16x32xf32>
    %79 = tpu.matmul %77, %78, %cst_33 {dimension_numbers = #tpu.dot_dimension_numbers<[1], [0], [0], [1], [0, 0, 1, 1], [], []>} : vector<16x32xf32>, vector<32x32xf32>, vector<16x32xf32> -> vector<16x32xf32>
    %c0_34 = arith.constant 0 : index
    %c0_35 = arith.constant 0 : index
    %80 = vector.load %arg9[%c0_34, %c0_35] : memref<1x32xf32, #tpu.memory_space<vmem>>, vector<1x32xf32>
    %81 = vector.broadcast %80 : vector<1x32xf32> to vector<16x32xf32>
    %82 = arith.addf %79, %81 : vector<16x32xf32>
    %c0_36 = arith.constant 0 : index
    %c0_37 = arith.constant 0 : index
    %83 = vector.load %arg10[%c0_36, %c0_37] : memref<32x64xf32, #tpu.memory_space<vmem>>, vector<32x64xf32>
    %cst_38 = arith.constant dense<0.000000e+00> : vector<32x64xf32>
    %84 = tpu.matmul %1, %83, %cst_38 {dimension_numbers = #tpu.dot_dimension_numbers<[1], [0], [0], [1], [0, 0, 1, 1], [], []>} : vector<32x32xf32>, vector<32x64xf32>, vector<32x64xf32> -> vector<32x64xf32>
    %c0_39 = arith.constant 0 : index
    %c0_40 = arith.constant 0 : index
    %85 = vector.load %arg11[%c0_39, %c0_40] : memref<1x64xf32, #tpu.memory_space<vmem>>, vector<1x64xf32>
    %86 = vector.broadcast %85 : vector<1x64xf32> to vector<32x64xf32>
    %87 = arith.addf %84, %86 : vector<32x64xf32>
    %88 = vector.extract_strided_slice %87 {offsets = [0, 0], sizes = [32, 32], strides = [1, 1]} : vector<32x64xf32> to vector<32x32xf32>
    %89 = vector.extract_strided_slice %87 {offsets = [0, 32], sizes = [32, 32], strides = [1, 1]} : vector<32x64xf32> to vector<32x32xf32>
    %90 = vector.extract_strided_slice %82 {offsets = [0, 0], sizes = [8, 32], strides = [1, 1]} : vector<16x32xf32> to vector<8x32xf32>
    %91 = vector.extract_strided_slice %88 {offsets = [0, 0], sizes = [16, 32], strides = [1, 1]} : vector<32x32xf32> to vector<16x32xf32>
    %92 = vector.extract_strided_slice %89 {offsets = [0, 0], sizes = [16, 32], strides = [1, 1]} : vector<32x32xf32> to vector<16x32xf32>
    %cst_41 = arith.constant dense<0.000000e+00> : vector<8x16xf32>
    %93 = tpu.matmul %90, %91, %cst_41 {dimension_numbers = #tpu.dot_dimension_numbers<[1], [1], [0], [0], [0, 0, 1, 0], [], []>} : vector<8x32xf32>, vector<16x32xf32>, vector<8x16xf32> -> vector<8x16xf32>
    %cst_42 = arith.constant 0.176776692 : f32
    %94 = vector.broadcast %cst_42 : f32 to vector<8x16xf32>
    %95 = arith.mulf %93, %94 : vector<8x16xf32>
    %cst_43 = arith.constant dense<0xFF800000> : vector<8xf32>
    %96 = vector.multi_reduction <maximumf>, %95, %cst_43 [1] : vector<8x16xf32> to vector<8xf32>
    %97 = vector.shape_cast %96 : vector<8xf32> to vector<8x1xf32>
    %98 = vector.broadcast %97 : vector<8x1xf32> to vector<8x16xf32>
    %99 = arith.subf %95, %98 : vector<8x16xf32>
    %100 = math.exp %99 : vector<8x16xf32>
    %cst_44 = arith.constant dense<0.000000e+00> : vector<8xf32>
    %101 = vector.multi_reduction <add>, %100, %cst_44 [1] : vector<8x16xf32> to vector<8xf32>
    %102 = vector.shape_cast %101 : vector<8xf32> to vector<8x1xf32>
    %103 = vector.broadcast %102 : vector<8x1xf32> to vector<8x16xf32>
    %104 = arith.divf %100, %103 : vector<8x16xf32>
    %cst_45 = arith.constant dense<0.000000e+00> : vector<8x32xf32>
    %105 = tpu.matmul %104, %92, %cst_45 {dimension_numbers = #tpu.dot_dimension_numbers<[1], [0], [0], [1], [0, 0, 1, 1], [], []>} : vector<8x16xf32>, vector<16x32xf32>, vector<8x32xf32> -> vector<8x32xf32>
    %106 = vector.extract_strided_slice %82 {offsets = [8, 0], sizes = [8, 32], strides = [1, 1]} : vector<16x32xf32> to vector<8x32xf32>
    %107 = vector.extract_strided_slice %88 {offsets = [16, 0], sizes = [16, 32], strides = [1, 1]} : vector<32x32xf32> to vector<16x32xf32>
    %108 = vector.extract_strided_slice %89 {offsets = [16, 0], sizes = [16, 32], strides = [1, 1]} : vector<32x32xf32> to vector<16x32xf32>
    %cst_46 = arith.constant dense<0.000000e+00> : vector<8x16xf32>
    %109 = tpu.matmul %106, %107, %cst_46 {dimension_numbers = #tpu.dot_dimension_numbers<[1], [1], [0], [0], [0, 0, 1, 0], [], []>} : vector<8x32xf32>, vector<16x32xf32>, vector<8x16xf32> -> vector<8x16xf32>
    %cst_47 = arith.constant 0.176776692 : f32
    %110 = vector.broadcast %cst_47 : f32 to vector<8x16xf32>
    %111 = arith.mulf %109, %110 : vector<8x16xf32>
    %cst_48 = arith.constant dense<0xFF800000> : vector<8xf32>
    %112 = vector.multi_reduction <maximumf>, %111, %cst_48 [1] : vector<8x16xf32> to vector<8xf32>
    %113 = vector.shape_cast %112 : vector<8xf32> to vector<8x1xf32>
    %114 = vector.broadcast %113 : vector<8x1xf32> to vector<8x16xf32>
    %115 = arith.subf %111, %114 : vector<8x16xf32>
    %116 = math.exp %115 : vector<8x16xf32>
    %cst_49 = arith.constant dense<0.000000e+00> : vector<8xf32>
    %117 = vector.multi_reduction <add>, %116, %cst_49 [1] : vector<8x16xf32> to vector<8xf32>
    %118 = vector.shape_cast %117 : vector<8xf32> to vector<8x1xf32>
    %119 = vector.broadcast %118 : vector<8x1xf32> to vector<8x16xf32>
    %120 = arith.divf %116, %119 : vector<8x16xf32>
    %cst_50 = arith.constant dense<0.000000e+00> : vector<8x32xf32>
    %121 = tpu.matmul %120, %108, %cst_50 {dimension_numbers = #tpu.dot_dimension_numbers<[1], [0], [0], [1], [0, 0, 1, 1], [], []>} : vector<8x16xf32>, vector<16x32xf32>, vector<8x32xf32> -> vector<8x32xf32>
    %122 = tpu.concatenate %105, %121 in 0 : vector<8x32xf32>, vector<8x32xf32> -> vector<16x32xf32>
    %c0_51 = arith.constant 0 : index
    %c0_52 = arith.constant 0 : index
    %123 = vector.load %arg12[%c0_51, %c0_52] : memref<32x32xf32, #tpu.memory_space<vmem>>, vector<32x32xf32>
    %cst_53 = arith.constant dense<0.000000e+00> : vector<16x32xf32>
    %124 = tpu.matmul %122, %123, %cst_53 {dimension_numbers = #tpu.dot_dimension_numbers<[1], [0], [0], [1], [0, 0, 1, 1], [], []>} : vector<16x32xf32>, vector<32x32xf32>, vector<16x32xf32> -> vector<16x32xf32>
    %c0_54 = arith.constant 0 : index
    %c0_55 = arith.constant 0 : index
    %125 = vector.load %arg13[%c0_54, %c0_55] : memref<1x32xf32, #tpu.memory_space<vmem>>, vector<1x32xf32>
    %126 = vector.broadcast %125 : vector<1x32xf32> to vector<16x32xf32>
    %127 = arith.addf %124, %126 : vector<16x32xf32>
    %128 = arith.addf %77, %127 : vector<16x32xf32>
    %c0_56 = arith.constant 0 : index
    %c0_57 = arith.constant 0 : index
    %129 = vector.load %arg19[%c0_56, %c0_57] : memref<2x32xf32, #tpu.memory_space<vmem>>, vector<2x32xf32>
    %130 = vector.extract_strided_slice %129 {offsets = [0, 0], sizes = [1, 32], strides = [1, 1]} : vector<2x32xf32> to vector<1x32xf32>
    %131 = vector.extract_strided_slice %129 {offsets = [1, 0], sizes = [1, 32], strides = [1, 1]} : vector<2x32xf32> to vector<1x32xf32>
    %cst_58 = arith.constant dense<0.000000e+00> : vector<16xf32>
    %132 = vector.multi_reduction <add>, %128, %cst_58 [1] : vector<16x32xf32> to vector<16xf32>
    %133 = vector.shape_cast %132 : vector<16xf32> to vector<16x1xf32>
    %cst_59 = arith.constant 3.200000e+01 : f32
    %134 = vector.broadcast %cst_59 : f32 to vector<16x1xf32>
    %135 = arith.divf %133, %134 : vector<16x1xf32>
    %136 = vector.broadcast %135 : vector<16x1xf32> to vector<16x32xf32>
    %137 = arith.subf %128, %136 : vector<16x32xf32>
    %138 = arith.mulf %137, %137 : vector<16x32xf32>
    %cst_60 = arith.constant dense<0.000000e+00> : vector<16xf32>
    %139 = vector.multi_reduction <add>, %138, %cst_60 [1] : vector<16x32xf32> to vector<16xf32>
    %140 = vector.shape_cast %139 : vector<16xf32> to vector<16x1xf32>
    %cst_61 = arith.constant 3.200000e+01 : f32
    %141 = vector.broadcast %cst_61 : f32 to vector<16x1xf32>
    %142 = arith.divf %140, %141 : vector<16x1xf32>
    %cst_62 = arith.constant 9.99999974E-6 : f32
    %143 = vector.broadcast %cst_62 : f32 to vector<16x1xf32>
    %144 = arith.addf %142, %143 : vector<16x1xf32>
    %145 = math.rsqrt %144 : vector<16x1xf32>
    %146 = vector.broadcast %145 : vector<16x1xf32> to vector<16x32xf32>
    %147 = arith.mulf %137, %146 : vector<16x32xf32>
    %148 = vector.broadcast %130 : vector<1x32xf32> to vector<16x32xf32>
    %149 = arith.mulf %147, %148 : vector<16x32xf32>
    %150 = vector.broadcast %131 : vector<1x32xf32> to vector<16x32xf32>
    %151 = arith.addf %149, %150 : vector<16x32xf32>
    %c0_63 = arith.constant 0 : index
    %c0_64 = arith.constant 0 : index
    %152 = vector.load %arg14[%c0_63, %c0_64] : memref<32x256xf32, #tpu.memory_space<vmem>>, vector<32x256xf32>
    %cst_65 = arith.constant dense<0.000000e+00> : vector<16x256xf32>
    %153 = tpu.matmul %151, %152, %cst_65 {dimension_numbers = #tpu.dot_dimension_numbers<[1], [0], [0], [1], [0, 0, 1, 1], [], []>} : vector<16x32xf32>, vector<32x256xf32>, vector<16x256xf32> -> vector<16x256xf32>
    %c0_66 = arith.constant 0 : index
    %c0_67 = arith.constant 0 : index
    %154 = vector.load %arg15[%c0_66, %c0_67] : memref<1x256xf32, #tpu.memory_space<vmem>>, vector<1x256xf32>
    %155 = vector.broadcast %154 : vector<1x256xf32> to vector<16x256xf32>
    %156 = arith.addf %153, %155 : vector<16x256xf32>
    %cst_68 = arith.constant 0.000000e+00 : f32
    %157 = vector.broadcast %cst_68 : f32 to vector<16x256xf32>
    %158 = arith.maximumf %156, %157 : vector<16x256xf32>
    %c0_69 = arith.constant 0 : index
    %c0_70 = arith.constant 0 : index
    %159 = vector.load %arg16[%c0_69, %c0_70] : memref<256x32xf32, #tpu.memory_space<vmem>>, vector<256x32xf32>
    %cst_71 = arith.constant dense<0.000000e+00> : vector<16x32xf32>
    %160 = tpu.matmul %158, %159, %cst_71 {dimension_numbers = #tpu.dot_dimension_numbers<[1], [0], [0], [1], [0, 0, 1, 1], [], []>} : vector<16x256xf32>, vector<256x32xf32>, vector<16x32xf32> -> vector<16x32xf32>
    %c0_72 = arith.constant 0 : index
    %c0_73 = arith.constant 0 : index
    %161 = vector.load %arg17[%c0_72, %c0_73] : memref<1x32xf32, #tpu.memory_space<vmem>>, vector<1x32xf32>
    %162 = vector.broadcast %161 : vector<1x32xf32> to vector<16x32xf32>
    %163 = arith.addf %160, %162 : vector<16x32xf32>
    %164 = arith.addf %151, %163 : vector<16x32xf32>
    %c0_74 = arith.constant 0 : index
    %c0_75 = arith.constant 0 : index
    %165 = vector.load %arg20[%c0_74, %c0_75] : memref<2x32xf32, #tpu.memory_space<vmem>>, vector<2x32xf32>
    %166 = vector.extract_strided_slice %165 {offsets = [0, 0], sizes = [1, 32], strides = [1, 1]} : vector<2x32xf32> to vector<1x32xf32>
    %167 = vector.extract_strided_slice %165 {offsets = [1, 0], sizes = [1, 32], strides = [1, 1]} : vector<2x32xf32> to vector<1x32xf32>
    %cst_76 = arith.constant dense<0.000000e+00> : vector<16xf32>
    %168 = vector.multi_reduction <add>, %164, %cst_76 [1] : vector<16x32xf32> to vector<16xf32>
    %169 = vector.shape_cast %168 : vector<16xf32> to vector<16x1xf32>
    %cst_77 = arith.constant 3.200000e+01 : f32
    %170 = vector.broadcast %cst_77 : f32 to vector<16x1xf32>
    %171 = arith.divf %169, %170 : vector<16x1xf32>
    %172 = vector.broadcast %171 : vector<16x1xf32> to vector<16x32xf32>
    %173 = arith.subf %164, %172 : vector<16x32xf32>
    %174 = arith.mulf %173, %173 : vector<16x32xf32>
    %cst_78 = arith.constant dense<0.000000e+00> : vector<16xf32>
    %175 = vector.multi_reduction <add>, %174, %cst_78 [1] : vector<16x32xf32> to vector<16xf32>
    %176 = vector.shape_cast %175 : vector<16xf32> to vector<16x1xf32>
    %cst_79 = arith.constant 3.200000e+01 : f32
    %177 = vector.broadcast %cst_79 : f32 to vector<16x1xf32>
    %178 = arith.divf %176, %177 : vector<16x1xf32>
    %cst_80 = arith.constant 9.99999974E-6 : f32
    %179 = vector.broadcast %cst_80 : f32 to vector<16x1xf32>
    %180 = arith.addf %178, %179 : vector<16x1xf32>
    %181 = math.rsqrt %180 : vector<16x1xf32>
    %182 = vector.broadcast %181 : vector<16x1xf32> to vector<16x32xf32>
    %183 = arith.mulf %173, %182 : vector<16x32xf32>
    %184 = vector.broadcast %166 : vector<1x32xf32> to vector<16x32xf32>
    %185 = arith.mulf %183, %184 : vector<16x32xf32>
    %186 = vector.broadcast %167 : vector<1x32xf32> to vector<16x32xf32>
    %187 = arith.addf %185, %186 : vector<16x32xf32>
    %c0_81 = arith.constant 0 : index
    %c0_82 = arith.constant 0 : index
    %188 = vector.load %arg21[%c0_81, %c0_82] : memref<2x32xf32, #tpu.memory_space<vmem>>, vector<2x32xf32>
    %189 = vector.extract_strided_slice %188 {offsets = [0, 0], sizes = [1, 32], strides = [1, 1]} : vector<2x32xf32> to vector<1x32xf32>
    %190 = vector.extract_strided_slice %188 {offsets = [1, 0], sizes = [1, 32], strides = [1, 1]} : vector<2x32xf32> to vector<1x32xf32>
    %cst_83 = arith.constant dense<0.000000e+00> : vector<16xf32>
    %191 = vector.multi_reduction <add>, %187, %cst_83 [1] : vector<16x32xf32> to vector<16xf32>
    %192 = vector.shape_cast %191 : vector<16xf32> to vector<16x1xf32>
    %cst_84 = arith.constant 3.200000e+01 : f32
    %193 = vector.broadcast %cst_84 : f32 to vector<16x1xf32>
    %194 = arith.divf %192, %193 : vector<16x1xf32>
    %195 = vector.broadcast %194 : vector<16x1xf32> to vector<16x32xf32>
    %196 = arith.subf %187, %195 : vector<16x32xf32>
    %197 = arith.mulf %196, %196 : vector<16x32xf32>
    %cst_85 = arith.constant dense<0.000000e+00> : vector<16xf32>
    %198 = vector.multi_reduction <add>, %197, %cst_85 [1] : vector<16x32xf32> to vector<16xf32>
    %199 = vector.shape_cast %198 : vector<16xf32> to vector<16x1xf32>
    %cst_86 = arith.constant 3.200000e+01 : f32
    %200 = vector.broadcast %cst_86 : f32 to vector<16x1xf32>
    %201 = arith.divf %199, %200 : vector<16x1xf32>
    %cst_87 = arith.constant 9.99999974E-6 : f32
    %202 = vector.broadcast %cst_87 : f32 to vector<16x1xf32>
    %203 = arith.addf %201, %202 : vector<16x1xf32>
    %204 = math.rsqrt %203 : vector<16x1xf32>
    %205 = vector.broadcast %204 : vector<16x1xf32> to vector<16x32xf32>
    %206 = arith.mulf %196, %205 : vector<16x32xf32>
    %207 = vector.broadcast %189 : vector<1x32xf32> to vector<16x32xf32>
    %208 = arith.mulf %206, %207 : vector<16x32xf32>
    %209 = vector.broadcast %190 : vector<1x32xf32> to vector<16x32xf32>
    %210 = arith.addf %208, %209 : vector<16x32xf32>
    %c0_88 = arith.constant 0 : index
    %c0_89 = arith.constant 0 : index
    %211 = vector.load %arg22[%c0_88, %c0_89] : memref<32x16xf32, #tpu.memory_space<vmem>>, vector<32x16xf32>
    %cst_90 = arith.constant dense<0.000000e+00> : vector<16x16xf32>
    %212 = tpu.matmul %210, %211, %cst_90 {dimension_numbers = #tpu.dot_dimension_numbers<[1], [0], [0], [1], [0, 0, 1, 1], [], []>} : vector<16x32xf32>, vector<32x16xf32>, vector<16x16xf32> -> vector<16x16xf32>
    %c0_91 = arith.constant 0 : index
    %c0_92 = arith.constant 0 : index
    %213 = vector.load %arg23[%c0_91, %c0_92] : memref<1x16xf32, #tpu.memory_space<vmem>>, vector<1x16xf32>
    %214 = vector.broadcast %213 : vector<1x16xf32> to vector<16x16xf32>
    %215 = arith.addf %212, %214 : vector<16x16xf32>
    %c0_93 = arith.constant 0 : index
    %c0_94 = arith.constant 0 : index
    %216 = vector.load %arg24[%c0_93, %c0_94] : memref<16x16xf32, #tpu.memory_space<vmem>>, vector<16x16xf32>
    tpu.vector_store %arg24[%c0_93, %c0_94], %215 {strides = array<i32>} : memref<16x16xf32, #tpu.memory_space<vmem>>, vector<16x16xf32>,
    return
  }
  func.func @transform_0(%arg0: i32) -> (i32, i32) {
    %c0_i32 = arith.constant 0 : i32
    %c0_i32_0 = arith.constant 0 : i32
    %c0_i32_1 = arith.constant 0 : i32
    return %c0_i32, %c0_i32_0 : i32, i32
  }
  func.func @transform_1(%arg0: i32) -> (i32, i32) {
    %c0_i32 = arith.constant 0 : i32
    %c0_i32_0 = arith.constant 0 : i32
    %c0_i32_1 = arith.constant 0 : i32
    return %c0_i32, %c0_i32_0 : i32, i32
  }
  func.func @transform_2(%arg0: i32) -> (i32, i32) {
    %c0_i32 = arith.constant 0 : i32
    %c0_i32_0 = arith.constant 0 : i32
    %c0_i32_1 = arith.constant 0 : i32
    return %c0_i32, %c0_i32_0 : i32, i32
  }
  func.func @transform_3(%arg0: i32) -> (i32, i32) {
    %c0_i32 = arith.constant 0 : i32
    %c0_i32_0 = arith.constant 0 : i32
    %c0_i32_1 = arith.constant 0 : i32
    return %c0_i32, %c0_i32_0 : i32, i32
  }
  func.func @transform_4(%arg0: i32) -> (i32, i32) {
    %c0_i32 = arith.constant 0 : i32
    %c0_i32_0 = arith.constant 0 : i32
    %c0_i32_1 = arith.constant 0 : i32
    return %c0_i32, %c0_i32_0 : i32, i32
  }
  func.func @transform_5(%arg0: i32) -> (i32, i32) {
    %c0_i32 = arith.constant 0 : i32
    %c0_i32_0 = arith.constant 0 : i32
    %c0_i32_1 = arith.constant 0 : i32
    return %c0_i32, %c0_i32_0 : i32, i32
  }
  func.func @transform_6(%arg0: i32) -> (i32, i32) {
    %c0_i32 = arith.constant 0 : i32
    %c0_i32_0 = arith.constant 0 : i32
    %c0_i32_1 = arith.constant 0 : i32
    return %c0_i32, %c0_i32_0 : i32, i32
  }
  func.func @transform_7(%arg0: i32) -> (i32, i32) {
    %c0_i32 = arith.constant 0 : i32
    %c0_i32_0 = arith.constant 0 : i32
    %c0_i32_1 = arith.constant 0 : i32
    return %c0_i32, %c0_i32_0 : i32, i32
  }
  func.func @transform_8(%arg0: i32) -> (i32, i32) {
    %c0_i32 = arith.constant 0 : i32
    %c0_i32_0 = arith.constant 0 : i32
    %c0_i32_1 = arith.constant 0 : i32
    return %c0_i32, %c0_i32_0 : i32, i32
  }
  func.func @transform_9(%arg0: i32) -> (i32, i32) {
    %c0_i32 = arith.constant 0 : i32
    %c0_i32_0 = arith.constant 0 : i32
    %c0_i32_1 = arith.constant 0 : i32
    return %c0_i32, %c0_i32_0 : i32, i32
  }
  func.func @transform_10(%arg0: i32) -> (i32, i32) {
    %c0_i32 = arith.constant 0 : i32
    %c0_i32_0 = arith.constant 0 : i32
    %c0_i32_1 = arith.constant 0 : i32
    return %c0_i32, %c0_i32_0 : i32, i32
  }
  func.func @transform_11(%arg0: i32) -> (i32, i32) {
    %c0_i32 = arith.constant 0 : i32
    %c0_i32_0 = arith.constant 0 : i32
    %c0_i32_1 = arith.constant 0 : i32
    return %c0_i32, %c0_i32_0 : i32, i32
  }
  func.func @transform_12(%arg0: i32) -> (i32, i32) {
    %c0_i32 = arith.constant 0 : i32
    %c0_i32_0 = arith.constant 0 : i32
    %c0_i32_1 = arith.constant 0 : i32
    return %c0_i32, %c0_i32_0 : i32, i32
  }
  func.func @transform_13(%arg0: i32) -> (i32, i32) {
    %c0_i32 = arith.constant 0 : i32
    %c0_i32_0 = arith.constant 0 : i32
    %c0_i32_1 = arith.constant 0 : i32
    return %c0_i32, %c0_i32_0 : i32, i32
  }
  func.func @transform_14(%arg0: i32) -> (i32, i32) {
    %c0_i32 = arith.constant 0 : i32
    %c0_i32_0 = arith.constant 0 : i32
    %c0_i32_1 = arith.constant 0 : i32
    return %c0_i32, %c0_i32_0 : i32, i32
  }
  func.func @transform_15(%arg0: i32) -> (i32, i32) {
    %c0_i32 = arith.constant 0 : i32
    %c0_i32_0 = arith.constant 0 : i32
    %c0_i32_1 = arith.constant 0 : i32
    return %c0_i32, %c0_i32_0 : i32, i32
  }
  func.func @transform_16(%arg0: i32) -> (i32, i32) {
    %c0_i32 = arith.constant 0 : i32
    %c0_i32_0 = arith.constant 0 : i32
    %c0_i32_1 = arith.constant 0 : i32
    return %c0_i32, %c0_i32_0 : i32, i32
  }
  func.func @transform_17(%arg0: i32) -> (i32, i32) {
    %c0_i32 = arith.constant 0 : i32
    %c0_i32_0 = arith.constant 0 : i32
    %c0_i32_1 = arith.constant 0 : i32
    return %c0_i32, %c0_i32_0 : i32, i32
  }
  func.func @transform_18(%arg0: i32) -> (i32, i32) {
    %c0_i32 = arith.constant 0 : i32
    %c0_i32_0 = arith.constant 0 : i32
    %c0_i32_1 = arith.constant 0 : i32
    return %c0_i32, %c0_i32_0 : i32, i32
  }
  func.func @transform_19(%arg0: i32) -> (i32, i32) {
    %c0_i32 = arith.constant 0 : i32
    %c0_i32_0 = arith.constant 0 : i32
    %c0_i32_1 = arith.constant 0 : i32
    return %c0_i32, %c0_i32_0 : i32, i32
  }
  func.func @transform_20(%arg0: i32) -> (i32, i32) {
    %c0_i32 = arith.constant 0 : i32
    %c0_i32_0 = arith.constant 0 : i32
    %c0_i32_1 = arith.constant 0 : i32
    return %c0_i32, %c0_i32_0 : i32, i32
  }
  func.func @transform_21(%arg0: i32) -> (i32, i32) {
    %c0_i32 = arith.constant 0 : i32
    %c0_i32_0 = arith.constant 0 : i32
    %c0_i32_1 = arith.constant 0 : i32
    return %c0_i32, %c0_i32_0 : i32, i32
  }
  func.func @transform_22(%arg0: i32) -> (i32, i32) {
    %c0_i32 = arith.constant 0 : i32
    %c0_i32_0 = arith.constant 0 : i32
    %c0_i32_1 = arith.constant 0 : i32
    return %c0_i32, %c0_i32_0 : i32, i32
  }
  func.func @transform_23(%arg0: i32) -> (i32, i32) {
    %c0_i32 = arith.constant 0 : i32
    %c0_i32_0 = arith.constant 0 : i32
    %c0_i32_1 = arith.constant 0 : i32
    return %c0_i32, %c0_i32_0 : i32, i32
  }
}

</mosaic_0001>

<llo_original>
// kernel: model_forward.3
$region0: #{model_forward.3}
  #allocation0 [shape = 'u32[]', space=smem, size = 0x4, offset = 0x4, fixed_abs, tag = 'smem constant byte address 0x4 - core index']
  #allocation1 [shape = 'u32[144,128]{1,0:T(1,128)}', space=vmem, size = 0x12000, scoped, tag = 'internal scratch']
  %s0 = inlined_call_operand.vmem [shape: f32[16,32], index: 0, kind: input, shape index: {}]
  %s1 = inlined_call_operand.vmem [shape: f32[3,32,96], index: 1, kind: input, shape index: {}]
  %s2 = inlined_call_operand.vmem [shape: f32[3,1,96], index: 2, kind: input, shape index: {}]
  %s3 = inlined_call_operand.vmem [shape: f32[3,32,32], index: 3, kind: input, shape index: {}]
  %s4 = inlined_call_operand.vmem [shape: f32[3,1,32], index: 4, kind: input, shape index: {}]
  %s5 = inlined_call_operand.vmem [shape: f32[3,2,32], index: 5, kind: input, shape index: {}]
  %s6 = inlined_call_operand.vmem [shape: f32[3,2,32], index: 6, kind: input, shape index: {}]
  %s7 = inlined_call_operand.vmem [shape: f32[3,32,256], index: 7, kind: input, shape index: {}]
  %s8 = inlined_call_operand.vmem [shape: f32[3,1,256], index: 8, kind: input, shape index: {}]
  %s9 = inlined_call_operand.vmem [shape: f32[3,256,32], index: 9, kind: input, shape index: {}]
  %s10 = inlined_call_operand.vmem [shape: f32[3,1,32], index: 10, kind: input, shape index: {}]
  %s11 = inlined_call_operand.vmem [shape: f32[2,32], index: 11, kind: input, shape index: {}]
  %s12 = inlined_call_operand.vmem [shape: f32[16,32], index: 12, kind: output, shape index: {}]
  %s13 = sld [smem:[#allocation0]]
  $region93: #{model_forward.3} parent=0
    _
  %s15 = ssub.s32 1, %s13
  %s16 = scalar_select 0, %s15, %s13
  loop: start=0, step=1, limit=5
  $region2: #{model_forward.3} parent=0 // loop_pre_header
    _
  $region3: #{model_forward.3} parent=0 // loop_header
    %s18 = sphi 0, %s22
    %p19 = scmp.ge.s32.totalorder %s18, 5
    %s26 = sphi 0, %s26
    %s28 = sphi 0, %s26
    %s29 = sphi 0, %s28
    %s43 = sphi 0, %s29
    %s49 = sphi 0, %s51
    %s52 = sphi 0, %s49
    %s53 = sphi 0, %s52
    %s69 = sphi 0, %s53
    %s75 = sphi 0, %s77
    %s78 = sphi 0, %s75
    %s79 = sphi 0, %s78
    %s95 = sphi 0, %s79
    %s101 = sphi 0, %s103
    %s104 = sphi 0, %s101
    %s105 = sphi 0, %s104
    %s121 = sphi 0, %s105
    %s127 = sphi 0, %s129
    %s130 = sphi 0, %s127
    %s131 = sphi 0, %s130
    %s147 = sphi 0, %s131
    %s153 = sphi 0, %s155
    %s156 = sphi 0, %s153
    %s157 = sphi 0, %s156
    %s173 = sphi 0, %s157
    %s179 = sphi 0, %s181
    %s182 = sphi 0, %s179
    %s183 = sphi 0, %s182
    %s199 = sphi 0, %s183
    %s205 = sphi 0, %s207
    %s208 = sphi 0, %s205
    %s209 = sphi 0, %s208
    %s225 = sphi 0, %s209
    %s231 = sphi 0, %s233
    %s234 = sphi 0, %s231
    %s235 = sphi 0, %s234
    %s251 = sphi 0, %s235
    %s257 = sphi 0, %s259
    %s260 = sphi 0, %s257
    %s261 = sphi 0, %s260
    %s277 = sphi 0, %s261
    %s283 = sphi 0, %s285
    %s286 = sphi 0, %s283
    %s287 = sphi 0, %s286
    %s303 = sphi 0, %s287
    %s307 = sphi 0, %s307
    %s309 = sphi 0, %s307
    %s310 = sphi 0, %s309
    %s324 = sphi 0, %s310
    %s328 = sphi 0, %s328
    %s330 = sphi 0, %s328
    %s331 = sphi 0, %s330
    %s345 = sphi 0, %s331
  $region4: #{model_forward.3} parent=0 // loop_header_branch
    %21 = sbr.rel (%p19) target = $region8
  $region5: #{model_forward.3} parent=0 // loop_body
    %s23 = ssub.s32 %s18, 1
    %s24 = ssub.s32 %s18, 2
    %s25 = sadd.s32 %s18, 1
    %s27 = sadd.s32 %s26, 1
    %p30 = scmp.eq.s32.totalorder %s18, 2
    %p31 = scmp.ne.s32.totalorder %s26, %s28
    %p32 = scmp.eq.s32.totalorder %s18, 0
    %p33 = por %p31, %p32
    %p34 = scmp.ne.s32.totalorder %s26, %s28
    %p35 = scmp.eq.s32.totalorder %s23, 2
    %p36 = por %p34, %p35
    %p37 = scmp.ne.s32.totalorder %s28, %s29
    %p38 = scmp.eq.s32.totalorder %s23, 0
    %p39 = por %p37, %p38
    %p40 = scmp.ne.s32.totalorder %s28, %s29
    %p41 = scmp.eq.s32.totalorder %s24, 2
    %p42 = por %p40, %p41
    %p44 = scmp.ne.s32.totalorder %s29, %s43
    %p45 = scmp.eq.s32.totalorder %s24, 0
    %p46 = por %p44, %p45
    %s47 = ssub.s32 %s18, %s25
    %p48 = scmp.eq.s32.totalorder %s47, 0
    %s50 = sadd.s32 %s49, 1
    %s51 = scalar_select %p48, %s49, %s50
    %p54 = pneg %p48
    %p55 = scmp.eq.s32.totalorder %s18, 2
    %p56 = por %p54, %p55
    %p57 = scmp.ne.s32.totalorder %s49, %s52
    %p58 = scmp.eq.s32.totalorder %s18, 0
    %p59 = por %p57, %p58
    %p60 = scmp.ne.s32.totalorder %s49, %s52
    %p61 = scmp.eq.s32.totalorder %s23, 2
    %p62 = por %p60, %p61
    %p63 = scmp.ne.s32.totalorder %s52, %s53
    %p64 = scmp.eq.s32.totalorder %s23, 0
    %p65 = por %p63, %p64
    %p66 = scmp.ne.s32.totalorder %s52, %s53
    %p67 = scmp.eq.s32.totalorder %s24, 2
    %p68 = por %p66, %p67
    %p70 = scmp.ne.s32.totalorder %s53, %s69
    %p71 = scmp.eq.s32.totalorder %s24, 0
    %p72 = por %p70, %p71
    %s73 = ssub.s32 %s18, %s25
    %p74 = scmp.eq.s32.totalorder %s73, 0
    %s76 = sadd.s32 %s75, 1
    %s77 = scalar_select %p74, %s75, %s76
    %p80 = pneg %p74
    %p81 = scmp.eq.s32.totalorder %s18, 2
    %p82 = por %p80, %p81
    %p83 = scmp.ne.s32.totalorder %s75, %s78
    %p84 = scmp.eq.s32.totalorder %s18, 0
    %p85 = por %p83, %p84
    %p86 = scmp.ne.s32.totalorder %s75, %s78
    %p87 = scmp.eq.s32.totalorder %s23, 2
    %p88 = por %p86, %p87
    %p89 = scmp.ne.s32.totalorder %s78, %s79
    %p90 = scmp.eq.s32.totalorder %s23, 0
    %p91 = por %p89, %p90
    %p92 = scmp.ne.s32.totalorder %s78, %s79
    %p93 = scmp.eq.s32.totalorder %s24, 2
    %p94 = por %p92, %p93
    %p96 = scmp.ne.s32.totalorder %s79, %s95
    %p97 = scmp.eq.s32.totalorder %s24, 0
    %p98 = por %p96, %p97
    %s99 = ssub.s32 %s18, %s25
    %p100 = scmp.eq.s32.totalorder %s99, 0
    %s102 = sadd.s32 %s101, 1
    %s103 = scalar_select %p100, %s101, %s102
    %p106 = pneg %p100
    %p107 = scmp.eq.s32.totalorder %s18, 2
    %p108 = por %p106, %p107
    %p109 = scmp.ne.s32.totalorder %s101, %s104
    %p110 = scmp.eq.s32.totalorder %s18, 0
    %p111 = por %p109, %p110
    %p112 = scmp.ne.s32.totalorder %s101, %s104
    %p113 = scmp.eq.s32.totalorder %s23, 2
    %p114 = por %p112, %p113
    %p115 = scmp.ne.s32.totalorder %s104, %s105
    %p116 = scmp.eq.s32.totalorder %s23, 0
    %p117 = por %p115, %p116
    %p118 = scmp.ne.s32.totalorder %s104, %s105
    %p119 = scmp.eq.s32.totalorder %s24, 2
    %p120 = por %p118, %p119
    %p122 = scmp.ne.s32.totalorder %s105, %s121
    %p123 = scmp.eq.s32.totalorder %s24, 0
    %p124 = por %p122, %p123
    %s125 = ssub.s32 %s18, %s25
    %p126 = scmp.eq.s32.totalorder %s125, 0
    %s128 = sadd.s32 %s127, 1
    %s129 = scalar_select %p126, %s127, %s128
    %p132 = pneg %p126
    %p133 = scmp.eq.s32.totalorder %s18, 2
    %p134 = por %p132, %p133
    %p135 = scmp.ne.s32.totalorder %s127, %s130
    %p136 = scmp.eq.s32.totalorder %s18, 0
    %p137 = por %p135, %p136
    %p138 = scmp.ne.s32.totalorder %s127, %s130
    %p139 = scmp.eq.s32.totalorder %s23, 2
    %p140 = por %p138, %p139
    %p141 = scmp.ne.s32.totalorder %s130, %s131
    %p142 = scmp.eq.s32.totalorder %s23, 0
    %p143 = por %p141, %p142
    %p144 = scmp.ne.s32.totalorder %s130, %s131
    %p145 = scmp.eq.s32.totalorder %s24, 2
    %p146 = por %p144, %p145
    %p148 = scmp.ne.s32.totalorder %s131, %s147
    %p149 = scmp.eq.s32.totalorder %s24, 0
    %p150 = por %p148, %p149
    %s151 = ssub.s32 %s18, %s25
    %p152 = scmp.eq.s32.totalorder %s151, 0
    %s154 = sadd.s32 %s153, 1
    %s155 = scalar_select %p152, %s153, %s154
    %p158 = pneg %p152
    %p159 = scmp.eq.s32.totalorder %s18, 2
    %p160 = por %p158, %p159
    %p161 = scmp.ne.s32.totalorder %s153, %s156
    %p162 = scmp.eq.s32.totalorder %s18, 0
    %p163 = por %p161, %p162
    %p164 = scmp.ne.s32.totalorder %s153, %s156
    %p165 = scmp.eq.s32.totalorder %s23, 2
    %p166 = por %p164, %p165
    %p167 = scmp.ne.s32.totalorder %s156, %s157
    %p168 = scmp.eq.s32.totalorder %s23, 0
    %p169 = por %p167, %p168
    %p170 = scmp.ne.s32.totalorder %s156, %s157
    %p171 = scmp.eq.s32.totalorder %s24, 2
    %p172 = por %p170, %p171
    %p174 = scmp.ne.s32.totalorder %s157, %s173
    %p175 = scmp.eq.s32.totalorder %s24, 0
    %p176 = por %p174, %p175
    %s177 = ssub.s32 %s18, %s25
    %p178 = scmp.eq.s32.totalorder %s177, 0
    %s180 = sadd.s32 %s179, 1
    %s181 = scalar_select %p178, %s179, %s180
    %p184 = pneg %p178
    %p185 = scmp.eq.s32.totalorder %s18, 2
    %p186 = por %p184, %p185
    %p187 = scmp.ne.s32.totalorder %s179, %s182
    %p188 = scmp.eq.s32.totalorder %s18, 0
    %p189 = por %p187, %p188
    %p190 = scmp.ne.s32.totalorder %s179, %s182
    %p191 = scmp.eq.s32.totalorder %s23, 2
    %p192 = por %p190, %p191
    %p193 = scmp.ne.s32.totalorder %s182, %s183
    %p194 = scmp.eq.s32.totalorder %s23, 0
    %p195 = por %p193, %p194
    %p196 = scmp.ne.s32.totalorder %s182, %s183
    %p197 = scmp.eq.s32.totalorder %s24, 2
    %p198 = por %p196, %p197
    %p200 = scmp.ne.s32.totalorder %s183, %s199
    %p201 = scmp.eq.s32.totalorder %s24, 0
    %p202 = por %p200, %p201
    %s203 = ssub.s32 %s18, %s25
    %p204 = scmp.eq.s32.totalorder %s203, 0
    %s206 = sadd.s32 %s205, 1
    %s207 = scalar_select %p204, %s205, %s206
    %p210 = pneg %p204
    %p211 = scmp.eq.s32.totalorder %s18, 2
    %p212 = por %p210, %p211
    %p213 = scmp.ne.s32.totalorder %s205, %s208
    %p214 = scmp.eq.s32.totalorder %s18, 0
    %p215 = por %p213, %p214
    %p216 = scmp.ne.s32.totalorder %s205, %s208
    %p217 = scmp.eq.s32.totalorder %s23, 2
    %p218 = por %p216, %p217
    %p219 = scmp.ne.s32.totalorder %s208, %s209
    %p220 = scmp.eq.s32.totalorder %s23, 0
    %p221 = por %p219, %p220
    %p222 = scmp.ne.s32.totalorder %s208, %s209
    %p223 = scmp.eq.s32.totalorder %s24, 2
    %p224 = por %p222, %p223
    %p226 = scmp.ne.s32.totalorder %s209, %s225
    %p227 = scmp.eq.s32.totalorder %s24, 0
    %p228 = por %p226, %p227
    %s229 = ssub.s32 %s18, %s25
    %p230 = scmp.eq.s32.totalorder %s229, 0
    %s232 = sadd.s32 %s231, 1
    %s233 = scalar_select %p230, %s231, %s232
    %p236 = pneg %p230
    %p237 = scmp.eq.s32.totalorder %s18, 2
    %p238 = por %p236, %p237
    %p239 = scmp.ne.s32.totalorder %s231, %s234
    %p240 = scmp.eq.s32.totalorder %s18, 0
    %p241 = por %p239, %p240
    %p242 = scmp.ne.s32.totalorder %s231, %s234
    %p243 = scmp.eq.s32.totalorder %s23, 2
    %p244 = por %p242, %p243
    %p245 = scmp.ne.s32.totalorder %s234, %s235
    %p246 = scmp.eq.s32.totalorder %s23, 0
    %p247 = por %p245, %p246
    %p248 = scmp.ne.s32.totalorder %s234, %s235
    %p249 = scmp.eq.s32.totalorder %s24, 2
    %p250 = por %p248, %p249
    %p252 = scmp.ne.s32.totalorder %s235, %s251
    %p253 = scmp.eq.s32.totalorder %s24, 0
    %p254 = por %p252, %p253
    %s255 = ssub.s32 %s18, %s25
    %p256 = scmp.eq.s32.totalorder %s255, 0
    %s258 = sadd.s32 %s257, 1
    %s259 = scalar_select %p256, %s257, %s258
    %p262 = pneg %p256
    %p263 = scmp.eq.s32.totalorder %s18, 2
    %p264 = por %p262, %p263
    %p265 = scmp.ne.s32.totalorder %s257, %s260
    %p266 = scmp.eq.s32.totalorder %s18, 0
    %p267 = por %p265, %p266
    %p268 = scmp.ne.s32.totalorder %s257, %s260
    %p269 = scmp.eq.s32.totalorder %s23, 2
    %p270 = por %p268, %p269
    %p271 = scmp.ne.s32.totalorder %s260, %s261
    %p272 = scmp.eq.s32.totalorder %s23, 0
    %p273 = por %p271, %p272
    %p274 = scmp.ne.s32.totalorder %s260, %s261
    %p275 = scmp.eq.s32.totalorder %s24, 2
    %p276 = por %p274, %p275
    %p278 = scmp.ne.s32.totalorder %s261, %s277
    %p279 = scmp.eq.s32.totalorder %s24, 0
    %p280 = por %p278, %p279
    %s281 = ssub.s32 %s18, %s25
    %p282 = scmp.eq.s32.totalorder %s281, 0
    %s284 = sadd.s32 %s283, 1
    %s285 = scalar_select %p282, %s283, %s284
    %p288 = pneg %p282
    %p289 = scmp.eq.s32.totalorder %s18, 2
    %p290 = por %p288, %p289
    %p291 = scmp.ne.s32.totalorder %s283, %s286
    %p292 = scmp.eq.s32.totalorder %s18, 0
    %p293 = por %p291, %p292
    %p294 = scmp.ne.s32.totalorder %s283, %s286
    %p295 = scmp.eq.s32.totalorder %s23, 2
    %p296 = por %p294, %p295
    %p297 = scmp.ne.s32.totalorder %s286, %s287
    %p298 = scmp.eq.s32.totalorder %s23, 0
    %p299 = por %p297, %p298
    %p300 = scmp.ne.s32.totalorder %s286, %s287
    %p301 = scmp.eq.s32.totalorder %s24, 2
    %p302 = por %p300, %p301
    %p304 = scmp.ne.s32.totalorder %s287, %s303
    %p305 = scmp.eq.s32.totalorder %s24, 0
    %p306 = por %p304, %p305
    %s308 = sadd.s32 %s307, 1
    %p311 = scmp.eq.s32.totalorder %s18, 2
    %p312 = scmp.ne.s32.totalorder %s307, %s309
    %p313 = scmp.eq.s32.totalorder %s18, 0
    %p314 = por %p312, %p313
    %p315 = scmp.ne.s32.totalorder %s307, %s309
    %p316 = scmp.eq.s32.totalorder %s23, 2
    %p317 = por %p315, %p316
    %p318 = scmp.ne.s32.totalorder %s309, %s310
    %p319 = scmp.eq.s32.totalorder %s23, 0
    %p320 = por %p318, %p319
    %p321 = scmp.ne.s32.totalorder %s309, %s310
    %p322 = scmp.eq.s32.totalorder %s24, 2
    %p323 = por %p321, %p322
    %p325 = scmp.ne.s32.totalorder %s310, %s324
    %p326 = scmp.eq.s32.totalorder %s24, 0
    %p327 = por %p325, %p326
    %s329 = sadd.s32 %s328, 1
    %p332 = scmp.eq.s32.totalorder %s18, 2
    %p333 = scmp.ne.s32.totalorder %s328, %s330
    %p334 = scmp.eq.s32.totalorder %s18, 0
    %p335 = por %p333, %p334
    %p336 = scmp.ne.s32.totalorder %s328, %s330
    %p337 = scmp.eq.s32.totalorder %s23, 2
    %p338 = por %p336, %p337
    %p339 = scmp.ne.s32.totalorder %s330, %s331
    %p340 = scmp.eq.s32.totalorder %s23, 0
    %p341 = por %p339, %p340
    %p342 = scmp.ne.s32.totalorder %s330, %s331
    %p343 = scmp.eq.s32.totalorder %s24, 2
    %p344 = por %p342, %p343
    %p346 = scmp.ne.s32.totalorder %s331, %s345
    %p347 = scmp.eq.s32.totalorder %s24, 0
    %p348 = por %p346, %p347
    %p349 = scmp.le.s32.totalorder 1, %s18
    %p350 = scmp.lt.s32.totalorder %s18, 4
    %p351 = pnand %p349, %p350
    %p352 = pneg %p351
    // Predicated region
    $region9: #{model_forward.3} parent=5 // pred_check
      _
    $region10: #{model_forward.3} parent=5 // pred_check_branch
      %354 = sbr.rel (%p351) target = $region12
    $region11: #{model_forward.3} parent=5 // pred_region
      %s355 = ssub.s32 %s18, 1
      // Predicated region
      $region13: #{model_forward.3} parent=11 // pred_check
        %p356 = pneg %p39
      $region14: #{model_forward.3} parent=11 // pred_check_branch
        %358 = sbr.rel (%p356) target = $region16
      $region15: #{model_forward.3} parent=11 // pred_region
        _
      $region16: #{model_forward.3} parent=11 // pred_fallthru
        _
      // Predicated region
      $region17: #{model_forward.3} parent=11 // pred_check
        %p359 = pneg %p320
      $region18: #{model_forward.3} parent=11 // pred_check_branch
        %361 = sbr.rel (%p359) target = $region20
      $region19: #{model_forward.3} parent=11 // pred_region
        _
      $region20: #{model_forward.3} parent=11 // pred_fallthru
        _
    $region12: #{model_forward.3} parent=5 // pred_fallthru
      _
    %p362 = scmp.lt.s32.totalorder %s18, 3
    // Predicated region
    $region21: #{model_forward.3} parent=5 // pred_check
      %p363 = pneg %p362
    $region22: #{model_forward.3} parent=5 // pred_check_branch
      %365 = sbr.rel (%p363) target = $region24
    $region23: #{model_forward.3} parent=5 // pred_region
      // Predicated region
      $region25: #{model_forward.3} parent=23 // pred_check
        %p366 = pneg %p59
      $region26: #{model_forward.3} parent=23 // pred_check_branch
        %368 = sbr.rel (%p366) target = $region28
      $region27: #{model_forward.3} parent=23 // pred_region
        %p369 = scmp.lt.s32.totalorder %s18, 2
        %s370 = scalar_select %p369, %s18, 2
        %s371 = smul.addr %s370, 4
        %s372 = smul.addr %s371, 8
        %s373 = scalar_lea.vmem %s1, %s372
      $region28: #{model_forward.3} parent=23 // pred_fallthru
        _
      // Predicated region
      $region29: #{model_forward.3} parent=23 // pred_check
        %p374 = pneg %p85
      $region30: #{model_forward.3} parent=23 // pred_check_branch
        %376 = sbr.rel (%p374) target = $region32
      $region31: #{model_forward.3} parent=23 // pred_region
        %p377 = scmp.lt.s32.totalorder %s18, 2
        %s378 = scalar_select %p377, %s18, 2
        %s379 = scalar_lea.vmem %s2, %s378
      $region32: #{model_forward.3} parent=23 // pred_fallthru
        _
      // Predicated region
      $region33: #{model_forward.3} parent=23 // pred_check
        %p380 = pneg %p111
      $region34: #{model_forward.3} parent=23 // pred_check_branch
        %382 = sbr.rel (%p380) target = $region36
      $region35: #{model_forward.3} parent=23 // pred_region
        %p383 = scmp.lt.s32.totalorder %s18, 2
        %s384 = scalar_select %p383, %s18, 2
        %s385 = smul.addr %s384, 4
        %s386 = smul.addr %s385, 8
        %s387 = scalar_lea.vmem %s3, %s386
      $region36: #{model_forward.3} parent=23 // pred_fallthru
        _
      // Predicated region
      $region37: #{model_forward.3} parent=23 // pred_check
        %p388 = pneg %p137
      $region38: #{model_forward.3} parent=23 // pred_check_branch
        %390 = sbr.rel (%p388) target = $region40
      $region39: #{model_forward.3} parent=23 // pred_region
        %p391 = scmp.lt.s32.totalorder %s18, 2
        %s392 = scalar_select %p391, %s18, 2
        %s393 = scalar_lea.vmem %s4, %s392
      $region40: #{model_forward.3} parent=23 // pred_fallthru
        _
      // Predicated region
      $region41: #{model_forward.3} parent=23 // pred_check
        %p394 = pneg %p163
      $region42: #{model_forward.3} parent=23 // pred_check_branch
        %396 = sbr.rel (%p394) target = $region44
      $region43: #{model_forward.3} parent=23 // pred_region
        %p397 = scmp.lt.s32.totalorder %s18, 2
        %s398 = scalar_select %p397, %s18, 2
        %s399 = smul.addr %s398, 2
        %s400 = scalar_lea.vmem %s5, %s399
      $region44: #{model_forward.3} parent=23 // pred_fallthru
        _
      // Predicated region
      $region45: #{model_forward.3} parent=23 // pred_check
        %p401 = pneg %p189
      $region46: #{model_forward.3} parent=23 // pred_check_branch
        %403 = sbr.rel (%p401) target = $region48
      $region47: #{model_forward.3} parent=23 // pred_region
        %p404 = scmp.lt.s32.totalorder %s18, 2
        %s405 = scalar_select %p404, %s18, 2
        %s406 = smul.addr %s405, 2
        %s407 = scalar_lea.vmem %s6, %s406
      $region48: #{model_forward.3} parent=23 // pred_fallthru
        _
      // Predicated region
      $region49: #{model_forward.3} parent=23 // pred_check
        %p408 = pneg %p215
      $region50: #{model_forward.3} parent=23 // pred_check_branch
        %410 = sbr.rel (%p408) target = $region52
      $region51: #{model_forward.3} parent=23 // pred_region
        %p411 = scmp.lt.s32.totalorder %s18, 2
        %s412 = scalar_select %p411, %s18, 2
        %s413 = smul.addr %s412, 8
        %s414 = smul.addr %s413, 8
        %s415 = scalar_lea.vmem %s7, %s414
      $region52: #{model_forward.3} parent=23 // pred_fallthru
        _
      // Predicated region
      $region53: #{model_forward.3} parent=23 // pred_check
        %p416 = pneg %p241
      $region54: #{model_forward.3} parent=23 // pred_check_branch
        %418 = sbr.rel (%p416) target = $region56
      $region55: #{model_forward.3} parent=23 // pred_region
        %p419 = scmp.lt.s32.totalorder %s18, 2
        %s420 = scalar_select %p419, %s18, 2
        %s421 = smul.addr %s420, 2
        %s422 = scalar_lea.vmem %s8, %s421
      $region56: #{model_forward.3} parent=23 // pred_fallthru
        _
      // Predicated region
      $region57: #{model_forward.3} parent=23 // pred_check
        %p423 = pneg %p267
      $region58: #{model_forward.3} parent=23 // pred_check_branch
        %425 = sbr.rel (%p423) target = $region60
      $region59: #{model_forward.3} parent=23 // pred_region
        %p426 = scmp.lt.s32.totalorder %s18, 2
        %s427 = scalar_select %p426, %s18, 2
        %s428 = smul.addr %s427, 32
        %s429 = smul.addr %s428, 8
        %s430 = scalar_lea.vmem %s9, %s429
      $region60: #{model_forward.3} parent=23 // pred_fallthru
        _
      // Predicated region
      $region61: #{model_forward.3} parent=23 // pred_check
        %p431 = pneg %p293
      $region62: #{model_forward.3} parent=23 // pred_check_branch
        %433 = sbr.rel (%p431) target = $region64
      $region63: #{model_forward.3} parent=23 // pred_region
        %p434 = scmp.lt.s32.totalorder %s18, 2
        %s435 = scalar_select %p434, %s18, 2
        %s436 = scalar_lea.vmem %s10, %s435
      $region64: #{model_forward.3} parent=23 // pred_fallthru
        _
    $region24: #{model_forward.3} parent=5 // pred_fallthru
      _
    %p437 = scmp.le.s32.totalorder 1, %s18
    %p438 = scmp.lt.s32.totalorder %s18, 4
    %p439 = pnand %p437, %p438
    %p440 = pneg %p439
    // Predicated region
    $region65: #{model_forward.3} parent=5 // pred_check
      _
    $region66: #{model_forward.3} parent=5 // pred_check_branch
      %442 = sbr.rel (%p439) target = $region68
    $region67: #{model_forward.3} parent=5 // pred_region
      %s443 = ssub.s32 %s18, 1
      %p444 = pneg %p39
      %p445 = pneg %p36
      %p446 = scmp.lt.s32.totalorder %s23, 2
      %s447 = scalar_select %p446, %s23, 2
      %s448 = smul.addr %s447, 4
      %s449 = smul.addr %s448, 8
      %s450 = scalar_lea.vmem %s1, %s449
      %p451 = pneg %p65
      %p452 = pneg %p62
      %p453 = scmp.lt.s32.totalorder %s23, 2
      %s454 = scalar_select %p453, %s23, 2
      %s455 = scalar_lea.vmem %s2, %s454
      %p456 = pneg %p91
      %p457 = pneg %p88
      %p458 = scmp.lt.s32.totalorder %s23, 2
      %s459 = scalar_select %p458, %s23, 2
      %s460 = smul.addr %s459, 4
      %s461 = smul.addr %s460, 8
      %s462 = scalar_lea.vmem %s3, %s461
      %p463 = pneg %p117
      %p464 = pneg %p114
      %p465 = scmp.lt.s32.totalorder %s23, 2
      %s466 = scalar_select %p465, %s23, 2
      %s467 = scalar_lea.vmem %s4, %s466
      %p468 = pneg %p143
      %p469 = pneg %p140
      %p470 = scmp.lt.s32.totalorder %s23, 2
      %s471 = scalar_select %p470, %s23, 2
      %s472 = smul.addr %s471, 2
      %s473 = scalar_lea.vmem %s5, %s472
      %p474 = pneg %p169
      %p475 = pneg %p166
      %p476 = scmp.lt.s32.totalorder %s23, 2
      %s477 = scalar_select %p476, %s23, 2
      %s478 = smul.addr %s477, 2
      %s479 = scalar_lea.vmem %s6, %s478
      %p480 = pneg %p195
      %p481 = pneg %p192
      %p482 = scmp.lt.s32.totalorder %s23, 2
      %s483 = scalar_select %p482, %s23, 2
      %s484 = smul.addr %s483, 8
      %s485 = smul.addr %s484, 8
      %s486 = scalar_lea.vmem %s7, %s485
      %p487 = pneg %p221
      %p488 = pneg %p218
      %p489 = scmp.lt.s32.totalorder %s23, 2
      %s490 = scalar_select %p489, %s23, 2
      %s491 = smul.addr %s490, 2
      %s492 = scalar_lea.vmem %s8, %s491
      %p493 = pneg %p247
      %p494 = pneg %p244
      %p495 = scmp.lt.s32.totalorder %s23, 2
      %s496 = scalar_select %p495, %s23, 2
      %s497 = smul.addr %s496, 32
      %s498 = smul.addr %s497, 8
      %s499 = scalar_lea.vmem %s9, %s498
      %p500 = pneg %p273
      %p501 = pneg %p270
      %p502 = scmp.lt.s32.totalorder %s23, 2
      %s503 = scalar_select %p502, %s23, 2
      %s504 = scalar_lea.vmem %s10, %s503
      %p505 = pneg %p299
      %p506 = pneg %p296
      %p507 = pneg %p320
      %p508 = pneg %p317
      %p509 = pneg %p341
      %p510 = pneg %p338
      %p511 = scmp.lt.s32.totalorder %s23, 2
      %s512 = scalar_select %p511, %s23, 2
      %s513 = smul.addr %s512, 4
      %s514 = smul.addr %s513, 8
      %s515 = scalar_lea.vmem %s1, %s514
      %p516 = scmp.lt.s32.totalorder %s23, 2
      %s517 = scalar_select %p516, %s23, 2
      %s518 = scalar_lea.vmem %s2, %s517
      %p519 = scmp.lt.s32.totalorder %s23, 2
      %s520 = scalar_select %p519, %s23, 2
      %s521 = smul.addr %s520, 4
      %s522 = smul.addr %s521, 8
      %s523 = scalar_lea.vmem %s3, %s522
      %p524 = scmp.lt.s32.totalorder %s23, 2
      %s525 = scalar_select %p524, %s23, 2
      %s526 = scalar_lea.vmem %s4, %s525
      %p527 = scmp.lt.s32.totalorder %s23, 2
      %s528 = scalar_select %p527, %s23, 2
      %s529 = smul.addr %s528, 2
      %s530 = scalar_lea.vmem %s5, %s529
      %p531 = scmp.lt.s32.totalorder %s23, 2
      %s532 = scalar_select %p531, %s23, 2
      %s533 = smul.addr %s532, 2
      %s534 = scalar_lea.vmem %s6, %s533
      %p535 = scmp.lt.s32.totalorder %s23, 2
      %s536 = scalar_select %p535, %s23, 2
      %s537 = smul.addr %s536, 8
      %s538 = smul.addr %s537, 8
      %s539 = scalar_lea.vmem %s7, %s538
      %p540 = scmp.lt.s32.totalorder %s23, 2
      %s541 = scalar_select %p540, %s23, 2
      %s542 = smul.addr %s541, 2
      %s543 = scalar_lea.vmem %s8, %s542
      %p544 = scmp.lt.s32.totalorder %s23, 2
      %s545 = scalar_select %p544, %s23, 2
      %s546 = smul.addr %s545, 32
      %s547 = smul.addr %s546, 8
      %s548 = scalar_lea.vmem %s9, %s547
      %p549 = scmp.lt.s32.totalorder %s23, 2
      %s550 = scalar_select %p549, %s23, 2
      %s551 = scalar_lea.vmem %s10, %s550
      %p552 = scmp.eq.s32.totalorder %s23, 0
      // Predicated region
      $region69: #{model_forward.3} parent=67 // pred_check
        %p553 = pneg %p552
      $region70: #{model_forward.3} parent=67 // pred_check_branch
        %555 = sbr.rel (%p553) target = $region72
      $region71: #{model_forward.3} parent=67 // pred_region
        %v556 = vld [vmem:[%s0] sm:$0xff]
        %v557 = vld [vmem:[%s0 + $0x8] sm:$0xff]
        %vm558 = vcmask 261120
        %559 = vst.msk [vmem:[%s12] sm:$0xff] %vm558, %v556
        %560 = vst.msk [vmem:[%s12 + $0x8] sm:$0xff] %vm558, %v557
      $region72: #{model_forward.3} parent=67 // pred_fallthru
        _
      %v561 = vld [vmem:[%s12] sm:$0xff]
      %v562 = vld [vmem:[%s12 + $0x8] sm:$0xff]
      %v563 = vld [vmem:[%s515] sm:$0xff]
      %v564 = vld [vmem:[%s515 + $0x8] sm:$0xff]
      %v565 = vld [vmem:[%s515 + $0x10] sm:$0xff]
      %v566 = vld [vmem:[%s515 + $0x18] sm:$0xff]
      %v567 = vld [vmem:[%s518] sm:$0x1]
      %v569 = vlaneseq
      %v570 = vshrl.u32 %v569, 7
      %v571 = vsub.s32 0, %v570
      %v572 = vrot.slane %v567, %v571
      %vm574 = vcmask 261120
      %v576 = vsel %vm574, %v561, 0
      %v579 = vsel %vm574, %v562, 0
      %581 = vmatprep.subr.mxu0 0.0
      %582 = vmatpush1.msra.mxu0 %v563
      %583 = vmatprep.subr.mxu0 0.0
      %584 = vmatpush1.msra.mxu0 %v564
      %585 = vmatprep.subr.mxu0 0.0
      %586 = vmatpush1.msra.mxu0 %v565
      %587 = vmatprep.subr.mxu0 0.0
      %588 = vmatpush1.msra.mxu0 %v566
      %589 = vmatprep.subr.mxu0 0.0
      %590 = vmatpush1.msra.mxu0 0.0
      %591 = vmatprep.subr.mxu0 0.0
      %592 = vmatpush1.msra.mxu0 0.0
      %593 = vmatprep.subr.mxu0 0.0
      %594 = vmatpush1.msra.mxu0 0.0
      %595 = vmatprep.subr.mxu0 0.0
      %596 = vmatpush1.msra.mxu0 0.0
      %597 = vmatprep.subr.mxu0 0.0
      %598 = vmatpush1.msra.mxu0 0.0
      %599 = vmatprep.subr.mxu0 0.0
      %600 = vmatpush1.msra.mxu0 0.0
      %601 = vmatprep.subr.mxu0 0.0
      %602 = vmatpush1.msra.mxu0 0.0
      %603 = vmatprep.subr.mxu0 0.0
      %604 = vmatpush1.msra.mxu0 0.0
      %605 = vmatprep.subr.mxu0 0.0
      %606 = vmatpush1.msra.mxu0 0.0
      %607 = vmatprep.subr.mxu0 0.0
      %608 = vmatpush1.msra.mxu0 0.0
      %609 = vmatprep.subr.mxu0 0.0
      %610 = vmatpush1.msra.mxu0 0.0
      %611 = vmatprep.subr.mxu0 0.0
      %612 = vmatpush1.msra.mxu0 0.0
      %613 = vmatprep.subr.mxu0 0.0
      %614 = vmatpush1.msra.mxu0 0.0
      %615 = vmatprep.subr.mxu0 0.0
      %616 = vmatpush1.msra.mxu0 0.0
      %617 = vmatprep.subr.mxu0 0.0
      %618 = vmatpush1.msra.mxu0 0.0
      %619 = vmatprep.subr.mxu0 0.0
      %620 = vmatpush1.msra.mxu0 0.0
      %621 = vmatprep.subr.mxu0 0.0
      %622 = vmatpush1.msra.mxu0 0.0
      %623 = vmatprep.subr.mxu0 0.0
      %624 = vmatpush1.msra.mxu0 0.0
      %625 = vmatprep.subr.mxu0 0.0
      %626 = vmatpush1.msra.mxu0 0.0
      %627 = vmatprep.subr.mxu0 0.0
      %628 = vmatpush1.msra.mxu0 0.0
      %629 = vmatprep.subr.mxu0 0.0
      %630 = vmatpush1.msra.mxu0 0.0
      %631 = vmatprep.subr.mxu0 0.0
      %632 = vmatpush1.msra.mxu0 0.0
      %633 = vmatprep.subr.mxu0 0.0
      %634 = vmatpush1.msra.mxu0 0.0
      %635 = vmatprep.subr.mxu0 0.0
      %636 = vmatpush1.msra.mxu0 0.0
      %637 = vmatprep.subr.mxu0 0.0
      %638 = vmatpush1.msra.mxu0 0.0
      %639 = vmatprep.subr.mxu0 0.0
      %640 = vmatpush1.msra.mxu0 0.0
      %641 = vmatprep.subr.mxu0 0.0
      %642 = vmatpush1.msra.mxu0 0.0
      %643 = vmatprep.subr.mxu0 0.0
      %644 = vmatpush1.msra.mxu0 0.0
      %645 = vmatprep.mubr.f32.mxu0 0.0
      %646 = vmatmul.mubr.f32.gmra.mrb[0].mxu0 %v576
      %v647 = vpop.f32.mrb[0].mxu0
      %v648 = vadd.f32 %v572, %v647
      %v649 = vpop.f32.mrb[0].mxu0
      %650 = vmatprep.mubr.f32.mxu0 0.0
      %651 = vmatmul.mubr.f32.gmra.mrb[0].mxu0 %v579
      %v652 = vpop.f32.mrb[0].mxu0
      %v653 = vadd.f32 %v572, %v652
      %v654 = vpop.f32.mrb[0].mxu0
      %655 = vdwg.mxu0
      %657 = vrot.lane.b32.xlu0 %v648, 96
      %v658 = vpop.permute.xlu0 %657
      %v659 = vsel %vm574, %v648, 0
      %v661 = vsel %vm574, %v658, 0
      %663 = vmatprep.subr.mxu0 0.0
      %664 = vmatpush1.xpose.msra.mxu0 %v661
      %665 = vmatprep.subr.mxu0 0.0
      %666 = vmatpush1.xpose.msra.mxu0 0.0
      %667 = vmatprep.subr.mxu0 0.0
      %668 = vmatpush1.xpose.msra.mxu0 0.0
      %669 = vmatprep.subr.mxu0 0.0
      %670 = vmatpush1.xpose.msra.mxu0 0.0
      %671 = vmatprep.subr.mxu0 0.0
      %672 = vmatpush1.xpose.msra.mxu0 0.0
      %673 = vmatprep.subr.mxu0 0.0
      %674 = vmatpush1.xpose.msra.mxu0 0.0
      %675 = vmatprep.subr.mxu0 0.0
      %676 = vmatpush1.xpose.msra.mxu0 0.0
      %677 = vmatprep.subr.mxu0 0.0
      %678 = vmatpush1.xpose.msra.mxu0 0.0
      %679 = vmatprep.subr.mxu0 0.0
      %680 = vmatpush1.xpose.msra.mxu0 0.0
      %681 = vmatprep.subr.mxu0 0.0
      %682 = vmatpush1.xpose.msra.mxu0 0.0
      %683 = vmatprep.subr.mxu0 0.0
      %684 = vmatpush1.xpose.msra.mxu0 0.0
      %685 = vmatprep.subr.mxu0 0.0
      %686 = vmatpush1.xpose.msra.mxu0 0.0
      %687 = vmatprep.subr.mxu0 0.0
      %688 = vmatpush1.xpose.msra.mxu0 0.0
      %689 = vmatprep.subr.mxu0 0.0
      %690 = vmatpush1.xpose.msra.mxu0 0.0
      %691 = vmatprep.subr.mxu0 0.0
      %692 = vmatpush1.xpose.msra.mxu0 0.0
      %693 = vmatprep.subr.mxu0 0.0
      %694 = vmatpush1.xpose.msra.mxu0 0.0
      %695 = vmatprep.subr.mxu0 0.0
      %696 = vmatpush1.xpose.msra.mxu0 0.0
      %697 = vmatprep.subr.mxu0 0.0
      %698 = vmatpush1.xpose.msra.mxu0 0.0
      %699 = vmatprep.subr.mxu0 0.0
      %700 = vmatpush1.xpose.msra.mxu0 0.0
      %701 = vmatprep.subr.mxu0 0.0
      %702 = vmatpush1.xpose.msra.mxu0 0.0
      %703 = vmatprep.subr.mxu0 0.0
      %704 = vmatpush1.xpose.msra.mxu0 0.0
      %705 = vmatprep.subr.mxu0 0.0
      %706 = vmatpush1.xpose.msra.mxu0 0.0
      %707 = vmatprep.subr.mxu0 0.0
      %708 = vmatpush1.xpose.msra.mxu0 0.0
      %709 = vmatprep.subr.mxu0 0.0
      %710 = vmatpush1.xpose.msra.mxu0 0.0
      %711 = vmatprep.subr.mxu0 0.0
      %712 = vmatpush1.xpose.msra.mxu0 0.0
      %713 = vmatprep.subr.mxu0 0.0
      %714 = vmatpush1.xpose.msra.mxu0 0.0
      %715 = vmatprep.subr.mxu0 0.0
      %716 = vmatpush1.xpose.msra.mxu0 0.0
      %717 = vmatprep.subr.mxu0 0.0
      %718 = vmatpush1.xpose.msra.mxu0 0.0
      %719 = vmatprep.subr.mxu0 0.0
      %720 = vmatpush1.xpose.msra.mxu0 0.0
      %721 = vmatprep.subr.mxu0 0.0
      %722 = vmatpush1.xpose.msra.mxu0 0.0
      %723 = vmatprep.subr.mxu0 0.0
      %724 = vmatpush1.xpose.msra.mxu0 0.0
      %725 = vmatprep.subr.mxu0 0.0
      %726 = vmatpush1.xpose.msra.mxu0 0.0
      %727 = vmatprep.mubr.f32.mxu0 0.0
      %728 = vmatmul.mubr.f32.gmra.mrb[0].mxu0 %v659
      %v729 = vpop.f32.mrb[0].mxu0
      %v730 = vadd.f32 0.0, %v729
      %v731 = vpop.f32.mrb[0].mxu0
      %732 = vdwg.mxu0
      %v733 = vmul.f32 %v730, 0.17677669
      %vm734 = vcmask 64512
      %v735 = vsel %vm734, %v733, -inf
      %736 = vmax.xlane.f32.xlu0 %v735
      %v737 = vpop.xlane.xlu0 %736
      %v738 = vsub.f32 %v733, %v737
      %v739 = vmul.f32 %v738, 1.442695
      %v740 = vpow.pop %v739
      %v741 = vsel %vm734, %v740, 0.0
      %742 = vadd.xlane.f32.xlu0 %v741
      %v743 = vpop.xlane.xlu0 %742
      %v744 = vrcp.pop %v743
      %v745 = vmul.f32 %v740, %v744
      %746 = vrot.lane.b32.xlu0 %v648, 64
      %v747 = vpop.permute.xlu0 %746
      %v750 = vsel %vm734, %v745, 0
      %752 = vmatprep.subr.mxu0 0.0
      %753 = vmatpush1.msra.mxu0 %v747
      %754 = vmatprep.subr.mxu0 0.0
      %755 = vmatpush1.msra.mxu0 0.0
      %756 = vmatprep.subr.mxu0 0.0
      %757 = vmatpush1.msra.mxu0 0.0
      %758 = vmatprep.subr.mxu0 0.0
      %759 = vmatpush1.msra.mxu0 0.0
      %760 = vmatprep.subr.mxu0 0.0
      %761 = vmatpush1.msra.mxu0 0.0
      %762 = vmatprep.subr.mxu0 0.0
      %763 = vmatpush1.msra.mxu0 0.0
      %764 = vmatprep.subr.mxu0 0.0
      %765 = vmatpush1.msra.mxu0 0.0
      %766 = vmatprep.subr.mxu0 0.0
      %767 = vmatpush1.msra.mxu0 0.0
      %768 = vmatprep.subr.mxu0 0.0
      %769 = vmatpush1.msra.mxu0 0.0
      %770 = vmatprep.subr.mxu0 0.0
      %771 = vmatpush1.msra.mxu0 0.0
      %772 = vmatprep.subr.mxu0 0.0
      %773 = vmatpush1.msra.mxu0 0.0
      %774 = vmatprep.subr.mxu0 0.0
      %775 = vmatpush1.msra.mxu0 0.0
      %776 = vmatprep.subr.mxu0 0.0
      %777 = vmatpush1.msra.mxu0 0.0
      %778 = vmatprep.subr.mxu0 0.0
      %779 = vmatpush1.msra.mxu0 0.0
      %780 = vmatprep.subr.mxu0 0.0
      %781 = vmatpush1.msra.mxu0 0.0
      %782 = vmatprep.subr.mxu0 0.0
      %783 = vmatpush1.msra.mxu0 0.0
      %784 = vmatprep.subr.mxu0 0.0
      %785 = vmatpush1.msra.mxu0 0.0
      %786 = vmatprep.subr.mxu0 0.0
      %787 = vmatpush1.msra.mxu0 0.0
      %788 = vmatprep.subr.mxu0 0.0
      %789 = vmatpush1.msra.mxu0 0.0
      %790 = vmatprep.subr.mxu0 0.0
      %791 = vmatpush1.msra.mxu0 0.0
      %792 = vmatprep.subr.mxu0 0.0
      %793 = vmatpush1.msra.mxu0 0.0
      %794 = vmatprep.subr.mxu0 0.0
      %795 = vmatpush1.msra.mxu0 0.0
      %796 = vmatprep.subr.mxu0 0.0
      %797 = vmatpush1.msra.mxu0 0.0
      %798 = vmatprep.subr.mxu0 0.0
      %799 = vmatpush1.msra.mxu0 0.0
      %800 = vmatprep.subr.mxu0 0.0
      %801 = vmatpush1.msra.mxu0 0.0
      %802 = vmatprep.subr.mxu0 0.0
      %803 = vmatpush1.msra.mxu0 0.0
      %804 = vmatprep.subr.mxu0 0.0
      %805 = vmatpush1.msra.mxu0 0.0
      %806 = vmatprep.subr.mxu0 0.0
      %807 = vmatpush1.msra.mxu0 0.0
      %808 = vmatprep.subr.mxu0 0.0
      %809 = vmatpush1.msra.mxu0 0.0
      %810 = vmatprep.subr.mxu0 0.0
      %811 = vmatpush1.msra.mxu0 0.0
      %812 = vmatprep.subr.mxu0 0.0
      %813 = vmatpush1.msra.mxu0 0.0
      %814 = vmatprep.subr.mxu0 0.0
      %815 = vmatpush1.msra.mxu0 0.0
      %816 = vmatprep.mubr.f32.mxu0 0.0
      %817 = vmatmul.mubr.f32.gmra.mrb[0].mxu0 %v750
      %v818 = vpop.f32.mrb[0].mxu0
      %v819 = vadd.f32 0.0, %v818
      %v820 = vpop.f32.mrb[0].mxu0
      %821 = vdwg.mxu0
      %823 = vrot.lane.b32.xlu0 %v653, 96
      %v824 = vpop.permute.xlu0 %823
      %v825 = vsel %vm574, %v653, 0
      %v827 = vsel %vm574, %v824, 0
      %829 = vmatprep.subr.mxu0 0.0
      %830 = vmatpush1.xpose.msra.mxu0 %v827
      %831 = vmatprep.subr.mxu0 0.0
      %832 = vmatpush1.xpose.msra.mxu0 0.0
      %833 = vmatprep.subr.mxu0 0.0
      %834 = vmatpush1.xpose.msra.mxu0 0.0
      %835 = vmatprep.subr.mxu0 0.0
      %836 = vmatpush1.xpose.msra.mxu0 0.0
      %837 = vmatprep.subr.mxu0 0.0
      %838 = vmatpush1.xpose.msra.mxu0 0.0
      %839 = vmatprep.subr.mxu0 0.0
      %840 = vmatpush1.xpose.msra.mxu0 0.0
      %841 = vmatprep.subr.mxu0 0.0
      %842 = vmatpush1.xpose.msra.mxu0 0.0
      %843 = vmatprep.subr.mxu0 0.0
      %844 = vmatpush1.xpose.msra.mxu0 0.0
      %845 = vmatprep.subr.mxu0 0.0
      %846 = vmatpush1.xpose.msra.mxu0 0.0
      %847 = vmatprep.subr.mxu0 0.0
      %848 = vmatpush1.xpose.msra.mxu0 0.0
      %849 = vmatprep.subr.mxu0 0.0
      %850 = vmatpush1.xpose.msra.mxu0 0.0
      %851 = vmatprep.subr.mxu0 0.0
      %852 = vmatpush1.xpose.msra.mxu0 0.0
      %853 = vmatprep.subr.mxu0 0.0
      %854 = vmatpush1.xpose.msra.mxu0 0.0
      %855 = vmatprep.subr.mxu0 0.0
      %856 = vmatpush1.xpose.msra.mxu0 0.0
      %857 = vmatprep.subr.mxu0 0.0
      %858 = vmatpush1.xpose.msra.mxu0 0.0
      %859 = vmatprep.subr.mxu0 0.0
      %860 = vmatpush1.xpose.msra.mxu0 0.0
      %861 = vmatprep.subr.mxu0 0.0
      %862 = vmatpush1.xpose.msra.mxu0 0.0
      %863 = vmatprep.subr.mxu0 0.0
      %864 = vmatpush1.xpose.msra.mxu0 0.0
      %865 = vmatprep.subr.mxu0 0.0
      %866 = vmatpush1.xpose.msra.mxu0 0.0
      %867 = vmatprep.subr.mxu0 0.0
      %868 = vmatpush1.xpose.msra.mxu0 0.0
      %869 = vmatprep.subr.mxu0 0.0
      %870 = vmatpush1.xpose.msra.mxu0 0.0
      %871 = vmatprep.subr.mxu0 0.0
      %872 = vmatpush1.xpose.msra.mxu0 0.0
      %873 = vmatprep.subr.mxu0 0.0
      %874 = vmatpush1.xpose.msra.mxu0 0.0
      %875 = vmatprep.subr.mxu0 0.0
      %876 = vmatpush1.xpose.msra.mxu0 0.0
      %877 = vmatprep.subr.mxu0 0.0
      %878 = vmatpush1.xpose.msra.mxu0 0.0
      %879 = vmatprep.subr.mxu0 0.0
      %880 = vmatpush1.xpose.msra.mxu0 0.0
      %881 = vmatprep.subr.mxu0 0.0
      %882 = vmatpush1.xpose.msra.mxu0 0.0
      %883 = vmatprep.subr.mxu0 0.0
      %884 = vmatpush1.xpose.msra.mxu0 0.0
      %885 = vmatprep.subr.mxu0 0.0
      %886 = vmatpush1.xpose.msra.mxu0 0.0
      %887 = vmatprep.subr.mxu0 0.0
      %888 = vmatpush1.xpose.msra.mxu0 0.0
      %889 = vmatprep.subr.mxu0 0.0
      %890 = vmatpush1.xpose.msra.mxu0 0.0
      %891 = vmatprep.subr.mxu0 0.0
      %892 = vmatpush1.xpose.msra.mxu0 0.0
      %893 = vmatprep.mubr.f32.mxu0 0.0
      %894 = vmatmul.mubr.f32.gmra.mrb[0].mxu0 %v825
      %v895 = vpop.f32.mrb[0].mxu0
      %v896 = vadd.f32 0.0, %v895
      %v897 = vpop.f32.mrb[0].mxu0
      %898 = vdwg.mxu0
      %v899 = vmul.f32 %v896, 0.17677669
      %v900 = vsel %vm734, %v899, -inf
      %901 = vmax.xlane.f32.xlu0 %v900
      %v902 = vpop.xlane.xlu0 %901
      %v903 = vsub.f32 %v899, %v902
      %v904 = vmul.f32 %v903, 1.442695
      %v905 = vpow.pop %v904
      %v906 = vsel %vm734, %v905, 0.0
      %907 = vadd.xlane.f32.xlu0 %v906
      %v908 = vpop.xlane.xlu0 %907
      %v909 = vrcp.pop %v908
      %v910 = vmul.f32 %v905, %v909
      %911 = vrot.lane.b32.xlu0 %v653, 64
      %v912 = vpop.permute.xlu0 %911
      %v915 = vsel %vm734, %v910, 0
      %917 = vmatprep.subr.mxu0 0.0
      %918 = vmatpush1.msra.mxu0 %v912
      %919 = vmatprep.subr.mxu0 0.0
      %920 = vmatpush1.msra.mxu0 0.0
      %921 = vmatprep.subr.mxu0 0.0
      %922 = vmatpush1.msra.mxu0 0.0
      %923 = vmatprep.subr.mxu0 0.0
      %924 = vmatpush1.msra.mxu0 0.0
      %925 = vmatprep.subr.mxu0 0.0
      %926 = vmatpush1.msra.mxu0 0.0
      %927 = vmatprep.subr.mxu0 0.0
      %928 = vmatpush1.msra.mxu0 0.0
      %929 = vmatprep.subr.mxu0 0.0
      %930 = vmatpush1.msra.mxu0 0.0
      %931 = vmatprep.subr.mxu0 0.0
      %932 = vmatpush1.msra.mxu0 0.0
      %933 = vmatprep.subr.mxu0 0.0
      %934 = vmatpush1.msra.mxu0 0.0
      %935 = vmatprep.subr.mxu0 0.0
      %936 = vmatpush1.msra.mxu0 0.0
      %937 = vmatprep.subr.mxu0 0.0
      %938 = vmatpush1.msra.mxu0 0.0
      %939 = vmatprep.subr.mxu0 0.0
      %940 = vmatpush1.msra.mxu0 0.0
      %941 = vmatprep.subr.mxu0 0.0
      %942 = vmatpush1.msra.mxu0 0.0
      %943 = vmatprep.subr.mxu0 0.0
      %944 = vmatpush1.msra.mxu0 0.0
      %945 = vmatprep.subr.mxu0 0.0
      %946 = vmatpush1.msra.mxu0 0.0
      %947 = vmatprep.subr.mxu0 0.0
      %948 = vmatpush1.msra.mxu0 0.0
      %949 = vmatprep.subr.mxu0 0.0
      %950 = vmatpush1.msra.mxu0 0.0
      %951 = vmatprep.subr.mxu0 0.0
      %952 = vmatpush1.msra.mxu0 0.0
      %953 = vmatprep.subr.mxu0 0.0
      %954 = vmatpush1.msra.mxu0 0.0
      %955 = vmatprep.subr.mxu0 0.0
      %956 = vmatpush1.msra.mxu0 0.0
      %957 = vmatprep.subr.mxu0 0.0
      %958 = vmatpush1.msra.mxu0 0.0
      %959 = vmatprep.subr.mxu0 0.0
      %960 = vmatpush1.msra.mxu0 0.0
      %961 = vmatprep.subr.mxu0 0.0
      %962 = vmatpush1.msra.mxu0 0.0
      %963 = vmatprep.subr.mxu0 0.0
      %964 = vmatpush1.msra.mxu0 0.0
      %965 = vmatprep.subr.mxu0 0.0
      %966 = vmatpush1.msra.mxu0 0.0
      %967 = vmatprep.subr.mxu0 0.0
      %968 = vmatpush1.msra.mxu0 0.0
      %969 = vmatprep.subr.mxu0 0.0
      %970 = vmatpush1.msra.mxu0 0.0
      %971 = vmatprep.subr.mxu0 0.0
      %972 = vmatpush1.msra.mxu0 0.0
      %973 = vmatprep.subr.mxu0 0.0
      %974 = vmatpush1.msra.mxu0 0.0
      %975 = vmatprep.subr.mxu0 0.0
      %976 = vmatpush1.msra.mxu0 0.0
      %977 = vmatprep.subr.mxu0 0.0
      %978 = vmatpush1.msra.mxu0 0.0
      %979 = vmatprep.subr.mxu0 0.0
      %980 = vmatpush1.msra.mxu0 0.0
      %981 = vmatprep.mubr.f32.mxu0 0.0
      %982 = vmatmul.mubr.f32.gmra.mrb[0].mxu0 %v915
      %v983 = vpop.f32.mrb[0].mxu0
      %v984 = vadd.f32 0.0, %v983
      %v985 = vpop.f32.mrb[0].mxu0
      %986 = vdwg.mxu0
      %v987 = vld [vmem:[%s523] sm:$0xff]
      %v988 = vld [vmem:[%s523 + $0x8] sm:$0xff]
      %v989 = vld [vmem:[%s523 + $0x10] sm:$0xff]
      %v990 = vld [vmem:[%s523 + $0x18] sm:$0xff]
      %v991 = vld [vmem:[%s526] sm:$0x1]
      %v993 = vlaneseq
      %v994 = vshrl.u32 %v993, 7
      %v995 = vsub.s32 0, %v994
      %v996 = vrot.slane %v991, %v995
      %v999 = vsel %vm574, %v819, 0
      %v1002 = vsel %vm574, %v984, 0
      %1004 = vmatprep.subr.mxu0 0.0
      %1005 = vmatpush1.msra.mxu0 %v987
      %1006 = vmatprep.subr.mxu0 0.0
      %1007 = vmatpush1.msra.mxu0 %v988
      %1008 = vmatprep.subr.mxu0 0.0
      %1009 = vmatpush1.msra.mxu0 %v989
      %1010 = vmatprep.subr.mxu0 0.0
      %1011 = vmatpush1.msra.mxu0 %v990
      %1012 = vmatprep.subr.mxu0 0.0
      %1013 = vmatpush1.msra.mxu0 0.0
      %1014 = vmatprep.subr.mxu0 0.0
      %1015 = vmatpush1.msra.mxu0 0.0
      %1016 = vmatprep.subr.mxu0 0.0
      %1017 = vmatpush1.msra.mxu0 0.0
      %1018 = vmatprep.subr.mxu0 0.0
      %1019 = vmatpush1.msra.mxu0 0.0
      %1020 = vmatprep.subr.mxu0 0.0
      %1021 = vmatpush1.msra.mxu0 0.0
      %1022 = vmatprep.subr.mxu0 0.0
      %1023 = vmatpush1.msra.mxu0 0.0
      %1024 = vmatprep.subr.mxu0 0.0
      %1025 = vmatpush1.msra.mxu0 0.0
      %1026 = vmatprep.subr.mxu0 0.0
      %1027 = vmatpush1.msra.mxu0 0.0
      %1028 = vmatprep.subr.mxu0 0.0
      %1029 = vmatpush1.msra.mxu0 0.0
      %1030 = vmatprep.subr.mxu0 0.0
      %1031 = vmatpush1.msra.mxu0 0.0
      %1032 = vmatprep.subr.mxu0 0.0
      %1033 = vmatpush1.msra.mxu0 0.0
      %1034 = vmatprep.subr.mxu0 0.0
      %1035 = vmatpush1.msra.mxu0 0.0
      %1036 = vmatprep.subr.mxu0 0.0
      %1037 = vmatpush1.msra.mxu0 0.0
      %1038 = vmatprep.subr.mxu0 0.0
      %1039 = vmatpush1.msra.mxu0 0.0
      %1040 = vmatprep.subr.mxu0 0.0
      %1041 = vmatpush1.msra.mxu0 0.0
      %1042 = vmatprep.subr.mxu0 0.0
      %1043 = vmatpush1.msra.mxu0 0.0
      %1044 = vmatprep.subr.mxu0 0.0
      %1045 = vmatpush1.msra.mxu0 0.0
      %1046 = vmatprep.subr.mxu0 0.0
      %1047 = vmatpush1.msra.mxu0 0.0
      %1048 = vmatprep.subr.mxu0 0.0
      %1049 = vmatpush1.msra.mxu0 0.0
      %1050 = vmatprep.subr.mxu0 0.0
      %1051 = vmatpush1.msra.mxu0 0.0
      %1052 = vmatprep.subr.mxu0 0.0
      %1053 = vmatpush1.msra.mxu0 0.0
      %1054 = vmatprep.subr.mxu0 0.0
      %1055 = vmatpush1.msra.mxu0 0.0
      %1056 = vmatprep.subr.mxu0 0.0
      %1057 = vmatpush1.msra.mxu0 0.0
      %1058 = vmatprep.subr.mxu0 0.0
      %1059 = vmatpush1.msra.mxu0 0.0
      %1060 = vmatprep.subr.mxu0 0.0
      %1061 = vmatpush1.msra.mxu0 0.0
      %1062 = vmatprep.subr.mxu0 0.0
      %1063 = vmatpush1.msra.mxu0 0.0
      %1064 = vmatprep.subr.mxu0 0.0
      %1065 = vmatpush1.msra.mxu0 0.0
      %1066 = vmatprep.subr.mxu0 0.0
      %1067 = vmatpush1.msra.mxu0 0.0
      %1068 = vmatprep.mubr.f32.mxu0 0.0
      %1069 = vmatmul.mubr.f32.gmra.mrb[0].mxu0 %v999
      %v1070 = vpop.f32.mrb[0].mxu0
      %v1071 = vadd.f32 %v996, %v1070
      %v1072 = vpop.f32.mrb[0].mxu0
      %1073 = vmatprep.mubr.f32.mxu0 0.0
      %1074 = vmatmul.mubr.f32.gmra.mrb[0].mxu0 %v1002
      %v1075 = vpop.f32.mrb[0].mxu0
      %v1076 = vadd.f32 %v996, %v1075
      %v1077 = vpop.f32.mrb[0].mxu0
      %1078 = vdwg.mxu0
      %v1079 = vadd.f32 %v561, %v1071
      %v1080 = vadd.f32 %v562, %v1076
      %v1081 = vld [vmem:[%s530] sm:$0x3]
      %v1082 = vsel %vm574, %v1079, 0.0
      %1083 = vadd.xlane.f32.xlu0 %v1082
      %v1084 = vpop.xlane.xlu0 %1083
      %v1085 = vsel %vm574, %v1080, 0.0
      %1086 = vadd.xlane.f32.xlu0 %v1085
      %v1087 = vpop.xlane.xlu0 %1086
      %v1088 = vrcp.pop 32.0
      %v1089 = vmul.f32 %v1084, %v1088
      %v1090 = vmul.f32 %v1087, %v1088
      %v1091 = vsub.f32 %v1079, %v1089
      %v1092 = vsub.f32 %v1080, %v1090
      %v1093 = vmul.f32 %v1091, %v1091
      %v1094 = vmul.f32 %v1092, %v1092
      %v1095 = vsel %vm574, %v1093, 0.0
      %1096 = vadd.xlane.f32.xlu0 %v1095
      %v1097 = vpop.xlane.xlu0 %1096
      %v1098 = vsel %vm574, %v1094, 0.0
      %1099 = vadd.xlane.f32.xlu0 %v1098
      %v1100 = vpop.xlane.xlu0 %1099
      %v1101 = vmul.f32 %v1097, %v1088
      %v1102 = vmul.f32 %v1100, %v1088
      %v1103 = vadd.f32 %v1101, 1e-05
      %v1104 = vadd.f32 %v1102, 1e-05
      %v1105 = vrsqrt.pop %v1103
      %v1106 = vrsqrt.pop %v1104
      %v1107 = vmul.f32 %v1091, %v1105
      %v1108 = vmul.f32 %v1092, %v1106
      %v1109 = vlaneseq
      %v1110 = vshrl.u32 %v1109, 7
      %v1111 = vsub.s32 0, %v1110
      %v1112 = vrot.slane %v1081, %v1111
      %v1113 = vmul.f32 %v1107, %v1112
      %v1114 = vmul.f32 %v1108, %v1112
      %v1115 = vlaneseq
      %v1116 = vshrl.u32 %v1115, 7
      %v1117 = vsub.s32 1, %v1116
      %v1118 = vrot.slane %v1081, %v1117
      %v1119 = vadd.f32 %v1113, %v1118
      %v1120 = vadd.f32 %v1114, %v1118
      %v1121 = vld [vmem:[%s539] sm:$0xff]
      %v1122 = vld [vmem:[%s539 + $0x8] sm:$0xff]
      %v1123 = vld [vmem:[%s539 + $0x10] sm:$0xff]
      %v1124 = vld [vmem:[%s539 + $0x18] sm:$0xff]
      %v1125 = vld [vmem:[%s539 + $0x20] sm:$0xff]
      %v1126 = vld [vmem:[%s539 + $0x28] sm:$0xff]
      %v1127 = vld [vmem:[%s539 + $0x30] sm:$0xff]
      %v1128 = vld [vmem:[%s539 + $0x38] sm:$0xff]
      %v1129 = vld [vmem:[%s543] sm:$0x3]
      %v1131 = vlaneseq
      %v1132 = vshrl.u32 %v1131, 7
      %v1133 = vsub.s32 0, %v1132
      %v1134 = vrot.slane %v1129, %v1133
      %v1135 = vlaneseq
      %v1136 = vshrl.u32 %v1135, 7
      %v1137 = vsub.s32 1, %v1136
      %v1138 = vrot.slane %v1129, %v1137
      %v1142 = vsel %vm574, %v1119, 0
      %v1145 = vsel %vm574, %v1120, 0
      %1147 = vmatprep.subr.mxu0 %v1122
      %1148 = vmatpush1.msra.mxu0 %v1121
      %1149 = vmatprep.subr.mxu0 %v1124
      %1150 = vmatpush1.msra.mxu0 %v1123
      %1151 = vmatprep.subr.mxu0 %v1126
      %1152 = vmatpush1.msra.mxu0 %v1125
      %1153 = vmatprep.subr.mxu0 %v1128
      %1154 = vmatpush1.msra.mxu0 %v1127
      %1155 = vmatprep.subr.mxu0 0.0
      %1156 = vmatpush1.msra.mxu0 0.0
      %1157 = vmatprep.subr.mxu0 0.0
      %1158 = vmatpush1.msra.mxu0 0.0
      %1159 = vmatprep.subr.mxu0 0.0
      %1160 = vmatpush1.msra.mxu0 0.0
      %1161 = vmatprep.subr.mxu0 0.0
      %1162 = vmatpush1.msra.mxu0 0.0
      %1163 = vmatprep.subr.mxu0 0.0
      %1164 = vmatpush1.msra.mxu0 0.0
      %1165 = vmatprep.subr.mxu0 0.0
      %1166 = vmatpush1.msra.mxu0 0.0
      %1167 = vmatprep.subr.mxu0 0.0
      %1168 = vmatpush1.msra.mxu0 0.0
      %1169 = vmatprep.subr.mxu0 0.0
      %1170 = vmatpush1.msra.mxu0 0.0
      %1171 = vmatprep.subr.mxu0 0.0
      %1172 = vmatpush1.msra.mxu0 0.0
      %1173 = vmatprep.subr.mxu0 0.0
      %1174 = vmatpush1.msra.mxu0 0.0
      %1175 = vmatprep.subr.mxu0 0.0
      %1176 = vmatpush1.msra.mxu0 0.0
      %1177 = vmatprep.subr.mxu0 0.0
      %1178 = vmatpush1.msra.mxu0 0.0
      %1179 = vmatprep.subr.mxu0 0.0
      %1180 = vmatpush1.msra.mxu0 0.0
      %1181 = vmatprep.subr.mxu0 0.0
      %1182 = vmatpush1.msra.mxu0 0.0
      %1183 = vmatprep.subr.mxu0 0.0
      %1184 = vmatpush1.msra.mxu0 0.0
      %1185 = vmatprep.subr.mxu0 0.0
      %1186 = vmatpush1.msra.mxu0 0.0
      %1187 = vmatprep.subr.mxu0 0.0
      %1188 = vmatpush1.msra.mxu0 0.0
      %1189 = vmatprep.subr.mxu0 0.0
      %1190 = vmatpush1.msra.mxu0 0.0
      %1191 = vmatprep.subr.mxu0 0.0
      %1192 = vmatpush1.msra.mxu0 0.0
      %1193 = vmatprep.subr.mxu0 0.0
      %1194 = vmatpush1.msra.mxu0 0.0
      %1195 = vmatprep.subr.mxu0 0.0
      %1196 = vmatpush1.msra.mxu0 0.0
      %1197 = vmatprep.subr.mxu0 0.0
      %1198 = vmatpush1.msra.mxu0 0.0
      %1199 = vmatprep.subr.mxu0 0.0
      %1200 = vmatpush1.msra.mxu0 0.0
      %1201 = vmatprep.subr.mxu0 0.0
      %1202 = vmatpush1.msra.mxu0 0.0
      %1203 = vmatprep.subr.mxu0 0.0
      %1204 = vmatpush1.msra.mxu0 0.0
      %1205 = vmatprep.subr.mxu0 0.0
      %1206 = vmatpush1.msra.mxu0 0.0
      %1207 = vmatprep.subr.mxu0 0.0
      %1208 = vmatpush1.msra.mxu0 0.0
      %1209 = vmatprep.subr.mxu0 0.0
      %1210 = vmatpush1.msra.mxu0 0.0
      %1211 = vmatprep.mubr.f32.mxu0 0.0
      %1212 = vmatmul.mubr.f32.gmra.mrb[0].mxu0 %v1142
      %v1213 = vpop.f32.mrb[0].mxu0
      %v1214 = vadd.f32 %v1134, %v1213
      %v1215 = vpop.f32.mrb[0].mxu0
      %v1216 = vadd.f32 %v1138, %v1215
      %1217 = vmatprep.mubr.f32.mxu0 0.0
      %1218 = vmatmul.mubr.f32.gmra.mrb[0].mxu0 %v1145
      %v1219 = vpop.f32.mrb[0].mxu0
      %v1220 = vadd.f32 %v1134, %v1219
      %v1221 = vpop.f32.mrb[0].mxu0
      %v1222 = vadd.f32 %v1138, %v1221
      %1223 = vdwg.mxu0
      %v1224 = vmax.f32 %v1214, 0.0
      %v1225 = vmax.f32 %v1216, 0.0
      %v1226 = vmax.f32 %v1220, 0.0
      %v1227 = vmax.f32 %v1222, 0.0
      %v1228 = vld [vmem:[%s548] sm:$0xff]
      %v1229 = vld [vmem:[%s548 + $0x8] sm:$0xff]
      %v1230 = vld [vmem:[%s548 + $0x10] sm:$0xff]
      %v1231 = vld [vmem:[%s548 + $0x18] sm:$0xff]
      %v1232 = vld [vmem:[%s548 + $0x20] sm:$0xff]
      %v1233 = vld [vmem:[%s548 + $0x28] sm:$0xff]
      %v1234 = vld [vmem:[%s548 + $0x30] sm:$0xff]
      %v1235 = vld [vmem:[%s548 + $0x38] sm:$0xff]
      %v1236 = vld [vmem:[%s548 + $0x40] sm:$0xff]
      %v1237 = vld [vmem:[%s548 + $0x48] sm:$0xff]
      %v1238 = vld [vmem:[%s548 + $0x50] sm:$0xff]
      %v1239 = vld [vmem:[%s548 + $0x58] sm:$0xff]
      %v1240 = vld [vmem:[%s548 + $0x60] sm:$0xff]
      %v1241 = vld [vmem:[%s548 + $0x68] sm:$0xff]
      %v1242 = vld [vmem:[%s548 + $0x70] sm:$0xff]
      %v1243 = vld [vmem:[%s548 + $0x78] sm:$0xff]
      %v1244 = vld [vmem:[%s548 + $0x80] sm:$0xff]
      %v1245 = vld [vmem:[%s548 + $0x88] sm:$0xff]
      %v1246 = vld [vmem:[%s548 + $0x90] sm:$0xff]
      %v1247 = vld [vmem:[%s548 + $0x98] sm:$0xff]
      %v1248 = vld [vmem:[%s548 + $0xa0] sm:$0xff]
      %v1249 = vld [vmem:[%s548 + $0xa8] sm:$0xff]
      %v1250 = vld [vmem:[%s548 + $0xb0] sm:$0xff]
      %v1251 = vld [vmem:[%s548 + $0xb8] sm:$0xff]
      %v1252 = vld [vmem:[%s548 + $0xc0] sm:$0xff]
      %v1253 = vld [vmem:[%s548 + $0xc8] sm:$0xff]
      %v1254 = vld [vmem:[%s548 + $0xd0] sm:$0xff]
      %v1255 = vld [vmem:[%s548 + $0xd8] sm:$0xff]
      %v1256 = vld [vmem:[%s548 + $0xe0] sm:$0xff]
      %v1257 = vld [vmem:[%s548 + $0xe8] sm:$0xff]
      %v1258 = vld [vmem:[%s548 + $0xf0] sm:$0xff]
      %v1259 = vld [vmem:[%s548 + $0xf8] sm:$0xff]
      %v1260 = vld [vmem:[%s551] sm:$0x1]
      %v1262 = vlaneseq
      %v1263 = vshrl.u32 %v1262, 7
      %v1264 = vsub.s32 0, %v1263
      %v1265 = vrot.slane %v1260, %v1264
      %1267 = vmatprep.subr.mxu0 0.0
      %1268 = vmatpush1.msra.mxu0 %v1228
      %1269 = vmatprep.subr.mxu0 0.0
      %1270 = vmatpush1.msra.mxu0 %v1229
      %1271 = vmatprep.subr.mxu0 0.0
      %1272 = vmatpush1.msra.mxu0 %v1230
      %1273 = vmatprep.subr.mxu0 0.0
      %1274 = vmatpush1.msra.mxu0 %v1231
      %1275 = vmatprep.subr.mxu0 0.0
      %1276 = vmatpush1.msra.mxu0 %v1232
      %1277 = vmatprep.subr.mxu0 0.0
      %1278 = vmatpush1.msra.mxu0 %v1233
      %1279 = vmatprep.subr.mxu0 0.0
      %1280 = vmatpush1.msra.mxu0 %v1234
      %1281 = vmatprep.subr.mxu0 0.0
      %1282 = vmatpush1.msra.mxu0 %v1235
      %1283 = vmatprep.subr.mxu0 0.0
      %1284 = vmatpush1.msra.mxu0 %v1236
      %1285 = vmatprep.subr.mxu0 0.0
      %1286 = vmatpush1.msra.mxu0 %v1237
      %1287 = vmatprep.subr.mxu0 0.0
      %1288 = vmatpush1.msra.mxu0 %v1238
      %1289 = vmatprep.subr.mxu0 0.0
      %1290 = vmatpush1.msra.mxu0 %v1239
      %1291 = vmatprep.subr.mxu0 0.0
      %1292 = vmatpush1.msra.mxu0 %v1240
      %1293 = vmatprep.subr.mxu0 0.0
      %1294 = vmatpush1.msra.mxu0 %v1241
      %1295 = vmatprep.subr.mxu0 0.0
      %1296 = vmatpush1.msra.mxu0 %v1242
      %1297 = vmatprep.subr.mxu0 0.0
      %1298 = vmatpush1.msra.mxu0 %v1243
      %1299 = vmatprep.subr.mxu0 0.0
      %1300 = vmatpush1.msra.mxu0 %v1244
      %1301 = vmatprep.subr.mxu0 0.0
      %1302 = vmatpush1.msra.mxu0 %v1245
      %1303 = vmatprep.subr.mxu0 0.0
      %1304 = vmatpush1.msra.mxu0 %v1246
      %1305 = vmatprep.subr.mxu0 0.0
      %1306 = vmatpush1.msra.mxu0 %v1247
      %1307 = vmatprep.subr.mxu0 0.0
      %1308 = vmatpush1.msra.mxu0 %v1248
      %1309 = vmatprep.subr.mxu0 0.0
      %1310 = vmatpush1.msra.mxu0 %v1249
      %1311 = vmatprep.subr.mxu0 0.0
      %1312 = vmatpush1.msra.mxu0 %v1250
      %1313 = vmatprep.subr.mxu0 0.0
      %1314 = vmatpush1.msra.mxu0 %v1251
      %1315 = vmatprep.subr.mxu0 0.0
      %1316 = vmatpush1.msra.mxu0 %v1252
      %1317 = vmatprep.subr.mxu0 0.0
      %1318 = vmatpush1.msra.mxu0 %v1253
      %1319 = vmatprep.subr.mxu0 0.0
      %1320 = vmatpush1.msra.mxu0 %v1254
      %1321 = vmatprep.subr.mxu0 0.0
      %1322 = vmatpush1.msra.mxu0 %v1255
      %1323 = vmatprep.subr.mxu0 0.0
      %1324 = vmatpush1.msra.mxu0 %v1256
      %1325 = vmatprep.subr.mxu0 0.0
      %1326 = vmatpush1.msra.mxu0 %v1257
      %1327 = vmatprep.subr.mxu0 0.0
      %1328 = vmatpush1.msra.mxu0 %v1258
      %1329 = vmatprep.subr.mxu0 0.0
      %1330 = vmatpush1.msra.mxu0 %v1259
      %1331 = vmatprep.mubr.f32.mxu0 %v1225
      %1332 = vmatmul.mubr.f32.gmra.mrb[0].mxu0 %v1224
      %v1333 = vpop.f32.mrb[0].mxu0
      %v1334 = vadd.f32 %v1265, %v1333
      %v1335 = vpop.f32.mrb[0].mxu0
      %1336 = vmatprep.mubr.f32.mxu0 %v1227
      %1337 = vmatmul.mubr.f32.gmra.mrb[0].mxu0 %v1226
      %v1338 = vpop.f32.mrb[0].mxu0
      %v1339 = vadd.f32 %v1265, %v1338
      %v1340 = vpop.f32.mrb[0].mxu0
      %1341 = vdwg.mxu0
      %v1342 = vadd.f32 %v1119, %v1334
      %v1343 = vadd.f32 %v1120, %v1339
      %v1344 = vld [vmem:[%s534] sm:$0x3]
      %v1345 = vsel %vm574, %v1342, 0.0
      %1346 = vadd.xlane.f32.xlu0 %v1345
      %v1347 = vpop.xlane.xlu0 %1346
      %v1348 = vsel %vm574, %v1343, 0.0
      %1349 = vadd.xlane.f32.xlu0 %v1348
      %v1350 = vpop.xlane.xlu0 %1349
      %v1351 = vmul.f32 %v1347, %v1088
      %v1352 = vmul.f32 %v1350, %v1088
      %v1353 = vsub.f32 %v1342, %v1351
      %v1354 = vsub.f32 %v1343, %v1352
      %v1355 = vmul.f32 %v1353, %v1353
      %v1356 = vmul.f32 %v1354, %v1354
      %v1357 = vsel %vm574, %v1355, 0.0
      %1358 = vadd.xlane.f32.xlu0 %v1357
      %v1359 = vpop.xlane.xlu0 %1358
      %v1360 = vsel %vm574, %v1356, 0.0
      %1361 = vadd.xlane.f32.xlu0 %v1360
      %v1362 = vpop.xlane.xlu0 %1361
      %v1363 = vmul.f32 %v1359, %v1088
      %v1364 = vmul.f32 %v1362, %v1088
      %v1365 = vadd.f32 %v1363, 1e-05
      %v1366 = vadd.f32 %v1364, 1e-05
      %v1367 = vrsqrt.pop %v1365
      %v1368 = vrsqrt.pop %v1366
      %v1369 = vmul.f32 %v1353, %v1367
      %v1370 = vmul.f32 %v1354, %v1368
      %v1371 = vlaneseq
      %v1372 = vshrl.u32 %v1371, 7
      %v1373 = vsub.s32 0, %v1372
      %v1374 = vrot.slane %v1344, %v1373
      %v1375 = vmul.f32 %v1369, %v1374
      %v1376 = vmul.f32 %v1370, %v1374
      %v1377 = vlaneseq
      %v1378 = vshrl.u32 %v1377, 7
      %v1379 = vsub.s32 1, %v1378
      %v1380 = vrot.slane %v1344, %v1379
      %v1381 = vadd.f32 %v1375, %v1380
      %v1382 = vadd.f32 %v1376, %v1380
      %p1383 = scmp.eq.s32.totalorder %s23, 2
      // Predicated region
      $region73: #{model_forward.3} parent=67 // pred_check
        %p1384 = pneg %p1383
      $region74: #{model_forward.3} parent=67 // pred_check_branch
        %1386 = sbr.rel (%p1384) target = $region76
      $region75: #{model_forward.3} parent=67 // pred_region
        %v1387 = vld [vmem:[%s11] sm:$0x3]
        %v1388 = vsel %vm574, %v1381, 0.0
        %1389 = vadd.xlane.f32.xlu0 %v1388
        %v1390 = vpop.xlane.xlu0 %1389
        %v1391 = vsel %vm574, %v1382, 0.0
        %1392 = vadd.xlane.f32.xlu0 %v1391
        %v1393 = vpop.xlane.xlu0 %1392
        %v1394 = vmul.f32 %v1390, %v1088
        %v1395 = vmul.f32 %v1393, %v1088
        %v1396 = vsub.f32 %v1381, %v1394
        %v1397 = vsub.f32 %v1382, %v1395
        %v1398 = vmul.f32 %v1396, %v1396
        %v1399 = vmul.f32 %v1397, %v1397
        %v1400 = vsel %vm574, %v1398, 0.0
        %1401 = vadd.xlane.f32.xlu0 %v1400
        %v1402 = vpop.xlane.xlu0 %1401
        %v1403 = vsel %vm574, %v1399, 0.0
        %1404 = vadd.xlane.f32.xlu0 %v1403
        %v1405 = vpop.xlane.xlu0 %1404
        %v1406 = vmul.f32 %v1402, %v1088
        %v1407 = vmul.f32 %v1405, %v1088
        %v1408 = vadd.f32 %v1406, 1e-05
        %v1409 = vadd.f32 %v1407, 1e-05
        %v1410 = vrsqrt.pop %v1408
        %v1411 = vrsqrt.pop %v1409
        %v1412 = vmul.f32 %v1396, %v1410
        %v1413 = vmul.f32 %v1397, %v1411
        %v1414 = vlaneseq
        %v1415 = vshrl.u32 %v1414, 7
        %v1416 = vsub.s32 0, %v1415
        %v1417 = vrot.slane %v1387, %v1416
        %v1418 = vmul.f32 %v1412, %v1417
        %v1419 = vmul.f32 %v1413, %v1417
        %v1420 = vlaneseq
        %v1421 = vshrl.u32 %v1420, 7
        %v1422 = vsub.s32 1, %v1421
        %v1423 = vrot.slane %v1387, %v1422
        %v1424 = vadd.f32 %v1418, %v1423
        %v1425 = vadd.f32 %v1419, %v1423
        %1426 = vst.msk [vmem:[%s12] sm:$0xff] %vm574, %v1424
        %1427 = vst.msk [vmem:[%s12 + $0x8] sm:$0xff] %vm574, %v1425
      $region76: #{model_forward.3} parent=67 // pred_fallthru
        _
      %p1428 = scmp.lt.s32.totalorder %s23, 2
      // Predicated region
      $region77: #{model_forward.3} parent=67 // pred_check
        %p1429 = pneg %p1428
      $region78: #{model_forward.3} parent=67 // pred_check_branch
        %1431 = sbr.rel (%p1429) target = $region80
      $region79: #{model_forward.3} parent=67 // pred_region
        %1432 = vst.msk [vmem:[%s12] sm:$0xff] %vm574, %v1381
        %1433 = vst.msk [vmem:[%s12 + $0x8] sm:$0xff] %vm574, %v1382
      $region80: #{model_forward.3} parent=67 // pred_fallthru
        _
      // Predicated region
      $region81: #{model_forward.3} parent=67 // pred_check
        %p1434 = pneg %p338
      $region82: #{model_forward.3} parent=67 // pred_check_branch
        %1436 = sbr.rel (%p1434) target = $region84
      $region83: #{model_forward.3} parent=67 // pred_region
        _
      $region84: #{model_forward.3} parent=67 // pred_fallthru
        _
      // Predicated region
      $region85: #{model_forward.3} parent=67 // pred_check
        %p1437 = pneg %p338
      $region86: #{model_forward.3} parent=67 // pred_check_branch
        %1439 = sbr.rel (%p1437) target = $region88
      $region87: #{model_forward.3} parent=67 // pred_region
        _
      $region88: #{model_forward.3} parent=67 // pred_fallthru
        _
    $region68: #{model_forward.3} parent=5 // pred_fallthru
      _
    %p1440 = scmp.le.s32.totalorder 2, %s18
    // Predicated region
    $region89: #{model_forward.3} parent=5 // pred_check
      %p1441 = pneg %p1440
    $region90: #{model_forward.3} parent=5 // pred_check_branch
      %1443 = sbr.rel (%p1441) target = $region92
    $region91: #{model_forward.3} parent=5 // pred_region
      %s1444 = ssub.s32 %s18, 2
    $region92: #{model_forward.3} parent=5 // pred_fallthru
      _
  $region6: #{model_forward.3} parent=0 // loop_footer
    %s22 = sadd.s32 1, %s18
  $region7: #{model_forward.3} parent=0 // loop_footer_branch
    %17 = sbr.rel target = $region3
  $region8: #{model_forward.3} parent=0 // loop_exit
    _

// kernel: model_forward.4
$region0: #{model_forward.4}
  #allocation0 [shape = 'u32[]', space=smem, size = 0x4, offset = 0x4, fixed_abs, tag = 'smem constant byte address 0x4 - core index']
  #allocation1 [shape = 'u32[144,128]{1,0:T(1,128)}', space=vmem, size = 0x12000, scoped, tag = 'internal scratch']
  %s0 = inlined_call_operand.vmem [shape: f32[16,32], index: 0, kind: input, shape index: {}]
  %s1 = inlined_call_operand.vmem [shape: f32[2,32,96], index: 1, kind: input, shape index: {}]
  %s2 = inlined_call_operand.vmem [shape: f32[2,1,96], index: 2, kind: input, shape index: {}]
  %s3 = inlined_call_operand.vmem [shape: f32[2,32,32], index: 3, kind: input, shape index: {}]
  %s4 = inlined_call_operand.vmem [shape: f32[2,1,32], index: 4, kind: input, shape index: {}]
  %s5 = inlined_call_operand.vmem [shape: f32[2,2,32], index: 5, kind: input, shape index: {}]
  %s6 = inlined_call_operand.vmem [shape: f32[2,2,32], index: 6, kind: input, shape index: {}]
  %s7 = inlined_call_operand.vmem [shape: f32[2,32,256], index: 7, kind: input, shape index: {}]
  %s8 = inlined_call_operand.vmem [shape: f32[2,1,256], index: 8, kind: input, shape index: {}]
  %s9 = inlined_call_operand.vmem [shape: f32[2,256,32], index: 9, kind: input, shape index: {}]
  %s10 = inlined_call_operand.vmem [shape: f32[2,1,32], index: 10, kind: input, shape index: {}]
  %s11 = inlined_call_operand.vmem [shape: f32[2,32], index: 11, kind: input, shape index: {}]
  %s12 = inlined_call_operand.vmem [shape: f32[16,32], index: 12, kind: output, shape index: {}]
  %s13 = sld [smem:[#allocation0]]
  $region85: #{model_forward.4} parent=0
    _
  %s15 = ssub.s32 1, %s13
  %s16 = scalar_select 0, %s15, %s13
  loop: start=0, step=1, limit=4
  $region2: #{model_forward.4} parent=0 // loop_pre_header
    _
  $region3: #{model_forward.4} parent=0 // loop_header
    %s18 = sphi 0, %s22
    %p19 = scmp.ge.s32.totalorder %s18, 4
    %s26 = sphi 0, %s26
    %s28 = sphi 0, %s26
    %s29 = sphi 0, %s28
    %s43 = sphi 0, %s29
    %s49 = sphi 0, %s51
    %s52 = sphi 0, %s49
    %s53 = sphi 0, %s52
    %s69 = sphi 0, %s53
    %s75 = sphi 0, %s77
    %s78 = sphi 0, %s75
    %s79 = sphi 0, %s78
    %s95 = sphi 0, %s79
    %s101 = sphi 0, %s103
    %s104 = sphi 0, %s101
    %s105 = sphi 0, %s104
    %s121 = sphi 0, %s105
    %s127 = sphi 0, %s129
    %s130 = sphi 0, %s127
    %s131 = sphi 0, %s130
    %s147 = sphi 0, %s131
    %s153 = sphi 0, %s155
    %s156 = sphi 0, %s153
    %s157 = sphi 0, %s156
    %s173 = sphi 0, %s157
    %s179 = sphi 0, %s181
    %s182 = sphi 0, %s179
    %s183 = sphi 0, %s182
    %s199 = sphi 0, %s183
    %s205 = sphi 0, %s207
    %s208 = sphi 0, %s205
    %s209 = sphi 0, %s208
    %s225 = sphi 0, %s209
    %s231 = sphi 0, %s233
    %s234 = sphi 0, %s231
    %s235 = sphi 0, %s234
    %s251 = sphi 0, %s235
    %s257 = sphi 0, %s259
    %s260 = sphi 0, %s257
    %s261 = sphi 0, %s260
    %s277 = sphi 0, %s261
    %s283 = sphi 0, %s285
    %s286 = sphi 0, %s283
    %s287 = sphi 0, %s286
    %s303 = sphi 0, %s287
    %s307 = sphi 0, %s307
    %s309 = sphi 0, %s307
    %s310 = sphi 0, %s309
    %s324 = sphi 0, %s310
    %s328 = sphi 0, %s328
    %s330 = sphi 0, %s328
    %s331 = sphi 0, %s330
    %s345 = sphi 0, %s331
  $region4: #{model_forward.4} parent=0 // loop_header_branch
    %21 = sbr.rel (%p19) target = $region8
  $region5: #{model_forward.4} parent=0 // loop_body
    %s23 = ssub.s32 %s18, 1
    %s24 = ssub.s32 %s18, 2
    %s25 = sadd.s32 %s18, 1
    %s27 = sadd.s32 %s26, 1
    %p30 = scmp.eq.s32.totalorder %s18, 1
    %p31 = scmp.ne.s32.totalorder %s26, %s28
    %p32 = scmp.eq.s32.totalorder %s18, 0
    %p33 = por %p31, %p32
    %p34 = scmp.ne.s32.totalorder %s26, %s28
    %p35 = scmp.eq.s32.totalorder %s23, 1
    %p36 = por %p34, %p35
    %p37 = scmp.ne.s32.totalorder %s28, %s29
    %p38 = scmp.eq.s32.totalorder %s23, 0
    %p39 = por %p37, %p38
    %p40 = scmp.ne.s32.totalorder %s28, %s29
    %p41 = scmp.eq.s32.totalorder %s24, 1
    %p42 = por %p40, %p41
    %p44 = scmp.ne.s32.totalorder %s29, %s43
    %p45 = scmp.eq.s32.totalorder %s24, 0
    %p46 = por %p44, %p45
    %s47 = ssub.s32 %s18, %s25
    %p48 = scmp.eq.s32.totalorder %s47, 0
    %s50 = sadd.s32 %s49, 1
    %s51 = scalar_select %p48, %s49, %s50
    %p54 = pneg %p48
    %p55 = scmp.eq.s32.totalorder %s18, 1
    %p56 = por %p54, %p55
    %p57 = scmp.ne.s32.totalorder %s49, %s52
    %p58 = scmp.eq.s32.totalorder %s18, 0
    %p59 = por %p57, %p58
    %p60 = scmp.ne.s32.totalorder %s49, %s52
    %p61 = scmp.eq.s32.totalorder %s23, 1
    %p62 = por %p60, %p61
    %p63 = scmp.ne.s32.totalorder %s52, %s53
    %p64 = scmp.eq.s32.totalorder %s23, 0
    %p65 = por %p63, %p64
    %p66 = scmp.ne.s32.totalorder %s52, %s53
    %p67 = scmp.eq.s32.totalorder %s24, 1
    %p68 = por %p66, %p67
    %p70 = scmp.ne.s32.totalorder %s53, %s69
    %p71 = scmp.eq.s32.totalorder %s24, 0
    %p72 = por %p70, %p71
    %s73 = ssub.s32 %s18, %s25
    %p74 = scmp.eq.s32.totalorder %s73, 0
    %s76 = sadd.s32 %s75, 1
    %s77 = scalar_select %p74, %s75, %s76
    %p80 = pneg %p74
    %p81 = scmp.eq.s32.totalorder %s18, 1
    %p82 = por %p80, %p81
    %p83 = scmp.ne.s32.totalorder %s75, %s78
    %p84 = scmp.eq.s32.totalorder %s18, 0
    %p85 = por %p83, %p84
    %p86 = scmp.ne.s32.totalorder %s75, %s78
    %p87 = scmp.eq.s32.totalorder %s23, 1
    %p88 = por %p86, %p87
    %p89 = scmp.ne.s32.totalorder %s78, %s79
    %p90 = scmp.eq.s32.totalorder %s23, 0
    %p91 = por %p89, %p90
    %p92 = scmp.ne.s32.totalorder %s78, %s79
    %p93 = scmp.eq.s32.totalorder %s24, 1
    %p94 = por %p92, %p93
    %p96 = scmp.ne.s32.totalorder %s79, %s95
    %p97 = scmp.eq.s32.totalorder %s24, 0
    %p98 = por %p96, %p97
    %s99 = ssub.s32 %s18, %s25
    %p100 = scmp.eq.s32.totalorder %s99, 0
    %s102 = sadd.s32 %s101, 1
    %s103 = scalar_select %p100, %s101, %s102
    %p106 = pneg %p100
    %p107 = scmp.eq.s32.totalorder %s18, 1
    %p108 = por %p106, %p107
    %p109 = scmp.ne.s32.totalorder %s101, %s104
    %p110 = scmp.eq.s32.totalorder %s18, 0
    %p111 = por %p109, %p110
    %p112 = scmp.ne.s32.totalorder %s101, %s104
    %p113 = scmp.eq.s32.totalorder %s23, 1
    %p114 = por %p112, %p113
    %p115 = scmp.ne.s32.totalorder %s104, %s105
    %p116 = scmp.eq.s32.totalorder %s23, 0
    %p117 = por %p115, %p116
    %p118 = scmp.ne.s32.totalorder %s104, %s105
    %p119 = scmp.eq.s32.totalorder %s24, 1
    %p120 = por %p118, %p119
    %p122 = scmp.ne.s32.totalorder %s105, %s121
    %p123 = scmp.eq.s32.totalorder %s24, 0
    %p124 = por %p122, %p123
    %s125 = ssub.s32 %s18, %s25
    %p126 = scmp.eq.s32.totalorder %s125, 0
    %s128 = sadd.s32 %s127, 1
    %s129 = scalar_select %p126, %s127, %s128
    %p132 = pneg %p126
    %p133 = scmp.eq.s32.totalorder %s18, 1
    %p134 = por %p132, %p133
    %p135 = scmp.ne.s32.totalorder %s127, %s130
    %p136 = scmp.eq.s32.totalorder %s18, 0
    %p137 = por %p135, %p136
    %p138 = scmp.ne.s32.totalorder %s127, %s130
    %p139 = scmp.eq.s32.totalorder %s23, 1
    %p140 = por %p138, %p139
    %p141 = scmp.ne.s32.totalorder %s130, %s131
    %p142 = scmp.eq.s32.totalorder %s23, 0
    %p143 = por %p141, %p142
    %p144 = scmp.ne.s32.totalorder %s130, %s131
    %p145 = scmp.eq.s32.totalorder %s24, 1
    %p146 = por %p144, %p145
    %p148 = scmp.ne.s32.totalorder %s131, %s147
    %p149 = scmp.eq.s32.totalorder %s24, 0
    %p150 = por %p148, %p149
    %s151 = ssub.s32 %s18, %s25
    %p152 = scmp.eq.s32.totalorder %s151, 0
    %s154 = sadd.s32 %s153, 1
    %s155 = scalar_select %p152, %s153, %s154
    %p158 = pneg %p152
    %p159 = scmp.eq.s32.totalorder %s18, 1
    %p160 = por %p158, %p159
    %p161 = scmp.ne.s32.totalorder %s153, %s156
    %p162 = scmp.eq.s32.totalorder %s18, 0
    %p163 = por %p161, %p162
    %p164 = scmp.ne.s32.totalorder %s153, %s156
    %p165 = scmp.eq.s32.totalorder %s23, 1
    %p166 = por %p164, %p165
    %p167 = scmp.ne.s32.totalorder %s156, %s157
    %p168 = scmp.eq.s32.totalorder %s23, 0
    %p169 = por %p167, %p168
    %p170 = scmp.ne.s32.totalorder %s156, %s157
    %p171 = scmp.eq.s32.totalorder %s24, 1
    %p172 = por %p170, %p171
    %p174 = scmp.ne.s32.totalorder %s157, %s173
    %p175 = scmp.eq.s32.totalorder %s24, 0
    %p176 = por %p174, %p175
    %s177 = ssub.s32 %s18, %s25
    %p178 = scmp.eq.s32.totalorder %s177, 0
    %s180 = sadd.s32 %s179, 1
    %s181 = scalar_select %p178, %s179, %s180
    %p184 = pneg %p178
    %p185 = scmp.eq.s32.totalorder %s18, 1
    %p186 = por %p184, %p185
    %p187 = scmp.ne.s32.totalorder %s179, %s182
    %p188 = scmp.eq.s32.totalorder %s18, 0
    %p189 = por %p187, %p188
    %p190 = scmp.ne.s32.totalorder %s179, %s182
    %p191 = scmp.eq.s32.totalorder %s23, 1
    %p192 = por %p190, %p191
    %p193 = scmp.ne.s32.totalorder %s182, %s183
    %p194 = scmp.eq.s32.totalorder %s23, 0
    %p195 = por %p193, %p194
    %p196 = scmp.ne.s32.totalorder %s182, %s183
    %p197 = scmp.eq.s32.totalorder %s24, 1
    %p198 = por %p196, %p197
    %p200 = scmp.ne.s32.totalorder %s183, %s199
    %p201 = scmp.eq.s32.totalorder %s24, 0
    %p202 = por %p200, %p201
    %s203 = ssub.s32 %s18, %s25
    %p204 = scmp.eq.s32.totalorder %s203, 0
    %s206 = sadd.s32 %s205, 1
    %s207 = scalar_select %p204, %s205, %s206
    %p210 = pneg %p204
    %p211 = scmp.eq.s32.totalorder %s18, 1
    %p212 = por %p210, %p211
    %p213 = scmp.ne.s32.totalorder %s205, %s208
    %p214 = scmp.eq.s32.totalorder %s18, 0
    %p215 = por %p213, %p214
    %p216 = scmp.ne.s32.totalorder %s205, %s208
    %p217 = scmp.eq.s32.totalorder %s23, 1
    %p218 = por %p216, %p217
    %p219 = scmp.ne.s32.totalorder %s208, %s209
    %p220 = scmp.eq.s32.totalorder %s23, 0
    %p221 = por %p219, %p220
    %p222 = scmp.ne.s32.totalorder %s208, %s209
    %p223 = scmp.eq.s32.totalorder %s24, 1
    %p224 = por %p222, %p223
    %p226 = scmp.ne.s32.totalorder %s209, %s225
    %p227 = scmp.eq.s32.totalorder %s24, 0
    %p228 = por %p226, %p227
    %s229 = ssub.s32 %s18, %s25
    %p230 = scmp.eq.s32.totalorder %s229, 0
    %s232 = sadd.s32 %s231, 1
    %s233 = scalar_select %p230, %s231, %s232
    %p236 = pneg %p230
    %p237 = scmp.eq.s32.totalorder %s18, 1
    %p238 = por %p236, %p237
    %p239 = scmp.ne.s32.totalorder %s231, %s234
    %p240 = scmp.eq.s32.totalorder %s18, 0
    %p241 = por %p239, %p240
    %p242 = scmp.ne.s32.totalorder %s231, %s234
    %p243 = scmp.eq.s32.totalorder %s23, 1
    %p244 = por %p242, %p243
    %p245 = scmp.ne.s32.totalorder %s234, %s235
    %p246 = scmp.eq.s32.totalorder %s23, 0
    %p247 = por %p245, %p246
    %p248 = scmp.ne.s32.totalorder %s234, %s235
    %p249 = scmp.eq.s32.totalorder %s24, 1
    %p250 = por %p248, %p249
    %p252 = scmp.ne.s32.totalorder %s235, %s251
    %p253 = scmp.eq.s32.totalorder %s24, 0
    %p254 = por %p252, %p253
    %s255 = ssub.s32 %s18, %s25
    %p256 = scmp.eq.s32.totalorder %s255, 0
    %s258 = sadd.s32 %s257, 1
    %s259 = scalar_select %p256, %s257, %s258
    %p262 = pneg %p256
    %p263 = scmp.eq.s32.totalorder %s18, 1
    %p264 = por %p262, %p263
    %p265 = scmp.ne.s32.totalorder %s257, %s260
    %p266 = scmp.eq.s32.totalorder %s18, 0
    %p267 = por %p265, %p266
    %p268 = scmp.ne.s32.totalorder %s257, %s260
    %p269 = scmp.eq.s32.totalorder %s23, 1
    %p270 = por %p268, %p269
    %p271 = scmp.ne.s32.totalorder %s260, %s261
    %p272 = scmp.eq.s32.totalorder %s23, 0
    %p273 = por %p271, %p272
    %p274 = scmp.ne.s32.totalorder %s260, %s261
    %p275 = scmp.eq.s32.totalorder %s24, 1
    %p276 = por %p274, %p275
    %p278 = scmp.ne.s32.totalorder %s261, %s277
    %p279 = scmp.eq.s32.totalorder %s24, 0
    %p280 = por %p278, %p279
    %s281 = ssub.s32 %s18, %s25
    %p282 = scmp.eq.s32.totalorder %s281, 0
    %s284 = sadd.s32 %s283, 1
    %s285 = scalar_select %p282, %s283, %s284
    %p288 = pneg %p282
    %p289 = scmp.eq.s32.totalorder %s18, 1
    %p290 = por %p288, %p289
    %p291 = scmp.ne.s32.totalorder %s283, %s286
    %p292 = scmp.eq.s32.totalorder %s18, 0
    %p293 = por %p291, %p292
    %p294 = scmp.ne.s32.totalorder %s283, %s286
    %p295 = scmp.eq.s32.totalorder %s23, 1
    %p296 = por %p294, %p295
    %p297 = scmp.ne.s32.totalorder %s286, %s287
    %p298 = scmp.eq.s32.totalorder %s23, 0
    %p299 = por %p297, %p298
    %p300 = scmp.ne.s32.totalorder %s286, %s287
    %p301 = scmp.eq.s32.totalorder %s24, 1
    %p302 = por %p300, %p301
    %p304 = scmp.ne.s32.totalorder %s287, %s303
    %p305 = scmp.eq.s32.totalorder %s24, 0
    %p306 = por %p304, %p305
    %s308 = sadd.s32 %s307, 1
    %p311 = scmp.eq.s32.totalorder %s18, 1
    %p312 = scmp.ne.s32.totalorder %s307, %s309
    %p313 = scmp.eq.s32.totalorder %s18, 0
    %p314 = por %p312, %p313
    %p315 = scmp.ne.s32.totalorder %s307, %s309
    %p316 = scmp.eq.s32.totalorder %s23, 1
    %p317 = por %p315, %p316
    %p318 = scmp.ne.s32.totalorder %s309, %s310
    %p319 = scmp.eq.s32.totalorder %s23, 0
    %p320 = por %p318, %p319
    %p321 = scmp.ne.s32.totalorder %s309, %s310
    %p322 = scmp.eq.s32.totalorder %s24, 1
    %p323 = por %p321, %p322
    %p325 = scmp.ne.s32.totalorder %s310, %s324
    %p326 = scmp.eq.s32.totalorder %s24, 0
    %p327 = por %p325, %p326
    %s329 = sadd.s32 %s328, 1
    %p332 = scmp.eq.s32.totalorder %s18, 1
    %p333 = scmp.ne.s32.totalorder %s328, %s330
    %p334 = scmp.eq.s32.totalorder %s18, 0
    %p335 = por %p333, %p334
    %p336 = scmp.ne.s32.totalorder %s328, %s330
    %p337 = scmp.eq.s32.totalorder %s23, 1
    %p338 = por %p336, %p337
    %p339 = scmp.ne.s32.totalorder %s330, %s331
    %p340 = scmp.eq.s32.totalorder %s23, 0
    %p341 = por %p339, %p340
    %p342 = scmp.ne.s32.totalorder %s330, %s331
    %p343 = scmp.eq.s32.totalorder %s24, 1
    %p344 = por %p342, %p343
    %p346 = scmp.ne.s32.totalorder %s331, %s345
    %p347 = scmp.eq.s32.totalorder %s24, 0
    %p348 = por %p346, %p347
    %p349 = scmp.le.s32.totalorder 1, %s18
    %p350 = scmp.lt.s32.totalorder %s18, 3
    %p351 = pnand %p349, %p350
    %p352 = pneg %p351
    // Predicated region
    $region9: #{model_forward.4} parent=5 // pred_check
      _
    $region10: #{model_forward.4} parent=5 // pred_check_branch
      %354 = sbr.rel (%p351) target = $region12
    $region11: #{model_forward.4} parent=5 // pred_region
      %s355 = ssub.s32 %s18, 1
      // Predicated region
      $region13: #{model_forward.4} parent=11 // pred_check
        %p356 = pneg %p39
      $region14: #{model_forward.4} parent=11 // pred_check_branch
        %358 = sbr.rel (%p356) target = $region16
      $region15: #{model_forward.4} parent=11 // pred_region
        _
      $region16: #{model_forward.4} parent=11 // pred_fallthru
        _
      // Predicated region
      $region17: #{model_forward.4} parent=11 // pred_check
        %p359 = pneg %p320
      $region18: #{model_forward.4} parent=11 // pred_check_branch
        %361 = sbr.rel (%p359) target = $region20
      $region19: #{model_forward.4} parent=11 // pred_region
        _
      $region20: #{model_forward.4} parent=11 // pred_fallthru
        _
    $region12: #{model_forward.4} parent=5 // pred_fallthru
      _
    %p362 = scmp.lt.s32.totalorder %s18, 2
    // Predicated region
    $region21: #{model_forward.4} parent=5 // pred_check
      %p363 = pneg %p362
    $region22: #{model_forward.4} parent=5 // pred_check_branch
      %365 = sbr.rel (%p363) target = $region24
    $region23: #{model_forward.4} parent=5 // pred_region
      // Predicated region
      $region25: #{model_forward.4} parent=23 // pred_check
        %p366 = pneg %p59
      $region26: #{model_forward.4} parent=23 // pred_check_branch
        %368 = sbr.rel (%p366) target = $region28
      $region27: #{model_forward.4} parent=23 // pred_region
        %p369 = scmp.lt.s32.totalorder %s18, 1
        %s370 = scalar_select %p369, %s18, 1
        %s371 = smul.addr %s370, 4
        %s372 = smul.addr %s371, 8
        %s373 = scalar_lea.vmem %s1, %s372
      $region28: #{model_forward.4} parent=23 // pred_fallthru
        _
      // Predicated region
      $region29: #{model_forward.4} parent=23 // pred_check
        %p374 = pneg %p85
      $region30: #{model_forward.4} parent=23 // pred_check_branch
        %376 = sbr.rel (%p374) target = $region32
      $region31: #{model_forward.4} parent=23 // pred_region
        %p377 = scmp.lt.s32.totalorder %s18, 1
        %s378 = scalar_select %p377, %s18, 1
        %s379 = scalar_lea.vmem %s2, %s378
      $region32: #{model_forward.4} parent=23 // pred_fallthru
        _
      // Predicated region
      $region33: #{model_forward.4} parent=23 // pred_check
        %p380 = pneg %p111
      $region34: #{model_forward.4} parent=23 // pred_check_branch
        %382 = sbr.rel (%p380) target = $region36
      $region35: #{model_forward.4} parent=23 // pred_region
        %p383 = scmp.lt.s32.totalorder %s18, 1
        %s384 = scalar_select %p383, %s18, 1
        %s385 = smul.addr %s384, 4
        %s386 = smul.addr %s385, 8
        %s387 = scalar_lea.vmem %s3, %s386
      $region36: #{model_forward.4} parent=23 // pred_fallthru
        _
      // Predicated region
      $region37: #{model_forward.4} parent=23 // pred_check
        %p388 = pneg %p137
      $region38: #{model_forward.4} parent=23 // pred_check_branch
        %390 = sbr.rel (%p388) target = $region40
      $region39: #{model_forward.4} parent=23 // pred_region
        %p391 = scmp.lt.s32.totalorder %s18, 1
        %s392 = scalar_select %p391, %s18, 1
        %s393 = scalar_lea.vmem %s4, %s392
      $region40: #{model_forward.4} parent=23 // pred_fallthru
        _
      // Predicated region
      $region41: #{model_forward.4} parent=23 // pred_check
        %p394 = pneg %p163
      $region42: #{model_forward.4} parent=23 // pred_check_branch
        %396 = sbr.rel (%p394) target = $region44
      $region43: #{model_forward.4} parent=23 // pred_region
        %p397 = scmp.lt.s32.totalorder %s18, 1
        %s398 = scalar_select %p397, %s18, 1
        %s399 = smul.addr %s398, 2
        %s400 = scalar_lea.vmem %s5, %s399
      $region44: #{model_forward.4} parent=23 // pred_fallthru
        _
      // Predicated region
      $region45: #{model_forward.4} parent=23 // pred_check
        %p401 = pneg %p189
      $region46: #{model_forward.4} parent=23 // pred_check_branch
        %403 = sbr.rel (%p401) target = $region48
      $region47: #{model_forward.4} parent=23 // pred_region
        %p404 = scmp.lt.s32.totalorder %s18, 1
        %s405 = scalar_select %p404, %s18, 1
        %s406 = smul.addr %s405, 2
        %s407 = scalar_lea.vmem %s6, %s406
      $region48: #{model_forward.4} parent=23 // pred_fallthru
        _
      // Predicated region
      $region49: #{model_forward.4} parent=23 // pred_check
        %p408 = pneg %p215
      $region50: #{model_forward.4} parent=23 // pred_check_branch
        %410 = sbr.rel (%p408) target = $region52
      $region51: #{model_forward.4} parent=23 // pred_region
        %p411 = scmp.lt.s32.totalorder %s18, 1
        %s412 = scalar_select %p411, %s18, 1
        %s413 = smul.addr %s412, 8
        %s414 = smul.addr %s413, 8
        %s415 = scalar_lea.vmem %s7, %s414
      $region52: #{model_forward.4} parent=23 // pred_fallthru
        _
      // Predicated region
      $region53: #{model_forward.4} parent=23 // pred_check
        %p416 = pneg %p241
      $region54: #{model_forward.4} parent=23 // pred_check_branch
        %418 = sbr.rel (%p416) target = $region56
      $region55: #{model_forward.4} parent=23 // pred_region
        %p419 = scmp.lt.s32.totalorder %s18, 1
        %s420 = scalar_select %p419, %s18, 1
        %s421 = smul.addr %s420, 2
        %s422 = scalar_lea.vmem %s8, %s421
      $region56: #{model_forward.4} parent=23 // pred_fallthru
        _
      // Predicated region
      $region57: #{model_forward.4} parent=23 // pred_check
        %p423 = pneg %p267
      $region58: #{model_forward.4} parent=23 // pred_check_branch
        %425 = sbr.rel (%p423) target = $region60
      $region59: #{model_forward.4} parent=23 // pred_region
        %p426 = scmp.lt.s32.totalorder %s18, 1
        %s427 = scalar_select %p426, %s18, 1
        %s428 = smul.addr %s427, 32
        %s429 = smul.addr %s428, 8
        %s430 = scalar_lea.vmem %s9, %s429
      $region60: #{model_forward.4} parent=23 // pred_fallthru
        _
      // Predicated region
      $region61: #{model_forward.4} parent=23 // pred_check
        %p431 = pneg %p293
      $region62: #{model_forward.4} parent=23 // pred_check_branch
        %433 = sbr.rel (%p431) target = $region64
      $region63: #{model_forward.4} parent=23 // pred_region
        %p434 = scmp.lt.s32.totalorder %s18, 1
        %s435 = scalar_select %p434, %s18, 1
        %s436 = scalar_lea.vmem %s10, %s435
      $region64: #{model_forward.4} parent=23 // pred_fallthru
        _
    $region24: #{model_forward.4} parent=5 // pred_fallthru
      _
    %p437 = scmp.le.s32.totalorder 1, %s18
    %p438 = scmp.lt.s32.totalorder %s18, 3
    %p439 = pnand %p437, %p438
    %p440 = pneg %p439
    // Predicated region
    $region65: #{model_forward.4} parent=5 // pred_check
      _
    $region66: #{model_forward.4} parent=5 // pred_check_branch
      %442 = sbr.rel (%p439) target = $region68
    $region67: #{model_forward.4} parent=5 // pred_region
      %s443 = ssub.s32 %s18, 1
      %p444 = pneg %p39
      %p445 = pneg %p36
      %p446 = scmp.lt.s32.totalorder %s23, 1
      %s447 = scalar_select %p446, %s23, 1
      %s448 = smul.addr %s447, 4
      %s449 = smul.addr %s448, 8
      %s450 = scalar_lea.vmem %s1, %s449
      %p451 = pneg %p65
      %p452 = pneg %p62
      %p453 = scmp.lt.s32.totalorder %s23, 1
      %s454 = scalar_select %p453, %s23, 1
      %s455 = scalar_lea.vmem %s2, %s454
      %p456 = pneg %p91
      %p457 = pneg %p88
      %p458 = scmp.lt.s32.totalorder %s23, 1
      %s459 = scalar_select %p458, %s23, 1
      %s460 = smul.addr %s459, 4
      %s461 = smul.addr %s460, 8
      %s462 = scalar_lea.vmem %s3, %s461
      %p463 = pneg %p117
      %p464 = pneg %p114
      %p465 = scmp.lt.s32.totalorder %s23, 1
      %s466 = scalar_select %p465, %s23, 1
      %s467 = scalar_lea.vmem %s4, %s466
      %p468 = pneg %p143
      %p469 = pneg %p140
      %p470 = scmp.lt.s32.totalorder %s23, 1
      %s471 = scalar_select %p470, %s23, 1
      %s472 = smul.addr %s471, 2
      %s473 = scalar_lea.vmem %s5, %s472
      %p474 = pneg %p169
      %p475 = pneg %p166
      %p476 = scmp.lt.s32.totalorder %s23, 1
      %s477 = scalar_select %p476, %s23, 1
      %s478 = smul.addr %s477, 2
      %s479 = scalar_lea.vmem %s6, %s478
      %p480 = pneg %p195
      %p481 = pneg %p192
      %p482 = scmp.lt.s32.totalorder %s23, 1
      %s483 = scalar_select %p482, %s23, 1
      %s484 = smul.addr %s483, 8
      %s485 = smul.addr %s484, 8
      %s486 = scalar_lea.vmem %s7, %s485
      %p487 = pneg %p221
      %p488 = pneg %p218
      %p489 = scmp.lt.s32.totalorder %s23, 1
      %s490 = scalar_select %p489, %s23, 1
      %s491 = smul.addr %s490, 2
      %s492 = scalar_lea.vmem %s8, %s491
      %p493 = pneg %p247
      %p494 = pneg %p244
      %p495 = scmp.lt.s32.totalorder %s23, 1
      %s496 = scalar_select %p495, %s23, 1
      %s497 = smul.addr %s496, 32
      %s498 = smul.addr %s497, 8
      %s499 = scalar_lea.vmem %s9, %s498
      %p500 = pneg %p273
      %p501 = pneg %p270
      %p502 = scmp.lt.s32.totalorder %s23, 1
      %s503 = scalar_select %p502, %s23, 1
      %s504 = scalar_lea.vmem %s10, %s503
      %p505 = pneg %p299
      %p506 = pneg %p296
      %p507 = pneg %p320
      %p508 = pneg %p317
      %p509 = pneg %p341
      %p510 = pneg %p338
      %p511 = scmp.lt.s32.totalorder %s23, 1
      %s512 = scalar_select %p511, %s23, 1
      %s513 = smul.addr %s512, 4
      %s514 = smul.addr %s513, 8
      %s515 = scalar_lea.vmem %s1, %s514
      %p516 = scmp.lt.s32.totalorder %s23, 1
      %s517 = scalar_select %p516, %s23, 1
      %s518 = scalar_lea.vmem %s2, %s517
      %p519 = scmp.lt.s32.totalorder %s23, 1
      %s520 = scalar_select %p519, %s23, 1
      %s521 = smul.addr %s520, 4
      %s522 = smul.addr %s521, 8
      %s523 = scalar_lea.vmem %s3, %s522
      %p524 = scmp.lt.s32.totalorder %s23, 1
      %s525 = scalar_select %p524, %s23, 1
      %s526 = scalar_lea.vmem %s4, %s525
      %p527 = scmp.lt.s32.totalorder %s23, 1
      %s528 = scalar_select %p527, %s23, 1
      %s529 = smul.addr %s528, 2
      %s530 = scalar_lea.vmem %s5, %s529
      %p531 = scmp.lt.s32.totalorder %s23, 1
      %s532 = scalar_select %p531, %s23, 1
      %s533 = smul.addr %s532, 2
      %s534 = scalar_lea.vmem %s6, %s533
      %p535 = scmp.lt.s32.totalorder %s23, 1
      %s536 = scalar_select %p535, %s23, 1
      %s537 = smul.addr %s536, 8
      %s538 = smul.addr %s537, 8
      %s539 = scalar_lea.vmem %s7, %s538
      %p540 = scmp.lt.s32.totalorder %s23, 1
      %s541 = scalar_select %p540, %s23, 1
      %s542 = smul.addr %s541, 2
      %s543 = scalar_lea.vmem %s8, %s542
      %p544 = scmp.lt.s32.totalorder %s23, 1
      %s545 = scalar_select %p544, %s23, 1
      %s546 = smul.addr %s545, 32
      %s547 = smul.addr %s546, 8
      %s548 = scalar_lea.vmem %s9, %s547
      %p549 = scmp.lt.s32.totalorder %s23, 1
      %s550 = scalar_select %p549, %s23, 1
      %s551 = scalar_lea.vmem %s10, %s550
      %p552 = scmp.eq.s32.totalorder %s23, 0
      // Predicated region
      $region69: #{model_forward.4} parent=67 // pred_check
        %p553 = pneg %p552
      $region70: #{model_forward.4} parent=67 // pred_check_branch
        %555 = sbr.rel (%p553) target = $region72
      $region71: #{model_forward.4} parent=67 // pred_region
        %v556 = vld [vmem:[%s0] sm:$0xff]
        %v557 = vld [vmem:[%s0 + $0x8] sm:$0xff]
        %vm558 = vcmask 261120
        %559 = vst.msk [vmem:[%s12] sm:$0xff] %vm558, %v556
        %560 = vst.msk [vmem:[%s12 + $0x8] sm:$0xff] %vm558, %v557
      $region72: #{model_forward.4} parent=67 // pred_fallthru
        _
      %v561 = vld [vmem:[%s12] sm:$0xff]
      %v562 = vld [vmem:[%s12 + $0x8] sm:$0xff]
      %v563 = vld [vmem:[%s515] sm:$0xff]
      %v564 = vld [vmem:[%s515 + $0x8] sm:$0xff]
      %v565 = vld [vmem:[%s515 + $0x10] sm:$0xff]
      %v566 = vld [vmem:[%s515 + $0x18] sm:$0xff]
      %v567 = vld [vmem:[%s518] sm:$0x1]
      %v569 = vlaneseq
      %v570 = vshrl.u32 %v569, 7
      %v571 = vsub.s32 0, %v570
      %v572 = vrot.slane %v567, %v571
      %vm574 = vcmask 261120
      %v576 = vsel %vm574, %v561, 0
      %v579 = vsel %vm574, %v562, 0
      %581 = vmatprep.subr.mxu0 0.0
      %582 = vmatpush1.msra.mxu0 %v563
      %583 = vmatprep.subr.mxu0 0.0
      %584 = vmatpush1.msra.mxu0 %v564
      %585 = vmatprep.subr.mxu0 0.0
      %586 = vmatpush1.msra.mxu0 %v565
      %587 = vmatprep.subr.mxu0 0.0
      %588 = vmatpush1.msra.mxu0 %v566
      %589 = vmatprep.subr.mxu0 0.0
      %590 = vmatpush1.msra.mxu0 0.0
      %591 = vmatprep.subr.mxu0 0.0
      %592 = vmatpush1.msra.mxu0 0.0
      %593 = vmatprep.subr.mxu0 0.0
      %594 = vmatpush1.msra.mxu0 0.0
      %595 = vmatprep.subr.mxu0 0.0
      %596 = vmatpush1.msra.mxu0 0.0
      %597 = vmatprep.subr.mxu0 0.0
      %598 = vmatpush1.msra.mxu0 0.0
      %599 = vmatprep.subr.mxu0 0.0
      %600 = vmatpush1.msra.mxu0 0.0
      %601 = vmatprep.subr.mxu0 0.0
      %602 = vmatpush1.msra.mxu0 0.0
      %603 = vmatprep.subr.mxu0 0.0
      %604 = vmatpush1.msra.mxu0 0.0
      %605 = vmatprep.subr.mxu0 0.0
      %606 = vmatpush1.msra.mxu0 0.0
      %607 = vmatprep.subr.mxu0 0.0
      %608 = vmatpush1.msra.mxu0 0.0
      %609 = vmatprep.subr.mxu0 0.0
      %610 = vmatpush1.msra.mxu0 0.0
      %611 = vmatprep.subr.mxu0 0.0
      %612 = vmatpush1.msra.mxu0 0.0
      %613 = vmatprep.subr.mxu0 0.0
      %614 = vmatpush1.msra.mxu0 0.0
      %615 = vmatprep.subr.mxu0 0.0
      %616 = vmatpush1.msra.mxu0 0.0
      %617 = vmatprep.subr.mxu0 0.0
      %618 = vmatpush1.msra.mxu0 0.0
      %619 = vmatprep.subr.mxu0 0.0
      %620 = vmatpush1.msra.mxu0 0.0
      %621 = vmatprep.subr.mxu0 0.0
      %622 = vmatpush1.msra.mxu0 0.0
      %623 = vmatprep.subr.mxu0 0.0
      %624 = vmatpush1.msra.mxu0 0.0
      %625 = vmatprep.subr.mxu0 0.0
      %626 = vmatpush1.msra.mxu0 0.0
      %627 = vmatprep.subr.mxu0 0.0
      %628 = vmatpush1.msra.mxu0 0.0
      %629 = vmatprep.subr.mxu0 0.0
      %630 = vmatpush1.msra.mxu0 0.0
      %631 = vmatprep.subr.mxu0 0.0
      %632 = vmatpush1.msra.mxu0 0.0
      %633 = vmatprep.subr.mxu0 0.0
      %634 = vmatpush1.msra.mxu0 0.0
      %635 = vmatprep.subr.mxu0 0.0
      %636 = vmatpush1.msra.mxu0 0.0
      %637 = vmatprep.subr.mxu0 0.0
      %638 = vmatpush1.msra.mxu0 0.0
      %639 = vmatprep.subr.mxu0 0.0
      %640 = vmatpush1.msra.mxu0 0.0
      %641 = vmatprep.subr.mxu0 0.0
      %642 = vmatpush1.msra.mxu0 0.0
      %643 = vmatprep.subr.mxu0 0.0
      %644 = vmatpush1.msra.mxu0 0.0
      %645 = vmatprep.mubr.f32.mxu0 0.0
      %646 = vmatmul.mubr.f32.gmra.mrb[0].mxu0 %v576
      %v647 = vpop.f32.mrb[0].mxu0
      %v648 = vadd.f32 %v572, %v647
      %v649 = vpop.f32.mrb[0].mxu0
      %650 = vmatprep.mubr.f32.mxu0 0.0
      %651 = vmatmul.mubr.f32.gmra.mrb[0].mxu0 %v579
      %v652 = vpop.f32.mrb[0].mxu0
      %v653 = vadd.f32 %v572, %v652
      %v654 = vpop.f32.mrb[0].mxu0
      %655 = vdwg.mxu0
      %657 = vrot.lane.b32.xlu0 %v648, 96
      %v658 = vpop.permute.xlu0 %657
      %v659 = vsel %vm574, %v648, 0
      %v661 = vsel %vm574, %v658, 0
      %663 = vmatprep.subr.mxu0 0.0
      %664 = vmatpush1.xpose.msra.mxu0 %v661
      %665 = vmatprep.subr.mxu0 0.0
      %666 = vmatpush1.xpose.msra.mxu0 0.0
      %667 = vmatprep.subr.mxu0 0.0
      %668 = vmatpush1.xpose.msra.mxu0 0.0
      %669 = vmatprep.subr.mxu0 0.0
      %670 = vmatpush1.xpose.msra.mxu0 0.0
      %671 = vmatprep.subr.mxu0 0.0
      %672 = vmatpush1.xpose.msra.mxu0 0.0
      %673 = vmatprep.subr.mxu0 0.0
      %674 = vmatpush1.xpose.msra.mxu0 0.0
      %675 = vmatprep.subr.mxu0 0.0
      %676 = vmatpush1.xpose.msra.mxu0 0.0
      %677 = vmatprep.subr.mxu0 0.0
      %678 = vmatpush1.xpose.msra.mxu0 0.0
      %679 = vmatprep.subr.mxu0 0.0
      %680 = vmatpush1.xpose.msra.mxu0 0.0
      %681 = vmatprep.subr.mxu0 0.0
      %682 = vmatpush1.xpose.msra.mxu0 0.0
      %683 = vmatprep.subr.mxu0 0.0
      %684 = vmatpush1.xpose.msra.mxu0 0.0
      %685 = vmatprep.subr.mxu0 0.0
      %686 = vmatpush1.xpose.msra.mxu0 0.0
      %687 = vmatprep.subr.mxu0 0.0
      %688 = vmatpush1.xpose.msra.mxu0 0.0
      %689 = vmatprep.subr.mxu0 0.0
      %690 = vmatpush1.xpose.msra.mxu0 0.0
      %691 = vmatprep.subr.mxu0 0.0
      %692 = vmatpush1.xpose.msra.mxu0 0.0
      %693 = vmatprep.subr.mxu0 0.0
      %694 = vmatpush1.xpose.msra.mxu0 0.0
      %695 = vmatprep.subr.mxu0 0.0
      %696 = vmatpush1.xpose.msra.mxu0 0.0
      %697 = vmatprep.subr.mxu0 0.0
      %698 = vmatpush1.xpose.msra.mxu0 0.0
      %699 = vmatprep.subr.mxu0 0.0
      %700 = vmatpush1.xpose.msra.mxu0 0.0
      %701 = vmatprep.subr.mxu0 0.0
      %702 = vmatpush1.xpose.msra.mxu0 0.0
      %703 = vmatprep.subr.mxu0 0.0
      %704 = vmatpush1.xpose.msra.mxu0 0.0
      %705 = vmatprep.subr.mxu0 0.0
      %706 = vmatpush1.xpose.msra.mxu0 0.0
      %707 = vmatprep.subr.mxu0 0.0
      %708 = vmatpush1.xpose.msra.mxu0 0.0
      %709 = vmatprep.subr.mxu0 0.0
      %710 = vmatpush1.xpose.msra.mxu0 0.0
      %711 = vmatprep.subr.mxu0 0.0
      %712 = vmatpush1.xpose.msra.mxu0 0.0
      %713 = vmatprep.subr.mxu0 0.0
      %714 = vmatpush1.xpose.msra.mxu0 0.0
      %715 = vmatprep.subr.mxu0 0.0
      %716 = vmatpush1.xpose.msra.mxu0 0.0
      %717 = vmatprep.subr.mxu0 0.0
      %718 = vmatpush1.xpose.msra.mxu0 0.0
      %719 = vmatprep.subr.mxu0 0.0
      %720 = vmatpush1.xpose.msra.mxu0 0.0
      %721 = vmatprep.subr.mxu0 0.0
      %722 = vmatpush1.xpose.msra.mxu0 0.0
      %723 = vmatprep.subr.mxu0 0.0
      %724 = vmatpush1.xpose.msra.mxu0 0.0
      %725 = vmatprep.subr.mxu0 0.0
      %726 = vmatpush1.xpose.msra.mxu0 0.0
      %727 = vmatprep.mubr.f32.mxu0 0.0
      %728 = vmatmul.mubr.f32.gmra.mrb[0].mxu0 %v659
      %v729 = vpop.f32.mrb[0].mxu0
      %v730 = vadd.f32 0.0, %v729
      %v731 = vpop.f32.mrb[0].mxu0
      %732 = vdwg.mxu0
      %v733 = vmul.f32 %v730, 0.17677669
      %vm734 = vcmask 64512
      %v735 = vsel %vm734, %v733, -inf
      %736 = vmax.xlane.f32.xlu0 %v735
      %v737 = vpop.xlane.xlu0 %736
      %v738 = vsub.f32 %v733, %v737
      %v739 = vmul.f32 %v738, 1.442695
      %v740 = vpow.pop %v739
      %v741 = vsel %vm734, %v740, 0.0
      %742 = vadd.xlane.f32.xlu0 %v741
      %v743 = vpop.xlane.xlu0 %742
      %v744 = vrcp.pop %v743
      %v745 = vmul.f32 %v740, %v744
      %746 = vrot.lane.b32.xlu0 %v648, 64
      %v747 = vpop.permute.xlu0 %746
      %v750 = vsel %vm734, %v745, 0
      %752 = vmatprep.subr.mxu0 0.0
      %753 = vmatpush1.msra.mxu0 %v747
      %754 = vmatprep.subr.mxu0 0.0
      %755 = vmatpush1.msra.mxu0 0.0
      %756 = vmatprep.subr.mxu0 0.0
      %757 = vmatpush1.msra.mxu0 0.0
      %758 = vmatprep.subr.mxu0 0.0
      %759 = vmatpush1.msra.mxu0 0.0
      %760 = vmatprep.subr.mxu0 0.0
      %761 = vmatpush1.msra.mxu0 0.0
      %762 = vmatprep.subr.mxu0 0.0
      %763 = vmatpush1.msra.mxu0 0.0
      %764 = vmatprep.subr.mxu0 0.0
      %765 = vmatpush1.msra.mxu0 0.0
      %766 = vmatprep.subr.mxu0 0.0
      %767 = vmatpush1.msra.mxu0 0.0
      %768 = vmatprep.subr.mxu0 0.0
      %769 = vmatpush1.msra.mxu0 0.0
      %770 = vmatprep.subr.mxu0 0.0
      %771 = vmatpush1.msra.mxu0 0.0
      %772 = vmatprep.subr.mxu0 0.0
      %773 = vmatpush1.msra.mxu0 0.0
      %774 = vmatprep.subr.mxu0 0.0
      %775 = vmatpush1.msra.mxu0 0.0
      %776 = vmatprep.subr.mxu0 0.0
      %777 = vmatpush1.msra.mxu0 0.0
      %778 = vmatprep.subr.mxu0 0.0
      %779 = vmatpush1.msra.mxu0 0.0
      %780 = vmatprep.subr.mxu0 0.0
      %781 = vmatpush1.msra.mxu0 0.0
      %782 = vmatprep.subr.mxu0 0.0
      %783 = vmatpush1.msra.mxu0 0.0
      %784 = vmatprep.subr.mxu0 0.0
      %785 = vmatpush1.msra.mxu0 0.0
      %786 = vmatprep.subr.mxu0 0.0
      %787 = vmatpush1.msra.mxu0 0.0
      %788 = vmatprep.subr.mxu0 0.0
      %789 = vmatpush1.msra.mxu0 0.0
      %790 = vmatprep.subr.mxu0 0.0
      %791 = vmatpush1.msra.mxu0 0.0
      %792 = vmatprep.subr.mxu0 0.0
      %793 = vmatpush1.msra.mxu0 0.0
      %794 = vmatprep.subr.mxu0 0.0
      %795 = vmatpush1.msra.mxu0 0.0
      %796 = vmatprep.subr.mxu0 0.0
      %797 = vmatpush1.msra.mxu0 0.0
      %798 = vmatprep.subr.mxu0 0.0
      %799 = vmatpush1.msra.mxu0 0.0
      %800 = vmatprep.subr.mxu0 0.0
      %801 = vmatpush1.msra.mxu0 0.0
      %802 = vmatprep.subr.mxu0 0.0
      %803 = vmatpush1.msra.mxu0 0.0
      %804 = vmatprep.subr.mxu0 0.0
      %805 = vmatpush1.msra.mxu0 0.0
      %806 = vmatprep.subr.mxu0 0.0
      %807 = vmatpush1.msra.mxu0 0.0
      %808 = vmatprep.subr.mxu0 0.0
      %809 = vmatpush1.msra.mxu0 0.0
      %810 = vmatprep.subr.mxu0 0.0
      %811 = vmatpush1.msra.mxu0 0.0
      %812 = vmatprep.subr.mxu0 0.0
      %813 = vmatpush1.msra.mxu0 0.0
      %814 = vmatprep.subr.mxu0 0.0
      %815 = vmatpush1.msra.mxu0 0.0
      %816 = vmatprep.mubr.f32.mxu0 0.0
      %817 = vmatmul.mubr.f32.gmra.mrb[0].mxu0 %v750
      %v818 = vpop.f32.mrb[0].mxu0
      %v819 = vadd.f32 0.0, %v818
      %v820 = vpop.f32.mrb[0].mxu0
      %821 = vdwg.mxu0
      %823 = vrot.lane.b32.xlu0 %v653, 96
      %v824 = vpop.permute.xlu0 %823
      %v825 = vsel %vm574, %v653, 0
      %v827 = vsel %vm574, %v824, 0
      %829 = vmatprep.subr.mxu0 0.0
      %830 = vmatpush1.xpose.msra.mxu0 %v827
      %831 = vmatprep.subr.mxu0 0.0
      %832 = vmatpush1.xpose.msra.mxu0 0.0
      %833 = vmatprep.subr.mxu0 0.0
      %834 = vmatpush1.xpose.msra.mxu0 0.0
      %835 = vmatprep.subr.mxu0 0.0
      %836 = vmatpush1.xpose.msra.mxu0 0.0
      %837 = vmatprep.subr.mxu0 0.0
      %838 = vmatpush1.xpose.msra.mxu0 0.0
      %839 = vmatprep.subr.mxu0 0.0
      %840 = vmatpush1.xpose.msra.mxu0 0.0
      %841 = vmatprep.subr.mxu0 0.0
      %842 = vmatpush1.xpose.msra.mxu0 0.0
      %843 = vmatprep.subr.mxu0 0.0
      %844 = vmatpush1.xpose.msra.mxu0 0.0
      %845 = vmatprep.subr.mxu0 0.0
      %846 = vmatpush1.xpose.msra.mxu0 0.0
      %847 = vmatprep.subr.mxu0 0.0
      %848 = vmatpush1.xpose.msra.mxu0 0.0
      %849 = vmatprep.subr.mxu0 0.0
      %850 = vmatpush1.xpose.msra.mxu0 0.0
      %851 = vmatprep.subr.mxu0 0.0
      %852 = vmatpush1.xpose.msra.mxu0 0.0
      %853 = vmatprep.subr.mxu0 0.0
      %854 = vmatpush1.xpose.msra.mxu0 0.0
      %855 = vmatprep.subr.mxu0 0.0
      %856 = vmatpush1.xpose.msra.mxu0 0.0
      %857 = vmatprep.subr.mxu0 0.0
      %858 = vmatpush1.xpose.msra.mxu0 0.0
      %859 = vmatprep.subr.mxu0 0.0
      %860 = vmatpush1.xpose.msra.mxu0 0.0
      %861 = vmatprep.subr.mxu0 0.0
      %862 = vmatpush1.xpose.msra.mxu0 0.0
      %863 = vmatprep.subr.mxu0 0.0
      %864 = vmatpush1.xpose.msra.mxu0 0.0
      %865 = vmatprep.subr.mxu0 0.0
      %866 = vmatpush1.xpose.msra.mxu0 0.0
      %867 = vmatprep.subr.mxu0 0.0
      %868 = vmatpush1.xpose.msra.mxu0 0.0
      %869 = vmatprep.subr.mxu0 0.0
      %870 = vmatpush1.xpose.msra.mxu0 0.0
      %871 = vmatprep.subr.mxu0 0.0
      %872 = vmatpush1.xpose.msra.mxu0 0.0
      %873 = vmatprep.subr.mxu0 0.0
      %874 = vmatpush1.xpose.msra.mxu0 0.0
      %875 = vmatprep.subr.mxu0 0.0
      %876 = vmatpush1.xpose.msra.mxu0 0.0
      %877 = vmatprep.subr.mxu0 0.0
      %878 = vmatpush1.xpose.msra.mxu0 0.0
      %879 = vmatprep.subr.mxu0 0.0
      %880 = vmatpush1.xpose.msra.mxu0 0.0
      %881 = vmatprep.subr.mxu0 0.0
      %882 = vmatpush1.xpose.msra.mxu0 0.0
      %883 = vmatprep.subr.mxu0 0.0
      %884 = vmatpush1.xpose.msra.mxu0 0.0
      %885 = vmatprep.subr.mxu0 0.0
      %886 = vmatpush1.xpose.msra.mxu0 0.0
      %887 = vmatprep.subr.mxu0 0.0
      %888 = vmatpush1.xpose.msra.mxu0 0.0
      %889 = vmatprep.subr.mxu0 0.0
      %890 = vmatpush1.xpose.msra.mxu0 0.0
      %891 = vmatprep.subr.mxu0 0.0
      %892 = vmatpush1.xpose.msra.mxu0 0.0
      %893 = vmatprep.mubr.f32.mxu0 0.0
      %894 = vmatmul.mubr.f32.gmra.mrb[0].mxu0 %v825
      %v895 = vpop.f32.mrb[0].mxu0
      %v896 = vadd.f32 0.0, %v895
      %v897 = vpop.f32.mrb[0].mxu0
      %898 = vdwg.mxu0
      %v899 = vmul.f32 %v896, 0.17677669
      %v900 = vsel %vm734, %v899, -inf
      %901 = vmax.xlane.f32.xlu0 %v900
      %v902 = vpop.xlane.xlu0 %901
      %v903 = vsub.f32 %v899, %v902
      %v904 = vmul.f32 %v903, 1.442695
      %v905 = vpow.pop %v904
      %v906 = vsel %vm734, %v905, 0.0
      %907 = vadd.xlane.f32.xlu0 %v906
      %v908 = vpop.xlane.xlu0 %907
      %v909 = vrcp.pop %v908
      %v910 = vmul.f32 %v905, %v909
      %911 = vrot.lane.b32.xlu0 %v653, 64
      %v912 = vpop.permute.xlu0 %911
      %v915 = vsel %vm734, %v910, 0
      %917 = vmatprep.subr.mxu0 0.0
      %918 = vmatpush1.msra.mxu0 %v912
      %919 = vmatprep.subr.mxu0 0.0
      %920 = vmatpush1.msra.mxu0 0.0
      %921 = vmatprep.subr.mxu0 0.0
      %922 = vmatpush1.msra.mxu0 0.0
      %923 = vmatprep.subr.mxu0 0.0
      %924 = vmatpush1.msra.mxu0 0.0
      %925 = vmatprep.subr.mxu0 0.0
      %926 = vmatpush1.msra.mxu0 0.0
      %927 = vmatprep.subr.mxu0 0.0
      %928 = vmatpush1.msra.mxu0 0.0
      %929 = vmatprep.subr.mxu0 0.0
      %930 = vmatpush1.msra.mxu0 0.0
      %931 = vmatprep.subr.mxu0 0.0
      %932 = vmatpush1.msra.mxu0 0.0
      %933 = vmatprep.subr.mxu0 0.0
      %934 = vmatpush1.msra.mxu0 0.0
      %935 = vmatprep.subr.mxu0 0.0
      %936 = vmatpush1.msra.mxu0 0.0
      %937 = vmatprep.subr.mxu0 0.0
      %938 = vmatpush1.msra.mxu0 0.0
      %939 = vmatprep.subr.mxu0 0.0
      %940 = vmatpush1.msra.mxu0 0.0
      %941 = vmatprep.subr.mxu0 0.0
      %942 = vmatpush1.msra.mxu0 0.0
      %943 = vmatprep.subr.mxu0 0.0
      %944 = vmatpush1.msra.mxu0 0.0
      %945 = vmatprep.subr.mxu0 0.0
      %946 = vmatpush1.msra.mxu0 0.0
      %947 = vmatprep.subr.mxu0 0.0
      %948 = vmatpush1.msra.mxu0 0.0
      %949 = vmatprep.subr.mxu0 0.0
      %950 = vmatpush1.msra.mxu0 0.0
      %951 = vmatprep.subr.mxu0 0.0
      %952 = vmatpush1.msra.mxu0 0.0
      %953 = vmatprep.subr.mxu0 0.0
      %954 = vmatpush1.msra.mxu0 0.0
      %955 = vmatprep.subr.mxu0 0.0
      %956 = vmatpush1.msra.mxu0 0.0
      %957 = vmatprep.subr.mxu0 0.0
      %958 = vmatpush1.msra.mxu0 0.0
      %959 = vmatprep.subr.mxu0 0.0
      %960 = vmatpush1.msra.mxu0 0.0
      %961 = vmatprep.subr.mxu0 0.0
      %962 = vmatpush1.msra.mxu0 0.0
      %963 = vmatprep.subr.mxu0 0.0
      %964 = vmatpush1.msra.mxu0 0.0
      %965 = vmatprep.subr.mxu0 0.0
      %966 = vmatpush1.msra.mxu0 0.0
      %967 = vmatprep.subr.mxu0 0.0
      %968 = vmatpush1.msra.mxu0 0.0
      %969 = vmatprep.subr.mxu0 0.0
      %970 = vmatpush1.msra.mxu0 0.0
      %971 = vmatprep.subr.mxu0 0.0
      %972 = vmatpush1.msra.mxu0 0.0
      %973 = vmatprep.subr.mxu0 0.0
      %974 = vmatpush1.msra.mxu0 0.0
      %975 = vmatprep.subr.mxu0 0.0
      %976 = vmatpush1.msra.mxu0 0.0
      %977 = vmatprep.subr.mxu0 0.0
      %978 = vmatpush1.msra.mxu0 0.0
      %979 = vmatprep.subr.mxu0 0.0
      %980 = vmatpush1.msra.mxu0 0.0
      %981 = vmatprep.mubr.f32.mxu0 0.0
      %982 = vmatmul.mubr.f32.gmra.mrb[0].mxu0 %v915
      %v983 = vpop.f32.mrb[0].mxu0
      %v984 = vadd.f32 0.0, %v983
      %v985 = vpop.f32.mrb[0].mxu0
      %986 = vdwg.mxu0
      %v987 = vld [vmem:[%s523] sm:$0xff]
      %v988 = vld [vmem:[%s523 + $0x8] sm:$0xff]
      %v989 = vld [vmem:[%s523 + $0x10] sm:$0xff]
      %v990 = vld [vmem:[%s523 + $0x18] sm:$0xff]
      %v991 = vld [vmem:[%s526] sm:$0x1]
      %v993 = vlaneseq
      %v994 = vshrl.u32 %v993, 7
      %v995 = vsub.s32 0, %v994
      %v996 = vrot.slane %v991, %v995
      %v999 = vsel %vm574, %v819, 0
      %v1002 = vsel %vm574, %v984, 0
      %1004 = vmatprep.subr.mxu0 0.0
      %1005 = vmatpush1.msra.mxu0 %v987
      %1006 = vmatprep.subr.mxu0 0.0
      %1007 = vmatpush1.msra.mxu0 %v988
      %1008 = vmatprep.subr.mxu0 0.0
      %1009 = vmatpush1.msra.mxu0 %v989
      %1010 = vmatprep.subr.mxu0 0.0
      %1011 = vmatpush1.msra.mxu0 %v990
      %1012 = vmatprep.subr.mxu0 0.0
      %1013 = vmatpush1.msra.mxu0 0.0
      %1014 = vmatprep.subr.mxu0 0.0
      %1015 = vmatpush1.msra.mxu0 0.0
      %1016 = vmatprep.subr.mxu0 0.0
      %1017 = vmatpush1.msra.mxu0 0.0
      %1018 = vmatprep.subr.mxu0 0.0
      %1019 = vmatpush1.msra.mxu0 0.0
      %1020 = vmatprep.subr.mxu0 0.0
      %1021 = vmatpush1.msra.mxu0 0.0
      %1022 = vmatprep.subr.mxu0 0.0
      %1023 = vmatpush1.msra.mxu0 0.0
      %1024 = vmatprep.subr.mxu0 0.0
      %1025 = vmatpush1.msra.mxu0 0.0
      %1026 = vmatprep.subr.mxu0 0.0
      %1027 = vmatpush1.msra.mxu0 0.0
      %1028 = vmatprep.subr.mxu0 0.0
      %1029 = vmatpush1.msra.mxu0 0.0
      %1030 = vmatprep.subr.mxu0 0.0
      %1031 = vmatpush1.msra.mxu0 0.0
      %1032 = vmatprep.subr.mxu0 0.0
      %1033 = vmatpush1.msra.mxu0 0.0
      %1034 = vmatprep.subr.mxu0 0.0
      %1035 = vmatpush1.msra.mxu0 0.0
      %1036 = vmatprep.subr.mxu0 0.0
      %1037 = vmatpush1.msra.mxu0 0.0
      %1038 = vmatprep.subr.mxu0 0.0
      %1039 = vmatpush1.msra.mxu0 0.0
      %1040 = vmatprep.subr.mxu0 0.0
      %1041 = vmatpush1.msra.mxu0 0.0
      %1042 = vmatprep.subr.mxu0 0.0
      %1043 = vmatpush1.msra.mxu0 0.0
      %1044 = vmatprep.subr.mxu0 0.0
      %1045 = vmatpush1.msra.mxu0 0.0
      %1046 = vmatprep.subr.mxu0 0.0
      %1047 = vmatpush1.msra.mxu0 0.0
      %1048 = vmatprep.subr.mxu0 0.0
      %1049 = vmatpush1.msra.mxu0 0.0
      %1050 = vmatprep.subr.mxu0 0.0
      %1051 = vmatpush1.msra.mxu0 0.0
      %1052 = vmatprep.subr.mxu0 0.0
      %1053 = vmatpush1.msra.mxu0 0.0
      %1054 = vmatprep.subr.mxu0 0.0
      %1055 = vmatpush1.msra.mxu0 0.0
      %1056 = vmatprep.subr.mxu0 0.0
      %1057 = vmatpush1.msra.mxu0 0.0
      %1058 = vmatprep.subr.mxu0 0.0
      %1059 = vmatpush1.msra.mxu0 0.0
      %1060 = vmatprep.subr.mxu0 0.0
      %1061 = vmatpush1.msra.mxu0 0.0
      %1062 = vmatprep.subr.mxu0 0.0
      %1063 = vmatpush1.msra.mxu0 0.0
      %1064 = vmatprep.subr.mxu0 0.0
      %1065 = vmatpush1.msra.mxu0 0.0
      %1066 = vmatprep.subr.mxu0 0.0
      %1067 = vmatpush1.msra.mxu0 0.0
      %1068 = vmatprep.mubr.f32.mxu0 0.0
      %1069 = vmatmul.mubr.f32.gmra.mrb[0].mxu0 %v999
      %v1070 = vpop.f32.mrb[0].mxu0
      %v1071 = vadd.f32 %v996, %v1070
      %v1072 = vpop.f32.mrb[0].mxu0
      %1073 = vmatprep.mubr.f32.mxu0 0.0
      %1074 = vmatmul.mubr.f32.gmra.mrb[0].mxu0 %v1002
      %v1075 = vpop.f32.mrb[0].mxu0
      %v1076 = vadd.f32 %v996, %v1075
      %v1077 = vpop.f32.mrb[0].mxu0
      %1078 = vdwg.mxu0
      %v1079 = vadd.f32 %v561, %v1071
      %v1080 = vadd.f32 %v562, %v1076
      %v1081 = vld [vmem:[%s530] sm:$0x3]
      %v1082 = vsel %vm574, %v1079, 0.0
      %1083 = vadd.xlane.f32.xlu0 %v1082
      %v1084 = vpop.xlane.xlu0 %1083
      %v1085 = vsel %vm574, %v1080, 0.0
      %1086 = vadd.xlane.f32.xlu0 %v1085
      %v1087 = vpop.xlane.xlu0 %1086
      %v1088 = vrcp.pop 32.0
      %v1089 = vmul.f32 %v1084, %v1088
      %v1090 = vmul.f32 %v1087, %v1088
      %v1091 = vsub.f32 %v1079, %v1089
      %v1092 = vsub.f32 %v1080, %v1090
      %v1093 = vmul.f32 %v1091, %v1091
      %v1094 = vmul.f32 %v1092, %v1092
      %v1095 = vsel %vm574, %v1093, 0.0
      %1096 = vadd.xlane.f32.xlu0 %v1095
      %v1097 = vpop.xlane.xlu0 %1096
      %v1098 = vsel %vm574, %v1094, 0.0
      %1099 = vadd.xlane.f32.xlu0 %v1098
      %v1100 = vpop.xlane.xlu0 %1099
      %v1101 = vmul.f32 %v1097, %v1088
      %v1102 = vmul.f32 %v1100, %v1088
      %v1103 = vadd.f32 %v1101, 1e-05
      %v1104 = vadd.f32 %v1102, 1e-05
      %v1105 = vrsqrt.pop %v1103
      %v1106 = vrsqrt.pop %v1104
      %v1107 = vmul.f32 %v1091, %v1105
      %v1108 = vmul.f32 %v1092, %v1106
      %v1109 = vlaneseq
      %v1110 = vshrl.u32 %v1109, 7
      %v1111 = vsub.s32 0, %v1110
      %v1112 = vrot.slane %v1081, %v1111
      %v1113 = vmul.f32 %v1107, %v1112
      %v1114 = vmul.f32 %v1108, %v1112
      %v1115 = vlaneseq
      %v1116 = vshrl.u32 %v1115, 7
      %v1117 = vsub.s32 1, %v1116
      %v1118 = vrot.slane %v1081, %v1117
      %v1119 = vadd.f32 %v1113, %v1118
      %v1120 = vadd.f32 %v1114, %v1118
      %v1121 = vld [vmem:[%s539] sm:$0xff]
      %v1122 = vld [vmem:[%s539 + $0x8] sm:$0xff]
      %v1123 = vld [vmem:[%s539 + $0x10] sm:$0xff]
      %v1124 = vld [vmem:[%s539 + $0x18] sm:$0xff]
      %v1125 = vld [vmem:[%s539 + $0x20] sm:$0xff]
      %v1126 = vld [vmem:[%s539 + $0x28] sm:$0xff]
      %v1127 = vld [vmem:[%s539 + $0x30] sm:$0xff]
      %v1128 = vld [vmem:[%s539 + $0x38] sm:$0xff]
      %v1129 = vld [vmem:[%s543] sm:$0x3]
      %v1131 = vlaneseq
      %v1132 = vshrl.u32 %v1131, 7
      %v1133 = vsub.s32 0, %v1132
      %v1134 = vrot.slane %v1129, %v1133
      %v1135 = vlaneseq
      %v1136 = vshrl.u32 %v1135, 7
      %v1137 = vsub.s32 1, %v1136
      %v1138 = vrot.slane %v1129, %v1137
      %v1142 = vsel %vm574, %v1119, 0
      %v1145 = vsel %vm574, %v1120, 0
      %1147 = vmatprep.subr.mxu0 %v1122
      %1148 = vmatpush1.msra.mxu0 %v1121
      %1149 = vmatprep.subr.mxu0 %v1124
      %1150 = vmatpush1.msra.mxu0 %v1123
      %1151 = vmatprep.subr.mxu0 %v1126
      %1152 = vmatpush1.msra.mxu0 %v1125
      %1153 = vmatprep.subr.mxu0 %v1128
      %1154 = vmatpush1.msra.mxu0 %v1127
      %1155 = vmatprep.subr.mxu0 0.0
      %1156 = vmatpush1.msra.mxu0 0.0
      %1157 = vmatprep.subr.mxu0 0.0
      %1158 = vmatpush1.msra.mxu0 0.0
      %1159 = vmatprep.subr.mxu0 0.0
      %1160 = vmatpush1.msra.mxu0 0.0
      %1161 = vmatprep.subr.mxu0 0.0
      %1162 = vmatpush1.msra.mxu0 0.0
      %1163 = vmatprep.subr.mxu0 0.0
      %1164 = vmatpush1.msra.mxu0 0.0
      %1165 = vmatprep.subr.mxu0 0.0
      %1166 = vmatpush1.msra.mxu0 0.0
      %1167 = vmatprep.subr.mxu0 0.0
      %1168 = vmatpush1.msra.mxu0 0.0
      %1169 = vmatprep.subr.mxu0 0.0
      %1170 = vmatpush1.msra.mxu0 0.0
      %1171 = vmatprep.subr.mxu0 0.0
      %1172 = vmatpush1.msra.mxu0 0.0
      %1173 = vmatprep.subr.mxu0 0.0
      %1174 = vmatpush1.msra.mxu0 0.0
      %1175 = vmatprep.subr.mxu0 0.0
      %1176 = vmatpush1.msra.mxu0 0.0
      %1177 = vmatprep.subr.mxu0 0.0
      %1178 = vmatpush1.msra.mxu0 0.0
      %1179 = vmatprep.subr.mxu0 0.0
      %1180 = vmatpush1.msra.mxu0 0.0
      %1181 = vmatprep.subr.mxu0 0.0
      %1182 = vmatpush1.msra.mxu0 0.0
      %1183 = vmatprep.subr.mxu0 0.0
      %1184 = vmatpush1.msra.mxu0 0.0
      %1185 = vmatprep.subr.mxu0 0.0
      %1186 = vmatpush1.msra.mxu0 0.0
      %1187 = vmatprep.subr.mxu0 0.0
      %1188 = vmatpush1.msra.mxu0 0.0
      %1189 = vmatprep.subr.mxu0 0.0
      %1190 = vmatpush1.msra.mxu0 0.0
      %1191 = vmatprep.subr.mxu0 0.0
      %1192 = vmatpush1.msra.mxu0 0.0
      %1193 = vmatprep.subr.mxu0 0.0
      %1194 = vmatpush1.msra.mxu0 0.0
      %1195 = vmatprep.subr.mxu0 0.0
      %1196 = vmatpush1.msra.mxu0 0.0
      %1197 = vmatprep.subr.mxu0 0.0
      %1198 = vmatpush1.msra.mxu0 0.0
      %1199 = vmatprep.subr.mxu0 0.0
      %1200 = vmatpush1.msra.mxu0 0.0
      %1201 = vmatprep.subr.mxu0 0.0
      %1202 = vmatpush1.msra.mxu0 0.0
      %1203 = vmatprep.subr.mxu0 0.0
      %1204 = vmatpush1.msra.mxu0 0.0
      %1205 = vmatprep.subr.mxu0 0.0
      %1206 = vmatpush1.msra.mxu0 0.0
      %1207 = vmatprep.subr.mxu0 0.0
      %1208 = vmatpush1.msra.mxu0 0.0
      %1209 = vmatprep.subr.mxu0 0.0
      %1210 = vmatpush1.msra.mxu0 0.0
      %1211 = vmatprep.mubr.f32.mxu0 0.0
      %1212 = vmatmul.mubr.f32.gmra.mrb[0].mxu0 %v1142
      %v1213 = vpop.f32.mrb[0].mxu0
      %v1214 = vadd.f32 %v1134, %v1213
      %v1215 = vpop.f32.mrb[0].mxu0
      %v1216 = vadd.f32 %v1138, %v1215
      %1217 = vmatprep.mubr.f32.mxu0 0.0
      %1218 = vmatmul.mubr.f32.gmra.mrb[0].mxu0 %v1145
      %v1219 = vpop.f32.mrb[0].mxu0
      %v1220 = vadd.f32 %v1134, %v1219
      %v1221 = vpop.f32.mrb[0].mxu0
      %v1222 = vadd.f32 %v1138, %v1221
      %1223 = vdwg.mxu0
      %v1224 = vmax.f32 %v1214, 0.0
      %v1225 = vmax.f32 %v1216, 0.0
      %v1226 = vmax.f32 %v1220, 0.0
      %v1227 = vmax.f32 %v1222, 0.0
      %v1228 = vld [vmem:[%s548] sm:$0xff]
      %v1229 = vld [vmem:[%s548 + $0x8] sm:$0xff]
      %v1230 = vld [vmem:[%s548 + $0x10] sm:$0xff]
      %v1231 = vld [vmem:[%s548 + $0x18] sm:$0xff]
      %v1232 = vld [vmem:[%s548 + $0x20] sm:$0xff]
      %v1233 = vld [vmem:[%s548 + $0x28] sm:$0xff]
      %v1234 = vld [vmem:[%s548 + $0x30] sm:$0xff]
      %v1235 = vld [vmem:[%s548 + $0x38] sm:$0xff]
      %v1236 = vld [vmem:[%s548 + $0x40] sm:$0xff]
      %v1237 = vld [vmem:[%s548 + $0x48] sm:$0xff]
      %v1238 = vld [vmem:[%s548 + $0x50] sm:$0xff]
      %v1239 = vld [vmem:[%s548 + $0x58] sm:$0xff]
      %v1240 = vld [vmem:[%s548 + $0x60] sm:$0xff]
      %v1241 = vld [vmem:[%s548 + $0x68] sm:$0xff]
      %v1242 = vld [vmem:[%s548 + $0x70] sm:$0xff]
      %v1243 = vld [vmem:[%s548 + $0x78] sm:$0xff]
      %v1244 = vld [vmem:[%s548 + $0x80] sm:$0xff]
      %v1245 = vld [vmem:[%s548 + $0x88] sm:$0xff]
      %v1246 = vld [vmem:[%s548 + $0x90] sm:$0xff]
      %v1247 = vld [vmem:[%s548 + $0x98] sm:$0xff]
      %v1248 = vld [vmem:[%s548 + $0xa0] sm:$0xff]
      %v1249 = vld [vmem:[%s548 + $0xa8] sm:$0xff]
      %v1250 = vld [vmem:[%s548 + $0xb0] sm:$0xff]
      %v1251 = vld [vmem:[%s548 + $0xb8] sm:$0xff]
      %v1252 = vld [vmem:[%s548 + $0xc0] sm:$0xff]
      %v1253 = vld [vmem:[%s548 + $0xc8] sm:$0xff]
      %v1254 = vld [vmem:[%s548 + $0xd0] sm:$0xff]
      %v1255 = vld [vmem:[%s548 + $0xd8] sm:$0xff]
      %v1256 = vld [vmem:[%s548 + $0xe0] sm:$0xff]
      %v1257 = vld [vmem:[%s548 + $0xe8] sm:$0xff]
      %v1258 = vld [vmem:[%s548 + $0xf0] sm:$0xff]
      %v1259 = vld [vmem:[%s548 + $0xf8] sm:$0xff]
      %v1260 = vld [vmem:[%s551] sm:$0x1]
      %v1262 = vlaneseq
      %v1263 = vshrl.u32 %v1262, 7
      %v1264 = vsub.s32 0, %v1263
      %v1265 = vrot.slane %v1260, %v1264
      %1267 = vmatprep.subr.mxu0 0.0
      %1268 = vmatpush1.msra.mxu0 %v1228
      %1269 = vmatprep.subr.mxu0 0.0
      %1270 = vmatpush1.msra.mxu0 %v1229
      %1271 = vmatprep.subr.mxu0 0.0
      %1272 = vmatpush1.msra.mxu0 %v1230
      %1273 = vmatprep.subr.mxu0 0.0
      %1274 = vmatpush1.msra.mxu0 %v1231
      %1275 = vmatprep.subr.mxu0 0.0
      %1276 = vmatpush1.msra.mxu0 %v1232
      %1277 = vmatprep.subr.mxu0 0.0
      %1278 = vmatpush1.msra.mxu0 %v1233
      %1279 = vmatprep.subr.mxu0 0.0
      %1280 = vmatpush1.msra.mxu0 %v1234
      %1281 = vmatprep.subr.mxu0 0.0
      %1282 = vmatpush1.msra.mxu0 %v1235
      %1283 = vmatprep.subr.mxu0 0.0
      %1284 = vmatpush1.msra.mxu0 %v1236
      %1285 = vmatprep.subr.mxu0 0.0
      %1286 = vmatpush1.msra.mxu0 %v1237
      %1287 = vmatprep.subr.mxu0 0.0
      %1288 = vmatpush1.msra.mxu0 %v1238
      %1289 = vmatprep.subr.mxu0 0.0
      %1290 = vmatpush1.msra.mxu0 %v1239
      %1291 = vmatprep.subr.mxu0 0.0
      %1292 = vmatpush1.msra.mxu0 %v1240
      %1293 = vmatprep.subr.mxu0 0.0
      %1294 = vmatpush1.msra.mxu0 %v1241
      %1295 = vmatprep.subr.mxu0 0.0
      %1296 = vmatpush1.msra.mxu0 %v1242
      %1297 = vmatprep.subr.mxu0 0.0
      %1298 = vmatpush1.msra.mxu0 %v1243
      %1299 = vmatprep.subr.mxu0 0.0
      %1300 = vmatpush1.msra.mxu0 %v1244
      %1301 = vmatprep.subr.mxu0 0.0
      %1302 = vmatpush1.msra.mxu0 %v1245
      %1303 = vmatprep.subr.mxu0 0.0
      %1304 = vmatpush1.msra.mxu0 %v1246
      %1305 = vmatprep.subr.mxu0 0.0
      %1306 = vmatpush1.msra.mxu0 %v1247
      %1307 = vmatprep.subr.mxu0 0.0
      %1308 = vmatpush1.msra.mxu0 %v1248
      %1309 = vmatprep.subr.mxu0 0.0
      %1310 = vmatpush1.msra.mxu0 %v1249
      %1311 = vmatprep.subr.mxu0 0.0
      %1312 = vmatpush1.msra.mxu0 %v1250
      %1313 = vmatprep.subr.mxu0 0.0
      %1314 = vmatpush1.msra.mxu0 %v1251
      %1315 = vmatprep.subr.mxu0 0.0
      %1316 = vmatpush1.msra.mxu0 %v1252
      %1317 = vmatprep.subr.mxu0 0.0
      %1318 = vmatpush1.msra.mxu0 %v1253
      %1319 = vmatprep.subr.mxu0 0.0
      %1320 = vmatpush1.msra.mxu0 %v1254
      %1321 = vmatprep.subr.mxu0 0.0
      %1322 = vmatpush1.msra.mxu0 %v1255
      %1323 = vmatprep.subr.mxu0 0.0
      %1324 = vmatpush1.msra.mxu0 %v1256
      %1325 = vmatprep.subr.mxu0 0.0
      %1326 = vmatpush1.msra.mxu0 %v1257
      %1327 = vmatprep.subr.mxu0 0.0
      %1328 = vmatpush1.msra.mxu0 %v1258
      %1329 = vmatprep.subr.mxu0 0.0
      %1330 = vmatpush1.msra.mxu0 %v1259
      %1331 = vmatprep.mubr.f32.mxu0 %v1225
      %1332 = vmatmul.mubr.f32.gmra.mrb[0].mxu0 %v1224
      %v1333 = vpop.f32.mrb[0].mxu0
      %v1334 = vadd.f32 %v1265, %v1333
      %v1335 = vpop.f32.mrb[0].mxu0
      %1336 = vmatprep.mubr.f32.mxu0 %v1227
      %1337 = vmatmul.mubr.f32.gmra.mrb[0].mxu0 %v1226
      %v1338 = vpop.f32.mrb[0].mxu0
      %v1339 = vadd.f32 %v1265, %v1338
      %v1340 = vpop.f32.mrb[0].mxu0
      %1341 = vdwg.mxu0
      %v1342 = vadd.f32 %v1119, %v1334
      %v1343 = vadd.f32 %v1120, %v1339
      %v1344 = vld [vmem:[%s534] sm:$0x3]
      %v1345 = vsel %vm574, %v1342, 0.0
      %1346 = vadd.xlane.f32.xlu0 %v1345
      %v1347 = vpop.xlane.xlu0 %1346
      %v1348 = vsel %vm574, %v1343, 0.0
      %1349 = vadd.xlane.f32.xlu0 %v1348
      %v1350 = vpop.xlane.xlu0 %1349
      %v1351 = vmul.f32 %v1347, %v1088
      %v1352 = vmul.f32 %v1350, %v1088
      %v1353 = vsub.f32 %v1342, %v1351
      %v1354 = vsub.f32 %v1343, %v1352
      %v1355 = vmul.f32 %v1353, %v1353
      %v1356 = vmul.f32 %v1354, %v1354
      %v1357 = vsel %vm574, %v1355, 0.0
      %1358 = vadd.xlane.f32.xlu0 %v1357
      %v1359 = vpop.xlane.xlu0 %1358
      %v1360 = vsel %vm574, %v1356, 0.0
      %1361 = vadd.xlane.f32.xlu0 %v1360
      %v1362 = vpop.xlane.xlu0 %1361
      %v1363 = vmul.f32 %v1359, %v1088
      %v1364 = vmul.f32 %v1362, %v1088
      %v1365 = vadd.f32 %v1363, 1e-05
      %v1366 = vadd.f32 %v1364, 1e-05
      %v1367 = vrsqrt.pop %v1365
      %v1368 = vrsqrt.pop %v1366
      %v1369 = vmul.f32 %v1353, %v1367
      %v1370 = vmul.f32 %v1354, %v1368
      %v1371 = vlaneseq
      %v1372 = vshrl.u32 %v1371, 7
      %v1373 = vsub.s32 0, %v1372
      %v1374 = vrot.slane %v1344, %v1373
      %v1375 = vmul.f32 %v1369, %v1374
      %v1376 = vmul.f32 %v1370, %v1374
      %v1377 = vlaneseq
      %v1378 = vshrl.u32 %v1377, 7
      %v1379 = vsub.s32 1, %v1378
      %v1380 = vrot.slane %v1344, %v1379
      %v1381 = vadd.f32 %v1375, %v1380
      %v1382 = vadd.f32 %v1376, %v1380
      %1383 = vst.msk [vmem:[%s12] sm:$0xff] %vm574, %v1381
      %1384 = vst.msk [vmem:[%s12 + $0x8] sm:$0xff] %vm574, %v1382
      // Predicated region
      $region73: #{model_forward.4} parent=67 // pred_check
        %p1385 = pneg %p338
      $region74: #{model_forward.4} parent=67 // pred_check_branch
        %1387 = sbr.rel (%p1385) target = $region76
      $region75: #{model_forward.4} parent=67 // pred_region
        _
      $region76: #{model_forward.4} parent=67 // pred_fallthru
        _
      // Predicated region
      $region77: #{model_forward.4} parent=67 // pred_check
        %p1388 = pneg %p338
      $region78: #{model_forward.4} parent=67 // pred_check_branch
        %1390 = sbr.rel (%p1388) target = $region80
      $region79: #{model_forward.4} parent=67 // pred_region
        _
      $region80: #{model_forward.4} parent=67 // pred_fallthru
        _
    $region68: #{model_forward.4} parent=5 // pred_fallthru
      _
    %p1391 = scmp.le.s32.totalorder 2, %s18
    // Predicated region
    $region81: #{model_forward.4} parent=5 // pred_check
      %p1392 = pneg %p1391
    $region82: #{model_forward.4} parent=5 // pred_check_branch
      %1394 = sbr.rel (%p1392) target = $region84
    $region83: #{model_forward.4} parent=5 // pred_region
      %s1395 = ssub.s32 %s18, 2
    $region84: #{model_forward.4} parent=5 // pred_fallthru
      _
  $region6: #{model_forward.4} parent=0 // loop_footer
    %s22 = sadd.s32 1, %s18
  $region7: #{model_forward.4} parent=0 // loop_footer_branch
    %17 = sbr.rel target = $region3
  $region8: #{model_forward.4} parent=0 // loop_exit
    _

// kernel: model_forward.5
$region0: #{model_forward.5}
  #allocation0 [shape = 'u32[]', space=smem, size = 0x4, offset = 0x4, fixed_abs, tag = 'smem constant byte address 0x4 - core index']
  #allocation1 [shape = 'u32[144,128]{1,0:T(1,128)}', space=vmem, size = 0x12000, scoped, tag = 'internal scratch']
  %s0 = inlined_call_operand.vmem [shape: f32[16,32], index: 0, kind: input, shape index: {}]
  %s1 = inlined_call_operand.vmem [shape: f32[32,32], index: 1, kind: input, shape index: {}]
  %s2 = inlined_call_operand.vmem [shape: f32[16,8], index: 2, kind: input, shape index: {}]
  %s3 = inlined_call_operand.vmem [shape: f32[32,96], index: 3, kind: input, shape index: {}]
  %s4 = inlined_call_operand.vmem [shape: f32[1,96], index: 4, kind: input, shape index: {}]
  %s5 = inlined_call_operand.vmem [shape: f32[32,32], index: 5, kind: input, shape index: {}]
  %s6 = inlined_call_operand.vmem [shape: f32[1,32], index: 6, kind: input, shape index: {}]
  %s7 = inlined_call_operand.vmem [shape: f32[32,32], index: 7, kind: input, shape index: {}]
  %s8 = inlined_call_operand.vmem [shape: f32[1,32], index: 8, kind: input, shape index: {}]
  %s9 = inlined_call_operand.vmem [shape: f32[32,64], index: 9, kind: input, shape index: {}]
  %s10 = inlined_call_operand.vmem [shape: f32[1,64], index: 10, kind: input, shape index: {}]
  %s11 = inlined_call_operand.vmem [shape: f32[32,32], index: 11, kind: input, shape index: {}]
  %s12 = inlined_call_operand.vmem [shape: f32[1,32], index: 12, kind: input, shape index: {}]
  %s13 = inlined_call_operand.vmem [shape: f32[32,256], index: 13, kind: input, shape index: {}]
  %s14 = inlined_call_operand.vmem [shape: f32[1,256], index: 14, kind: input, shape index: {}]
  %s15 = inlined_call_operand.vmem [shape: f32[256,32], index: 15, kind: input, shape index: {}]
  %s16 = inlined_call_operand.vmem [shape: f32[1,32], index: 16, kind: input, shape index: {}]
  %s17 = inlined_call_operand.vmem [shape: f32[2,32], index: 17, kind: input, shape index: {}]
  %s18 = inlined_call_operand.vmem [shape: f32[2,32], index: 18, kind: input, shape index: {}]
  %s19 = inlined_call_operand.vmem [shape: f32[2,32], index: 19, kind: input, shape index: {}]
  %s20 = inlined_call_operand.vmem [shape: f32[2,32], index: 20, kind: input, shape index: {}]
  %s21 = inlined_call_operand.vmem [shape: f32[32,16], index: 21, kind: input, shape index: {}]
  %s22 = inlined_call_operand.vmem [shape: f32[1,16], index: 22, kind: input, shape index: {}]
  %s23 = inlined_call_operand.vmem [shape: f32[16,16], index: 23, kind: output, shape index: {}]
  %s24 = sld [smem:[#allocation0]]
  $region102: #{model_forward.5} parent=0
    _
  %s26 = ssub.s32 1, %s24
  %s27 = scalar_select 0, %s26, %s24
  // Predicated region
  $region2: #{model_forward.5} parent=0 // pred_check
    _
  $region3: #{model_forward.5} parent=0 // pred_check_branch
    %29 = sbr.rel (0) target = $region5
  $region4: #{model_forward.5} parent=0 // pred_region
    _
  $region5: #{model_forward.5} parent=0 // pred_fallthru
    _
  // Predicated region
  $region6: #{model_forward.5} parent=0 // pred_check
    _
  $region7: #{model_forward.5} parent=0 // pred_check_branch
    %31 = sbr.rel (0) target = $region9
  $region8: #{model_forward.5} parent=0 // pred_region
    _
  $region9: #{model_forward.5} parent=0 // pred_fallthru
    _
  // Predicated region
  $region10: #{model_forward.5} parent=0 // pred_check
    _
  $region11: #{model_forward.5} parent=0 // pred_check_branch
    %33 = sbr.rel (0) target = $region13
  $region12: #{model_forward.5} parent=0 // pred_region
    _
  $region13: #{model_forward.5} parent=0 // pred_fallthru
    _
  // Predicated region
  $region14: #{model_forward.5} parent=0 // pred_check
    _
  $region15: #{model_forward.5} parent=0 // pred_check_branch
    %35 = sbr.rel (0) target = $region17
  $region16: #{model_forward.5} parent=0 // pred_region
    _
  $region17: #{model_forward.5} parent=0 // pred_fallthru
    _
  // Predicated region
  $region18: #{model_forward.5} parent=0 // pred_check
    _
  $region19: #{model_forward.5} parent=0 // pred_check_branch
    %37 = sbr.rel (0) target = $region21
  $region20: #{model_forward.5} parent=0 // pred_region
    _
  $region21: #{model_forward.5} parent=0 // pred_fallthru
    _
  // Predicated region
  $region22: #{model_forward.5} parent=0 // pred_check
    _
  $region23: #{model_forward.5} parent=0 // pred_check_branch
    %39 = sbr.rel (0) target = $region25
  $region24: #{model_forward.5} parent=0 // pred_region
    _
  $region25: #{model_forward.5} parent=0 // pred_fallthru
    _
  // Predicated region
  $region26: #{model_forward.5} parent=0 // pred_check
    _
  $region27: #{model_forward.5} parent=0 // pred_check_branch
    %41 = sbr.rel (0) target = $region29
  $region28: #{model_forward.5} parent=0 // pred_region
    _
  $region29: #{model_forward.5} parent=0 // pred_fallthru
    _
  // Predicated region
  $region30: #{model_forward.5} parent=0 // pred_check
    _
  $region31: #{model_forward.5} parent=0 // pred_check_branch
    %43 = sbr.rel (0) target = $region33
  $region32: #{model_forward.5} parent=0 // pred_region
    _
  $region33: #{model_forward.5} parent=0 // pred_fallthru
    _
  // Predicated region
  $region34: #{model_forward.5} parent=0 // pred_check
    _
  $region35: #{model_forward.5} parent=0 // pred_check_branch
    %45 = sbr.rel (0) target = $region37
  $region36: #{model_forward.5} parent=0 // pred_region
    _
  $region37: #{model_forward.5} parent=0 // pred_fallthru
    _
  // Predicated region
  $region38: #{model_forward.5} parent=0 // pred_check
    _
  $region39: #{model_forward.5} parent=0 // pred_check_branch
    %47 = sbr.rel (0) target = $region41
  $region40: #{model_forward.5} parent=0 // pred_region
    _
  $region41: #{model_forward.5} parent=0 // pred_fallthru
    _
  // Predicated region
  $region42: #{model_forward.5} parent=0 // pred_check
    _
  $region43: #{model_forward.5} parent=0 // pred_check_branch
    %49 = sbr.rel (0) target = $region45
  $region44: #{model_forward.5} parent=0 // pred_region
    _
  $region45: #{model_forward.5} parent=0 // pred_fallthru
    _
  // Predicated region
  $region46: #{model_forward.5} parent=0 // pred_check
    _
  $region47: #{model_forward.5} parent=0 // pred_check_branch
    %51 = sbr.rel (0) target = $region49
  $region48: #{model_forward.5} parent=0 // pred_region
    _
  $region49: #{model_forward.5} parent=0 // pred_fallthru
    _
  // Predicated region
  $region50: #{model_forward.5} parent=0 // pred_check
    _
  $region51: #{model_forward.5} parent=0 // pred_check_branch
    %53 = sbr.rel (0) target = $region53
  $region52: #{model_forward.5} parent=0 // pred_region
    _
  $region53: #{model_forward.5} parent=0 // pred_fallthru
    _
  // Predicated region
  $region54: #{model_forward.5} parent=0 // pred_check
    _
  $region55: #{model_forward.5} parent=0 // pred_check_branch
    %55 = sbr.rel (0) target = $region57
  $region56: #{model_forward.5} parent=0 // pred_region
    _
  $region57: #{model_forward.5} parent=0 // pred_fallthru
    _
  // Predicated region
  $region58: #{model_forward.5} parent=0 // pred_check
    _
  $region59: #{model_forward.5} parent=0 // pred_check_branch
    %57 = sbr.rel (0) target = $region61
  $region60: #{model_forward.5} parent=0 // pred_region
    _
  $region61: #{model_forward.5} parent=0 // pred_fallthru
    _
  // Predicated region
  $region62: #{model_forward.5} parent=0 // pred_check
    _
  $region63: #{model_forward.5} parent=0 // pred_check_branch
    %59 = sbr.rel (0) target = $region65
  $region64: #{model_forward.5} parent=0 // pred_region
    _
  $region65: #{model_forward.5} parent=0 // pred_fallthru
    _
  // Predicated region
  $region66: #{model_forward.5} parent=0 // pred_check
    _
  $region67: #{model_forward.5} parent=0 // pred_check_branch
    %61 = sbr.rel (0) target = $region69
  $region68: #{model_forward.5} parent=0 // pred_region
    _
  $region69: #{model_forward.5} parent=0 // pred_fallthru
    _
  // Predicated region
  $region70: #{model_forward.5} parent=0 // pred_check
    _
  $region71: #{model_forward.5} parent=0 // pred_check_branch
    %63 = sbr.rel (0) target = $region73
  $region72: #{model_forward.5} parent=0 // pred_region
    _
  $region73: #{model_forward.5} parent=0 // pred_fallthru
    _
  // Predicated region
  $region74: #{model_forward.5} parent=0 // pred_check
    _
  $region75: #{model_forward.5} parent=0 // pred_check_branch
    %65 = sbr.rel (0) target = $region77
  $region76: #{model_forward.5} parent=0 // pred_region
    _
  $region77: #{model_forward.5} parent=0 // pred_fallthru
    _
  // Predicated region
  $region78: #{model_forward.5} parent=0 // pred_check
    _
  $region79: #{model_forward.5} parent=0 // pred_check_branch
    %67 = sbr.rel (0) target = $region81
  $region80: #{model_forward.5} parent=0 // pred_region
    _
  $region81: #{model_forward.5} parent=0 // pred_fallthru
    _
  // Predicated region
  $region82: #{model_forward.5} parent=0 // pred_check
    _
  $region83: #{model_forward.5} parent=0 // pred_check_branch
    %69 = sbr.rel (0) target = $region85
  $region84: #{model_forward.5} parent=0 // pred_region
    _
  $region85: #{model_forward.5} parent=0 // pred_fallthru
    _
  // Predicated region
  $region86: #{model_forward.5} parent=0 // pred_check
    _
  $region87: #{model_forward.5} parent=0 // pred_check_branch
    %71 = sbr.rel (0) target = $region89
  $region88: #{model_forward.5} parent=0 // pred_region
    _
  $region89: #{model_forward.5} parent=0 // pred_fallthru
    _
  // Predicated region
  $region90: #{model_forward.5} parent=0 // pred_check
    _
  $region91: #{model_forward.5} parent=0 // pred_check_branch
    %73 = sbr.rel (0) target = $region93
  $region92: #{model_forward.5} parent=0 // pred_region
    _
  $region93: #{model_forward.5} parent=0 // pred_fallthru
    _
  %v74 = vld [vmem:[%s0] sm:$0xff]
  %v75 = vld [vmem:[%s0 + $0x8] sm:$0xff]
  %v76 = vld [vmem:[%s1] sm:$0xff]
  %v77 = vld [vmem:[%s1 + $0x8] sm:$0xff]
  %v78 = vld [vmem:[%s1 + $0x10] sm:$0xff]
  %v79 = vld [vmem:[%s1 + $0x18] sm:$0xff]
  %v80 = vld [vmem:[%s3] sm:$0xff]
  %v81 = vld [vmem:[%s3 + $0x8] sm:$0xff]
  %v82 = vld [vmem:[%s3 + $0x10] sm:$0xff]
  %v83 = vld [vmem:[%s3 + $0x18] sm:$0xff]
  %v84 = vld [vmem:[%s4] sm:$0x1]
  %v86 = vlaneseq
  %v87 = vshrl.u32 %v86, 7
  %v88 = vsub.s32 0, %v87
  %v89 = vrot.slane %v84, %v88
  %vm91 = vcmask 261120
  %v93 = vsel %vm91, %v74, 0
  %v96 = vsel %vm91, %v75, 0
  %98 = vmatprep.subr.mxu0 0.0
  %99 = vmatpush1.msra.mxu0 %v80
  %100 = vmatprep.subr.mxu0 0.0
  %101 = vmatpush1.msra.mxu0 %v81
  %102 = vmatprep.subr.mxu0 0.0
  %103 = vmatpush1.msra.mxu0 %v82
  %104 = vmatprep.subr.mxu0 0.0
  %105 = vmatpush1.msra.mxu0 %v83
  %106 = vmatprep.subr.mxu0 0.0
  %107 = vmatpush1.msra.mxu0 0.0
  %108 = vmatprep.subr.mxu0 0.0
  %109 = vmatpush1.msra.mxu0 0.0
  %110 = vmatprep.subr.mxu0 0.0
  %111 = vmatpush1.msra.mxu0 0.0
  %112 = vmatprep.subr.mxu0 0.0
  %113 = vmatpush1.msra.mxu0 0.0
  %114 = vmatprep.subr.mxu0 0.0
  %115 = vmatpush1.msra.mxu0 0.0
  %116 = vmatprep.subr.mxu0 0.0
  %117 = vmatpush1.msra.mxu0 0.0
  %118 = vmatprep.subr.mxu0 0.0
  %119 = vmatpush1.msra.mxu0 0.0
  %120 = vmatprep.subr.mxu0 0.0
  %121 = vmatpush1.msra.mxu0 0.0
  %122 = vmatprep.subr.mxu0 0.0
  %123 = vmatpush1.msra.mxu0 0.0
  %124 = vmatprep.subr.mxu0 0.0
  %125 = vmatpush1.msra.mxu0 0.0
  %126 = vmatprep.subr.mxu0 0.0
  %127 = vmatpush1.msra.mxu0 0.0
  %128 = vmatprep.subr.mxu0 0.0
  %129 = vmatpush1.msra.mxu0 0.0
  %130 = vmatprep.subr.mxu0 0.0
  %131 = vmatpush1.msra.mxu0 0.0
  %132 = vmatprep.subr.mxu0 0.0
  %133 = vmatpush1.msra.mxu0 0.0
  %134 = vmatprep.subr.mxu0 0.0
  %135 = vmatpush1.msra.mxu0 0.0
  %136 = vmatprep.subr.mxu0 0.0
  %137 = vmatpush1.msra.mxu0 0.0
  %138 = vmatprep.subr.mxu0 0.0
  %139 = vmatpush1.msra.mxu0 0.0
  %140 = vmatprep.subr.mxu0 0.0
  %141 = vmatpush1.msra.mxu0 0.0
  %142 = vmatprep.subr.mxu0 0.0
  %143 = vmatpush1.msra.mxu0 0.0
  %144 = vmatprep.subr.mxu0 0.0
  %145 = vmatpush1.msra.mxu0 0.0
  %146 = vmatprep.subr.mxu0 0.0
  %147 = vmatpush1.msra.mxu0 0.0
  %148 = vmatprep.subr.mxu0 0.0
  %149 = vmatpush1.msra.mxu0 0.0
  %150 = vmatprep.subr.mxu0 0.0
  %151 = vmatpush1.msra.mxu0 0.0
  %152 = vmatprep.subr.mxu0 0.0
  %153 = vmatpush1.msra.mxu0 0.0
  %154 = vmatprep.subr.mxu0 0.0
  %155 = vmatpush1.msra.mxu0 0.0
  %156 = vmatprep.subr.mxu0 0.0
  %157 = vmatpush1.msra.mxu0 0.0
  %158 = vmatprep.subr.mxu0 0.0
  %159 = vmatpush1.msra.mxu0 0.0
  %160 = vmatprep.subr.mxu0 0.0
  %161 = vmatpush1.msra.mxu0 0.0
  %162 = vmatprep.mubr.f32.mxu0 0.0
  %163 = vmatmul.mubr.f32.gmra.mrb[0].mxu0 %v93
  %v164 = vpop.f32.mrb[0].mxu0
  %v165 = vadd.f32 %v89, %v164
  %v166 = vpop.f32.mrb[0].mxu0
  %167 = vmatprep.mubr.f32.mxu0 0.0
  %168 = vmatmul.mubr.f32.gmra.mrb[0].mxu0 %v96
  %v169 = vpop.f32.mrb[0].mxu0
  %v170 = vadd.f32 %v89, %v169
  %v171 = vpop.f32.mrb[0].mxu0
  %172 = vdwg.mxu0
  %v173 = vld [vmem:[%s2] sm:$0xff]
  %v174 = vld [vmem:[%s2 + $0x8] sm:$0xff]
  %176 = vrot.lane.b32.xlu0 %v165, 96
  %v177 = vpop.permute.xlu0 %176
  %v178 = vsel %vm91, %v165, 0
  %v180 = vsel %vm91, %v177, 0
  %182 = vmatprep.subr.mxu0 0.0
  %183 = vmatpush1.xpose.msra.mxu0 %v180
  %184 = vmatprep.subr.mxu0 0.0
  %185 = vmatpush1.xpose.msra.mxu0 0.0
  %186 = vmatprep.subr.mxu0 0.0
  %187 = vmatpush1.xpose.msra.mxu0 0.0
  %188 = vmatprep.subr.mxu0 0.0
  %189 = vmatpush1.xpose.msra.mxu0 0.0
  %190 = vmatprep.subr.mxu0 0.0
  %191 = vmatpush1.xpose.msra.mxu0 0.0
  %192 = vmatprep.subr.mxu0 0.0
  %193 = vmatpush1.xpose.msra.mxu0 0.0
  %194 = vmatprep.subr.mxu0 0.0
  %195 = vmatpush1.xpose.msra.mxu0 0.0
  %196 = vmatprep.subr.mxu0 0.0
  %197 = vmatpush1.xpose.msra.mxu0 0.0
  %198 = vmatprep.subr.mxu0 0.0
  %199 = vmatpush1.xpose.msra.mxu0 0.0
  %200 = vmatprep.subr.mxu0 0.0
  %201 = vmatpush1.xpose.msra.mxu0 0.0
  %202 = vmatprep.subr.mxu0 0.0
  %203 = vmatpush1.xpose.msra.mxu0 0.0
  %204 = vmatprep.subr.mxu0 0.0
  %205 = vmatpush1.xpose.msra.mxu0 0.0
  %206 = vmatprep.subr.mxu0 0.0
  %207 = vmatpush1.xpose.msra.mxu0 0.0
  %208 = vmatprep.subr.mxu0 0.0
  %209 = vmatpush1.xpose.msra.mxu0 0.0
  %210 = vmatprep.subr.mxu0 0.0
  %211 = vmatpush1.xpose.msra.mxu0 0.0
  %212 = vmatprep.subr.mxu0 0.0
  %213 = vmatpush1.xpose.msra.mxu0 0.0
  %214 = vmatprep.subr.mxu0 0.0
  %215 = vmatpush1.xpose.msra.mxu0 0.0
  %216 = vmatprep.subr.mxu0 0.0
  %217 = vmatpush1.xpose.msra.mxu0 0.0
  %218 = vmatprep.subr.mxu0 0.0
  %219 = vmatpush1.xpose.msra.mxu0 0.0
  %220 = vmatprep.subr.mxu0 0.0
  %221 = vmatpush1.xpose.msra.mxu0 0.0
  %222 = vmatprep.subr.mxu0 0.0
  %223 = vmatpush1.xpose.msra.mxu0 0.0
  %224 = vmatprep.subr.mxu0 0.0
  %225 = vmatpush1.xpose.msra.mxu0 0.0
  %226 = vmatprep.subr.mxu0 0.0
  %227 = vmatpush1.xpose.msra.mxu0 0.0
  %228 = vmatprep.subr.mxu0 0.0
  %229 = vmatpush1.xpose.msra.mxu0 0.0
  %230 = vmatprep.subr.mxu0 0.0
  %231 = vmatpush1.xpose.msra.mxu0 0.0
  %232 = vmatprep.subr.mxu0 0.0
  %233 = vmatpush1.xpose.msra.mxu0 0.0
  %234 = vmatprep.subr.mxu0 0.0
  %235 = vmatpush1.xpose.msra.mxu0 0.0
  %236 = vmatprep.subr.mxu0 0.0
  %237 = vmatpush1.xpose.msra.mxu0 0.0
  %238 = vmatprep.subr.mxu0 0.0
  %239 = vmatpush1.xpose.msra.mxu0 0.0
  %240 = vmatprep.subr.mxu0 0.0
  %241 = vmatpush1.xpose.msra.mxu0 0.0
  %242 = vmatprep.subr.mxu0 0.0
  %243 = vmatpush1.xpose.msra.mxu0 0.0
  %244 = vmatprep.subr.mxu0 0.0
  %245 = vmatpush1.xpose.msra.mxu0 0.0
  %246 = vmatprep.mubr.f32.mxu0 0.0
  %247 = vmatmul.mubr.f32.gmra.mrb[0].mxu0 %v178
  %v248 = vpop.f32.mrb[0].mxu0
  %v249 = vadd.f32 0.0, %v248
  %v250 = vpop.f32.mrb[0].mxu0
  %251 = vdwg.mxu0
  %v252 = vmul.f32 %v249, 0.17677669
  %v253 = vadd.f32 %v252, %v173
  %vm254 = vcmask 64512
  %v255 = vsel %vm254, %v253, -inf
  %256 = vmax.xlane.f32.xlu0 %v255
  %v257 = vpop.xlane.xlu0 %256
  %v258 = vsub.f32 %v253, %v257
  %v259 = vmul.f32 %v258, 1.442695
  %v260 = vpow.pop %v259
  %v261 = vsel %vm254, %v260, 0.0
  %262 = vadd.xlane.f32.xlu0 %v261
  %v263 = vpop.xlane.xlu0 %262
  %v264 = vrcp.pop %v263
  %v265 = vmul.f32 %v260, %v264
  %266 = vrot.lane.b32.xlu0 %v165, 64
  %v267 = vpop.permute.xlu0 %266
  %v270 = vsel %vm254, %v265, 0
  %272 = vmatprep.subr.mxu0 0.0
  %273 = vmatpush1.msra.mxu0 %v267
  %274 = vmatprep.subr.mxu0 0.0
  %275 = vmatpush1.msra.mxu0 0.0
  %276 = vmatprep.subr.mxu0 0.0
  %277 = vmatpush1.msra.mxu0 0.0
  %278 = vmatprep.subr.mxu0 0.0
  %279 = vmatpush1.msra.mxu0 0.0
  %280 = vmatprep.subr.mxu0 0.0
  %281 = vmatpush1.msra.mxu0 0.0
  %282 = vmatprep.subr.mxu0 0.0
  %283 = vmatpush1.msra.mxu0 0.0
  %284 = vmatprep.subr.mxu0 0.0
  %285 = vmatpush1.msra.mxu0 0.0
  %286 = vmatprep.subr.mxu0 0.0
  %287 = vmatpush1.msra.mxu0 0.0
  %288 = vmatprep.subr.mxu0 0.0
  %289 = vmatpush1.msra.mxu0 0.0
  %290 = vmatprep.subr.mxu0 0.0
  %291 = vmatpush1.msra.mxu0 0.0
  %292 = vmatprep.subr.mxu0 0.0
  %293 = vmatpush1.msra.mxu0 0.0
  %294 = vmatprep.subr.mxu0 0.0
  %295 = vmatpush1.msra.mxu0 0.0
  %296 = vmatprep.subr.mxu0 0.0
  %297 = vmatpush1.msra.mxu0 0.0
  %298 = vmatprep.subr.mxu0 0.0
  %299 = vmatpush1.msra.mxu0 0.0
  %300 = vmatprep.subr.mxu0 0.0
  %301 = vmatpush1.msra.mxu0 0.0
  %302 = vmatprep.subr.mxu0 0.0
  %303 = vmatpush1.msra.mxu0 0.0
  %304 = vmatprep.subr.mxu0 0.0
  %305 = vmatpush1.msra.mxu0 0.0
  %306 = vmatprep.subr.mxu0 0.0
  %307 = vmatpush1.msra.mxu0 0.0
  %308 = vmatprep.subr.mxu0 0.0
  %309 = vmatpush1.msra.mxu0 0.0
  %310 = vmatprep.subr.mxu0 0.0
  %311 = vmatpush1.msra.mxu0 0.0
  %312 = vmatprep.subr.mxu0 0.0
  %313 = vmatpush1.msra.mxu0 0.0
  %314 = vmatprep.subr.mxu0 0.0
  %315 = vmatpush1.msra.mxu0 0.0
  %316 = vmatprep.subr.mxu0 0.0
  %317 = vmatpush1.msra.mxu0 0.0
  %318 = vmatprep.subr.mxu0 0.0
  %319 = vmatpush1.msra.mxu0 0.0
  %320 = vmatprep.subr.mxu0 0.0
  %321 = vmatpush1.msra.mxu0 0.0
  %322 = vmatprep.subr.mxu0 0.0
  %323 = vmatpush1.msra.mxu0 0.0
  %324 = vmatprep.subr.mxu0 0.0
  %325 = vmatpush1.msra.mxu0 0.0
  %326 = vmatprep.subr.mxu0 0.0
  %327 = vmatpush1.msra.mxu0 0.0
  %328 = vmatprep.subr.mxu0 0.0
  %329 = vmatpush1.msra.mxu0 0.0
  %330 = vmatprep.subr.mxu0 0.0
  %331 = vmatpush1.msra.mxu0 0.0
  %332 = vmatprep.subr.mxu0 0.0
  %333 = vmatpush1.msra.mxu0 0.0
  %334 = vmatprep.subr.mxu0 0.0
  %335 = vmatpush1.msra.mxu0 0.0
  %336 = vmatprep.mubr.f32.mxu0 0.0
  %337 = vmatmul.mubr.f32.gmra.mrb[0].mxu0 %v270
  %v338 = vpop.f32.mrb[0].mxu0
  %v339 = vadd.f32 0.0, %v338
  %v340 = vpop.f32.mrb[0].mxu0
  %341 = vdwg.mxu0
  %343 = vrot.lane.b32.xlu0 %v170, 96
  %v344 = vpop.permute.xlu0 %343
  %v345 = vsel %vm91, %v170, 0
  %v347 = vsel %vm91, %v344, 0
  %349 = vmatprep.subr.mxu0 0.0
  %350 = vmatpush1.xpose.msra.mxu0 %v347
  %351 = vmatprep.subr.mxu0 0.0
  %352 = vmatpush1.xpose.msra.mxu0 0.0
  %353 = vmatprep.subr.mxu0 0.0
  %354 = vmatpush1.xpose.msra.mxu0 0.0
  %355 = vmatprep.subr.mxu0 0.0
  %356 = vmatpush1.xpose.msra.mxu0 0.0
  %357 = vmatprep.subr.mxu0 0.0
  %358 = vmatpush1.xpose.msra.mxu0 0.0
  %359 = vmatprep.subr.mxu0 0.0
  %360 = vmatpush1.xpose.msra.mxu0 0.0
  %361 = vmatprep.subr.mxu0 0.0
  %362 = vmatpush1.xpose.msra.mxu0 0.0
  %363 = vmatprep.subr.mxu0 0.0
  %364 = vmatpush1.xpose.msra.mxu0 0.0
  %365 = vmatprep.subr.mxu0 0.0
  %366 = vmatpush1.xpose.msra.mxu0 0.0
  %367 = vmatprep.subr.mxu0 0.0
  %368 = vmatpush1.xpose.msra.mxu0 0.0
  %369 = vmatprep.subr.mxu0 0.0
  %370 = vmatpush1.xpose.msra.mxu0 0.0
  %371 = vmatprep.subr.mxu0 0.0
  %372 = vmatpush1.xpose.msra.mxu0 0.0
  %373 = vmatprep.subr.mxu0 0.0
  %374 = vmatpush1.xpose.msra.mxu0 0.0
  %375 = vmatprep.subr.mxu0 0.0
  %376 = vmatpush1.xpose.msra.mxu0 0.0
  %377 = vmatprep.subr.mxu0 0.0
  %378 = vmatpush1.xpose.msra.mxu0 0.0
  %379 = vmatprep.subr.mxu0 0.0
  %380 = vmatpush1.xpose.msra.mxu0 0.0
  %381 = vmatprep.subr.mxu0 0.0
  %382 = vmatpush1.xpose.msra.mxu0 0.0
  %383 = vmatprep.subr.mxu0 0.0
  %384 = vmatpush1.xpose.msra.mxu0 0.0
  %385 = vmatprep.subr.mxu0 0.0
  %386 = vmatpush1.xpose.msra.mxu0 0.0
  %387 = vmatprep.subr.mxu0 0.0
  %388 = vmatpush1.xpose.msra.mxu0 0.0
  %389 = vmatprep.subr.mxu0 0.0
  %390 = vmatpush1.xpose.msra.mxu0 0.0
  %391 = vmatprep.subr.mxu0 0.0
  %392 = vmatpush1.xpose.msra.mxu0 0.0
  %393 = vmatprep.subr.mxu0 0.0
  %394 = vmatpush1.xpose.msra.mxu0 0.0
  %395 = vmatprep.subr.mxu0 0.0
  %396 = vmatpush1.xpose.msra.mxu0 0.0
  %397 = vmatprep.subr.mxu0 0.0
  %398 = vmatpush1.xpose.msra.mxu0 0.0
  %399 = vmatprep.subr.mxu0 0.0
  %400 = vmatpush1.xpose.msra.mxu0 0.0
  %401 = vmatprep.subr.mxu0 0.0
  %402 = vmatpush1.xpose.msra.mxu0 0.0
  %403 = vmatprep.subr.mxu0 0.0
  %404 = vmatpush1.xpose.msra.mxu0 0.0
  %405 = vmatprep.subr.mxu0 0.0
  %406 = vmatpush1.xpose.msra.mxu0 0.0
  %407 = vmatprep.subr.mxu0 0.0
  %408 = vmatpush1.xpose.msra.mxu0 0.0
  %409 = vmatprep.subr.mxu0 0.0
  %410 = vmatpush1.xpose.msra.mxu0 0.0
  %411 = vmatprep.subr.mxu0 0.0
  %412 = vmatpush1.xpose.msra.mxu0 0.0
  %413 = vmatprep.mubr.f32.mxu0 0.0
  %414 = vmatmul.mubr.f32.gmra.mrb[0].mxu0 %v345
  %v415 = vpop.f32.mrb[0].mxu0
  %v416 = vadd.f32 0.0, %v415
  %v417 = vpop.f32.mrb[0].mxu0
  %418 = vdwg.mxu0
  %v419 = vmul.f32 %v416, 0.17677669
  %v420 = vadd.f32 %v419, %v174
  %v421 = vsel %vm254, %v420, -inf
  %422 = vmax.xlane.f32.xlu0 %v421
  %v423 = vpop.xlane.xlu0 %422
  %v424 = vsub.f32 %v420, %v423
  %v425 = vmul.f32 %v424, 1.442695
  %v426 = vpow.pop %v425
  %v427 = vsel %vm254, %v426, 0.0
  %428 = vadd.xlane.f32.xlu0 %v427
  %v429 = vpop.xlane.xlu0 %428
  %v430 = vrcp.pop %v429
  %v431 = vmul.f32 %v426, %v430
  %432 = vrot.lane.b32.xlu0 %v170, 64
  %v433 = vpop.permute.xlu0 %432
  %v436 = vsel %vm254, %v431, 0
  %438 = vmatprep.subr.mxu0 0.0
  %439 = vmatpush1.msra.mxu0 %v433
  %440 = vmatprep.subr.mxu0 0.0
  %441 = vmatpush1.msra.mxu0 0.0
  %442 = vmatprep.subr.mxu0 0.0
  %443 = vmatpush1.msra.mxu0 0.0
  %444 = vmatprep.subr.mxu0 0.0
  %445 = vmatpush1.msra.mxu0 0.0
  %446 = vmatprep.subr.mxu0 0.0
  %447 = vmatpush1.msra.mxu0 0.0
  %448 = vmatprep.subr.mxu0 0.0
  %449 = vmatpush1.msra.mxu0 0.0
  %450 = vmatprep.subr.mxu0 0.0
  %451 = vmatpush1.msra.mxu0 0.0
  %452 = vmatprep.subr.mxu0 0.0
  %453 = vmatpush1.msra.mxu0 0.0
  %454 = vmatprep.subr.mxu0 0.0
  %455 = vmatpush1.msra.mxu0 0.0
  %456 = vmatprep.subr.mxu0 0.0
  %457 = vmatpush1.msra.mxu0 0.0
  %458 = vmatprep.subr.mxu0 0.0
  %459 = vmatpush1.msra.mxu0 0.0
  %460 = vmatprep.subr.mxu0 0.0
  %461 = vmatpush1.msra.mxu0 0.0
  %462 = vmatprep.subr.mxu0 0.0
  %463 = vmatpush1.msra.mxu0 0.0
  %464 = vmatprep.subr.mxu0 0.0
  %465 = vmatpush1.msra.mxu0 0.0
  %466 = vmatprep.subr.mxu0 0.0
  %467 = vmatpush1.msra.mxu0 0.0
  %468 = vmatprep.subr.mxu0 0.0
  %469 = vmatpush1.msra.mxu0 0.0
  %470 = vmatprep.subr.mxu0 0.0
  %471 = vmatpush1.msra.mxu0 0.0
  %472 = vmatprep.subr.mxu0 0.0
  %473 = vmatpush1.msra.mxu0 0.0
  %474 = vmatprep.subr.mxu0 0.0
  %475 = vmatpush1.msra.mxu0 0.0
  %476 = vmatprep.subr.mxu0 0.0
  %477 = vmatpush1.msra.mxu0 0.0
  %478 = vmatprep.subr.mxu0 0.0
  %479 = vmatpush1.msra.mxu0 0.0
  %480 = vmatprep.subr.mxu0 0.0
  %481 = vmatpush1.msra.mxu0 0.0
  %482 = vmatprep.subr.mxu0 0.0
  %483 = vmatpush1.msra.mxu0 0.0
  %484 = vmatprep.subr.mxu0 0.0
  %485 = vmatpush1.msra.mxu0 0.0
  %486 = vmatprep.subr.mxu0 0.0
  %487 = vmatpush1.msra.mxu0 0.0
  %488 = vmatprep.subr.mxu0 0.0
  %489 = vmatpush1.msra.mxu0 0.0
  %490 = vmatprep.subr.mxu0 0.0
  %491 = vmatpush1.msra.mxu0 0.0
  %492 = vmatprep.subr.mxu0 0.0
  %493 = vmatpush1.msra.mxu0 0.0
  %494 = vmatprep.subr.mxu0 0.0
  %495 = vmatpush1.msra.mxu0 0.0
  %496 = vmatprep.subr.mxu0 0.0
  %497 = vmatpush1.msra.mxu0 0.0
  %498 = vmatprep.subr.mxu0 0.0
  %499 = vmatpush1.msra.mxu0 0.0
  %500 = vmatprep.subr.mxu0 0.0
  %501 = vmatpush1.msra.mxu0 0.0
  %502 = vmatprep.mubr.f32.mxu0 0.0
  %503 = vmatmul.mubr.f32.gmra.mrb[0].mxu0 %v436
  %v504 = vpop.f32.mrb[0].mxu0
  %v505 = vadd.f32 0.0, %v504
  %v506 = vpop.f32.mrb[0].mxu0
  %507 = vdwg.mxu0
  %v508 = vld [vmem:[%s5] sm:$0xff]
  %v509 = vld [vmem:[%s5 + $0x8] sm:$0xff]
  %v510 = vld [vmem:[%s5 + $0x10] sm:$0xff]
  %v511 = vld [vmem:[%s5 + $0x18] sm:$0xff]
  %v512 = vld [vmem:[%s6] sm:$0x1]
  %v514 = vlaneseq
  %v515 = vshrl.u32 %v514, 7
  %v516 = vsub.s32 0, %v515
  %v517 = vrot.slane %v512, %v516
  %v520 = vsel %vm91, %v339, 0
  %v523 = vsel %vm91, %v505, 0
  %525 = vmatprep.subr.mxu0 0.0
  %526 = vmatpush1.msra.mxu0 %v508
  %527 = vmatprep.subr.mxu0 0.0
  %528 = vmatpush1.msra.mxu0 %v509
  %529 = vmatprep.subr.mxu0 0.0
  %530 = vmatpush1.msra.mxu0 %v510
  %531 = vmatprep.subr.mxu0 0.0
  %532 = vmatpush1.msra.mxu0 %v511
  %533 = vmatprep.subr.mxu0 0.0
  %534 = vmatpush1.msra.mxu0 0.0
  %535 = vmatprep.subr.mxu0 0.0
  %536 = vmatpush1.msra.mxu0 0.0
  %537 = vmatprep.subr.mxu0 0.0
  %538 = vmatpush1.msra.mxu0 0.0
  %539 = vmatprep.subr.mxu0 0.0
  %540 = vmatpush1.msra.mxu0 0.0
  %541 = vmatprep.subr.mxu0 0.0
  %542 = vmatpush1.msra.mxu0 0.0
  %543 = vmatprep.subr.mxu0 0.0
  %544 = vmatpush1.msra.mxu0 0.0
  %545 = vmatprep.subr.mxu0 0.0
  %546 = vmatpush1.msra.mxu0 0.0
  %547 = vmatprep.subr.mxu0 0.0
  %548 = vmatpush1.msra.mxu0 0.0
  %549 = vmatprep.subr.mxu0 0.0
  %550 = vmatpush1.msra.mxu0 0.0
  %551 = vmatprep.subr.mxu0 0.0
  %552 = vmatpush1.msra.mxu0 0.0
  %553 = vmatprep.subr.mxu0 0.0
  %554 = vmatpush1.msra.mxu0 0.0
  %555 = vmatprep.subr.mxu0 0.0
  %556 = vmatpush1.msra.mxu0 0.0
  %557 = vmatprep.subr.mxu0 0.0
  %558 = vmatpush1.msra.mxu0 0.0
  %559 = vmatprep.subr.mxu0 0.0
  %560 = vmatpush1.msra.mxu0 0.0
  %561 = vmatprep.subr.mxu0 0.0
  %562 = vmatpush1.msra.mxu0 0.0
  %563 = vmatprep.subr.mxu0 0.0
  %564 = vmatpush1.msra.mxu0 0.0
  %565 = vmatprep.subr.mxu0 0.0
  %566 = vmatpush1.msra.mxu0 0.0
  %567 = vmatprep.subr.mxu0 0.0
  %568 = vmatpush1.msra.mxu0 0.0
  %569 = vmatprep.subr.mxu0 0.0
  %570 = vmatpush1.msra.mxu0 0.0
  %571 = vmatprep.subr.mxu0 0.0
  %572 = vmatpush1.msra.mxu0 0.0
  %573 = vmatprep.subr.mxu0 0.0
  %574 = vmatpush1.msra.mxu0 0.0
  %575 = vmatprep.subr.mxu0 0.0
  %576 = vmatpush1.msra.mxu0 0.0
  %577 = vmatprep.subr.mxu0 0.0
  %578 = vmatpush1.msra.mxu0 0.0
  %579 = vmatprep.subr.mxu0 0.0
  %580 = vmatpush1.msra.mxu0 0.0
  %581 = vmatprep.subr.mxu0 0.0
  %582 = vmatpush1.msra.mxu0 0.0
  %583 = vmatprep.subr.mxu0 0.0
  %584 = vmatpush1.msra.mxu0 0.0
  %585 = vmatprep.subr.mxu0 0.0
  %586 = vmatpush1.msra.mxu0 0.0
  %587 = vmatprep.subr.mxu0 0.0
  %588 = vmatpush1.msra.mxu0 0.0
  %589 = vmatprep.mubr.f32.mxu0 0.0
  %590 = vmatmul.mubr.f32.gmra.mrb[0].mxu0 %v520
  %v591 = vpop.f32.mrb[0].mxu0
  %v592 = vadd.f32 %v517, %v591
  %v593 = vpop.f32.mrb[0].mxu0
  %594 = vmatprep.mubr.f32.mxu0 0.0
  %595 = vmatmul.mubr.f32.gmra.mrb[0].mxu0 %v523
  %v596 = vpop.f32.mrb[0].mxu0
  %v597 = vadd.f32 %v517, %v596
  %v598 = vpop.f32.mrb[0].mxu0
  %599 = vdwg.mxu0
  %v600 = vadd.f32 %v74, %v592
  %v601 = vadd.f32 %v75, %v597
  %v602 = vld [vmem:[%s17] sm:$0x3]
  %v603 = vsel %vm91, %v600, 0.0
  %604 = vadd.xlane.f32.xlu0 %v603
  %v605 = vpop.xlane.xlu0 %604
  %v606 = vsel %vm91, %v601, 0.0
  %607 = vadd.xlane.f32.xlu0 %v606
  %v608 = vpop.xlane.xlu0 %607
  %v609 = vrcp.pop 32.0
  %v610 = vmul.f32 %v605, %v609
  %v611 = vmul.f32 %v608, %v609
  %v612 = vsub.f32 %v600, %v610
  %v613 = vsub.f32 %v601, %v611
  %v614 = vmul.f32 %v612, %v612
  %v615 = vmul.f32 %v613, %v613
  %v616 = vsel %vm91, %v614, 0.0
  %617 = vadd.xlane.f32.xlu0 %v616
  %v618 = vpop.xlane.xlu0 %617
  %v619 = vsel %vm91, %v615, 0.0
  %620 = vadd.xlane.f32.xlu0 %v619
  %v621 = vpop.xlane.xlu0 %620
  %v622 = vmul.f32 %v618, %v609
  %v623 = vmul.f32 %v621, %v609
  %v624 = vadd.f32 %v622, 1e-05
  %v625 = vadd.f32 %v623, 1e-05
  %v626 = vrsqrt.pop %v624
  %v627 = vrsqrt.pop %v625
  %v628 = vmul.f32 %v612, %v626
  %v629 = vmul.f32 %v613, %v627
  %v630 = vlaneseq
  %v631 = vshrl.u32 %v630, 7
  %v632 = vsub.s32 0, %v631
  %v633 = vrot.slane %v602, %v632
  %v634 = vmul.f32 %v628, %v633
  %v635 = vmul.f32 %v629, %v633
  %v636 = vlaneseq
  %v637 = vshrl.u32 %v636, 7
  %v638 = vsub.s32 1, %v637
  %v639 = vrot.slane %v602, %v638
  %v640 = vadd.f32 %v634, %v639
  %v641 = vadd.f32 %v635, %v639
  %v642 = vld [vmem:[%s7] sm:$0xff]
  %v643 = vld [vmem:[%s7 + $0x8] sm:$0xff]
  %v644 = vld [vmem:[%s7 + $0x10] sm:$0xff]
  %v645 = vld [vmem:[%s7 + $0x18] sm:$0xff]
  %v646 = vld [vmem:[%s8] sm:$0x1]
  %v648 = vlaneseq
  %v649 = vshrl.u32 %v648, 7
  %v650 = vsub.s32 0, %v649
  %v651 = vrot.slane %v646, %v650
  %v654 = vsel %vm91, %v640, 0
  %v657 = vsel %vm91, %v641, 0
  %659 = vmatprep.subr.mxu0 0.0
  %660 = vmatpush1.msra.mxu0 %v642
  %661 = vmatprep.subr.mxu0 0.0
  %662 = vmatpush1.msra.mxu0 %v643
  %663 = vmatprep.subr.mxu0 0.0
  %664 = vmatpush1.msra.mxu0 %v644
  %665 = vmatprep.subr.mxu0 0.0
  %666 = vmatpush1.msra.mxu0 %v645
  %667 = vmatprep.subr.mxu0 0.0
  %668 = vmatpush1.msra.mxu0 0.0
  %669 = vmatprep.subr.mxu0 0.0
  %670 = vmatpush1.msra.mxu0 0.0
  %671 = vmatprep.subr.mxu0 0.0
  %672 = vmatpush1.msra.mxu0 0.0
  %673 = vmatprep.subr.mxu0 0.0
  %674 = vmatpush1.msra.mxu0 0.0
  %675 = vmatprep.subr.mxu0 0.0
  %676 = vmatpush1.msra.mxu0 0.0
  %677 = vmatprep.subr.mxu0 0.0
  %678 = vmatpush1.msra.mxu0 0.0
  %679 = vmatprep.subr.mxu0 0.0
  %680 = vmatpush1.msra.mxu0 0.0
  %681 = vmatprep.subr.mxu0 0.0
  %682 = vmatpush1.msra.mxu0 0.0
  %683 = vmatprep.subr.mxu0 0.0
  %684 = vmatpush1.msra.mxu0 0.0
  %685 = vmatprep.subr.mxu0 0.0
  %686 = vmatpush1.msra.mxu0 0.0
  %687 = vmatprep.subr.mxu0 0.0
  %688 = vmatpush1.msra.mxu0 0.0
  %689 = vmatprep.subr.mxu0 0.0
  %690 = vmatpush1.msra.mxu0 0.0
  %691 = vmatprep.subr.mxu0 0.0
  %692 = vmatpush1.msra.mxu0 0.0
  %693 = vmatprep.subr.mxu0 0.0
  %694 = vmatpush1.msra.mxu0 0.0
  %695 = vmatprep.subr.mxu0 0.0
  %696 = vmatpush1.msra.mxu0 0.0
  %697 = vmatprep.subr.mxu0 0.0
  %698 = vmatpush1.msra.mxu0 0.0
  %699 = vmatprep.subr.mxu0 0.0
  %700 = vmatpush1.msra.mxu0 0.0
  %701 = vmatprep.subr.mxu0 0.0
  %702 = vmatpush1.msra.mxu0 0.0
  %703 = vmatprep.subr.mxu0 0.0
  %704 = vmatpush1.msra.mxu0 0.0
  %705 = vmatprep.subr.mxu0 0.0
  %706 = vmatpush1.msra.mxu0 0.0
  %707 = vmatprep.subr.mxu0 0.0
  %708 = vmatpush1.msra.mxu0 0.0
  %709 = vmatprep.subr.mxu0 0.0
  %710 = vmatpush1.msra.mxu0 0.0
  %711 = vmatprep.subr.mxu0 0.0
  %712 = vmatpush1.msra.mxu0 0.0
  %713 = vmatprep.subr.mxu0 0.0
  %714 = vmatpush1.msra.mxu0 0.0
  %715 = vmatprep.subr.mxu0 0.0
  %716 = vmatpush1.msra.mxu0 0.0
  %717 = vmatprep.subr.mxu0 0.0
  %718 = vmatpush1.msra.mxu0 0.0
  %719 = vmatprep.subr.mxu0 0.0
  %720 = vmatpush1.msra.mxu0 0.0
  %721 = vmatprep.subr.mxu0 0.0
  %722 = vmatpush1.msra.mxu0 0.0
  %723 = vmatprep.mubr.f32.mxu0 0.0
  %724 = vmatmul.mubr.f32.gmra.mrb[0].mxu0 %v654
  %v725 = vpop.f32.mrb[0].mxu0
  %v726 = vadd.f32 %v651, %v725
  %v727 = vpop.f32.mrb[0].mxu0
  %728 = vmatprep.mubr.f32.mxu0 0.0
  %729 = vmatmul.mubr.f32.gmra.mrb[0].mxu0 %v657
  %v730 = vpop.f32.mrb[0].mxu0
  %v731 = vadd.f32 %v651, %v730
  %v732 = vpop.f32.mrb[0].mxu0
  %733 = vdwg.mxu0
  %v734 = vld [vmem:[%s9] sm:$0xff]
  %v735 = vld [vmem:[%s9 + $0x8] sm:$0xff]
  %v736 = vld [vmem:[%s9 + $0x10] sm:$0xff]
  %v737 = vld [vmem:[%s9 + $0x18] sm:$0xff]
  %v738 = vld [vmem:[%s10] sm:$0x1]
  %v740 = vlaneseq
  %v741 = vshrl.u32 %v740, 7
  %v742 = vsub.s32 0, %v741
  %v743 = vrot.slane %v738, %v742
  %v746 = vsel %vm91, %v76, 0
  %v749 = vsel %vm91, %v77, 0
  %v752 = vsel %vm91, %v78, 0
  %v755 = vsel %vm91, %v79, 0
  %757 = vmatprep.subr.mxu0 0.0
  %758 = vmatpush1.msra.mxu0 %v734
  %759 = vmatprep.subr.mxu0 0.0
  %760 = vmatpush1.msra.mxu0 %v735
  %761 = vmatprep.subr.mxu0 0.0
  %762 = vmatpush1.msra.mxu0 %v736
  %763 = vmatprep.subr.mxu0 0.0
  %764 = vmatpush1.msra.mxu0 %v737
  %765 = vmatprep.subr.mxu0 0.0
  %766 = vmatpush1.msra.mxu0 0.0
  %767 = vmatprep.subr.mxu0 0.0
  %768 = vmatpush1.msra.mxu0 0.0
  %769 = vmatprep.subr.mxu0 0.0
  %770 = vmatpush1.msra.mxu0 0.0
  %771 = vmatprep.subr.mxu0 0.0
  %772 = vmatpush1.msra.mxu0 0.0
  %773 = vmatprep.subr.mxu0 0.0
  %774 = vmatpush1.msra.mxu0 0.0
  %775 = vmatprep.subr.mxu0 0.0
  %776 = vmatpush1.msra.mxu0 0.0
  %777 = vmatprep.subr.mxu0 0.0
  %778 = vmatpush1.msra.mxu0 0.0
  %779 = vmatprep.subr.mxu0 0.0
  %780 = vmatpush1.msra.mxu0 0.0
  %781 = vmatprep.subr.mxu0 0.0
  %782 = vmatpush1.msra.mxu0 0.0
  %783 = vmatprep.subr.mxu0 0.0
  %784 = vmatpush1.msra.mxu0 0.0
  %785 = vmatprep.subr.mxu0 0.0
  %786 = vmatpush1.msra.mxu0 0.0
  %787 = vmatprep.subr.mxu0 0.0
  %788 = vmatpush1.msra.mxu0 0.0
  %789 = vmatprep.subr.mxu0 0.0
  %790 = vmatpush1.msra.mxu0 0.0
  %791 = vmatprep.subr.mxu0 0.0
  %792 = vmatpush1.msra.mxu0 0.0
  %793 = vmatprep.subr.mxu0 0.0
  %794 = vmatpush1.msra.mxu0 0.0
  %795 = vmatprep.subr.mxu0 0.0
  %796 = vmatpush1.msra.mxu0 0.0
  %797 = vmatprep.subr.mxu0 0.0
  %798 = vmatpush1.msra.mxu0 0.0
  %799 = vmatprep.subr.mxu0 0.0
  %800 = vmatpush1.msra.mxu0 0.0
  %801 = vmatprep.subr.mxu0 0.0
  %802 = vmatpush1.msra.mxu0 0.0
  %803 = vmatprep.subr.mxu0 0.0
  %804 = vmatpush1.msra.mxu0 0.0
  %805 = vmatprep.subr.mxu0 0.0
  %806 = vmatpush1.msra.mxu0 0.0
  %807 = vmatprep.subr.mxu0 0.0
  %808 = vmatpush1.msra.mxu0 0.0
  %809 = vmatprep.subr.mxu0 0.0
  %810 = vmatpush1.msra.mxu0 0.0
  %811 = vmatprep.subr.mxu0 0.0
  %812 = vmatpush1.msra.mxu0 0.0
  %813 = vmatprep.subr.mxu0 0.0
  %814 = vmatpush1.msra.mxu0 0.0
  %815 = vmatprep.subr.mxu0 0.0
  %816 = vmatpush1.msra.mxu0 0.0
  %817 = vmatprep.subr.mxu0 0.0
  %818 = vmatpush1.msra.mxu0 0.0
  %819 = vmatprep.subr.mxu0 0.0
  %820 = vmatpush1.msra.mxu0 0.0
  %821 = vmatprep.mubr.f32.mxu0 0.0
  %822 = vmatmul.mubr.f32.gmra.mrb[0].mxu0 %v746
  %v823 = vpop.f32.mrb[0].mxu0
  %v824 = vadd.f32 %v743, %v823
  %v825 = vpop.f32.mrb[0].mxu0
  %826 = vmatprep.mubr.f32.mxu0 0.0
  %827 = vmatmul.mubr.f32.gmra.mrb[0].mxu0 %v749
  %v828 = vpop.f32.mrb[0].mxu0
  %v829 = vadd.f32 %v743, %v828
  %v830 = vpop.f32.mrb[0].mxu0
  %831 = vmatprep.mubr.f32.mxu0 0.0
  %832 = vmatmul.mubr.f32.gmra.mrb[0].mxu0 %v752
  %v833 = vpop.f32.mrb[0].mxu0
  %v834 = vadd.f32 %v743, %v833
  %v835 = vpop.f32.mrb[0].mxu0
  %836 = vmatprep.mubr.f32.mxu0 0.0
  %837 = vmatmul.mubr.f32.gmra.mrb[0].mxu0 %v755
  %v838 = vpop.f32.mrb[0].mxu0
  %v839 = vadd.f32 %v743, %v838
  %v840 = vpop.f32.mrb[0].mxu0
  %841 = vdwg.mxu0
  %v843 = vsel %vm91, %v726, 0
  %v846 = vsel %vm91, %v824, 0
  %v849 = vsel %vm91, %v829, 0
  %851 = vmatprep.subr.mxu0 0.0
  %852 = vmatpush1.xpose.msra.mxu0 %v846
  %853 = vmatprep.subr.mxu0 0.0
  %854 = vmatpush1.xpose.msra.mxu0 %v849
  %855 = vmatprep.subr.mxu0 0.0
  %856 = vmatpush1.xpose.msra.mxu0 0.0
  %857 = vmatprep.subr.mxu0 0.0
  %858 = vmatpush1.xpose.msra.mxu0 0.0
  %859 = vmatprep.subr.mxu0 0.0
  %860 = vmatpush1.xpose.msra.mxu0 0.0
  %861 = vmatprep.subr.mxu0 0.0
  %862 = vmatpush1.xpose.msra.mxu0 0.0
  %863 = vmatprep.subr.mxu0 0.0
  %864 = vmatpush1.xpose.msra.mxu0 0.0
  %865 = vmatprep.subr.mxu0 0.0
  %866 = vmatpush1.xpose.msra.mxu0 0.0
  %867 = vmatprep.subr.mxu0 0.0
  %868 = vmatpush1.xpose.msra.mxu0 0.0
  %869 = vmatprep.subr.mxu0 0.0
  %870 = vmatpush1.xpose.msra.mxu0 0.0
  %871 = vmatprep.subr.mxu0 0.0
  %872 = vmatpush1.xpose.msra.mxu0 0.0
  %873 = vmatprep.subr.mxu0 0.0
  %874 = vmatpush1.xpose.msra.mxu0 0.0
  %875 = vmatprep.subr.mxu0 0.0
  %876 = vmatpush1.xpose.msra.mxu0 0.0
  %877 = vmatprep.subr.mxu0 0.0
  %878 = vmatpush1.xpose.msra.mxu0 0.0
  %879 = vmatprep.subr.mxu0 0.0
  %880 = vmatpush1.xpose.msra.mxu0 0.0
  %881 = vmatprep.subr.mxu0 0.0
  %882 = vmatpush1.xpose.msra.mxu0 0.0
  %883 = vmatprep.subr.mxu0 0.0
  %884 = vmatpush1.xpose.msra.mxu0 0.0
  %885 = vmatprep.subr.mxu0 0.0
  %886 = vmatpush1.xpose.msra.mxu0 0.0
  %887 = vmatprep.subr.mxu0 0.0
  %888 = vmatpush1.xpose.msra.mxu0 0.0
  %889 = vmatprep.subr.mxu0 0.0
  %890 = vmatpush1.xpose.msra.mxu0 0.0
  %891 = vmatprep.subr.mxu0 0.0
  %892 = vmatpush1.xpose.msra.mxu0 0.0
  %893 = vmatprep.subr.mxu0 0.0
  %894 = vmatpush1.xpose.msra.mxu0 0.0
  %895 = vmatprep.subr.mxu0 0.0
  %896 = vmatpush1.xpose.msra.mxu0 0.0
  %897 = vmatprep.subr.mxu0 0.0
  %898 = vmatpush1.xpose.msra.mxu0 0.0
  %899 = vmatprep.subr.mxu0 0.0
  %900 = vmatpush1.xpose.msra.mxu0 0.0
  %901 = vmatprep.subr.mxu0 0.0
  %902 = vmatpush1.xpose.msra.mxu0 0.0
  %903 = vmatprep.subr.mxu0 0.0
  %904 = vmatpush1.xpose.msra.mxu0 0.0
  %905 = vmatprep.subr.mxu0 0.0
  %906 = vmatpush1.xpose.msra.mxu0 0.0
  %907 = vmatprep.subr.mxu0 0.0
  %908 = vmatpush1.xpose.msra.mxu0 0.0
  %909 = vmatprep.subr.mxu0 0.0
  %910 = vmatpush1.xpose.msra.mxu0 0.0
  %911 = vmatprep.subr.mxu0 0.0
  %912 = vmatpush1.xpose.msra.mxu0 0.0
  %913 = vmatprep.subr.mxu0 0.0
  %914 = vmatpush1.xpose.msra.mxu0 0.0
  %915 = vmatprep.mubr.f32.mxu0 0.0
  %916 = vmatmul.mubr.f32.gmra.mrb[0].mxu0 %v843
  %v917 = vpop.f32.mrb[0].mxu0
  %v918 = vadd.f32 0.0, %v917
  %v919 = vpop.f32.mrb[0].mxu0
  %920 = vdwg.mxu0
  %v921 = vmul.f32 %v918, 0.17677669
  %vm922 = vcmask 130048
  %v923 = vsel %vm922, %v921, -inf
  %924 = vmax.xlane.f32.xlu0 %v923
  %v925 = vpop.xlane.xlu0 %924
  %v926 = vsub.f32 %v921, %v925
  %v927 = vmul.f32 %v926, 1.442695
  %v928 = vpow.pop %v927
  %v929 = vsel %vm922, %v928, 0.0
  %930 = vadd.xlane.f32.xlu0 %v929
  %v931 = vpop.xlane.xlu0 %930
  %v932 = vrcp.pop %v931
  %v933 = vmul.f32 %v928, %v932
  %934 = vrot.lane.b32.xlu0 %v824, 96
  %v935 = vpop.permute.xlu0 %934
  %936 = vrot.lane.b32.xlu0 %v829, 96
  %v937 = vpop.permute.xlu0 %936
  %v941 = vsel %vm922, %v933, 0
  %943 = vmatprep.subr.mxu0 0.0
  %944 = vmatpush1.msra.mxu0 %v935
  %945 = vmatprep.subr.mxu0 0.0
  %946 = vmatpush1.msra.mxu0 %v937
  %947 = vmatprep.subr.mxu0 0.0
  %948 = vmatpush1.msra.mxu0 0.0
  %949 = vmatprep.subr.mxu0 0.0
  %950 = vmatpush1.msra.mxu0 0.0
  %951 = vmatprep.subr.mxu0 0.0
  %952 = vmatpush1.msra.mxu0 0.0
  %953 = vmatprep.subr.mxu0 0.0
  %954 = vmatpush1.msra.mxu0 0.0
  %955 = vmatprep.subr.mxu0 0.0
  %956 = vmatpush1.msra.mxu0 0.0
  %957 = vmatprep.subr.mxu0 0.0
  %958 = vmatpush1.msra.mxu0 0.0
  %959 = vmatprep.subr.mxu0 0.0
  %960 = vmatpush1.msra.mxu0 0.0
  %961 = vmatprep.subr.mxu0 0.0
  %962 = vmatpush1.msra.mxu0 0.0
  %963 = vmatprep.subr.mxu0 0.0
  %964 = vmatpush1.msra.mxu0 0.0
  %965 = vmatprep.subr.mxu0 0.0
  %966 = vmatpush1.msra.mxu0 0.0
  %967 = vmatprep.subr.mxu0 0.0
  %968 = vmatpush1.msra.mxu0 0.0
  %969 = vmatprep.subr.mxu0 0.0
  %970 = vmatpush1.msra.mxu0 0.0
  %971 = vmatprep.subr.mxu0 0.0
  %972 = vmatpush1.msra.mxu0 0.0
  %973 = vmatprep.subr.mxu0 0.0
  %974 = vmatpush1.msra.mxu0 0.0
  %975 = vmatprep.subr.mxu0 0.0
  %976 = vmatpush1.msra.mxu0 0.0
  %977 = vmatprep.subr.mxu0 0.0
  %978 = vmatpush1.msra.mxu0 0.0
  %979 = vmatprep.subr.mxu0 0.0
  %980 = vmatpush1.msra.mxu0 0.0
  %981 = vmatprep.subr.mxu0 0.0
  %982 = vmatpush1.msra.mxu0 0.0
  %983 = vmatprep.subr.mxu0 0.0
  %984 = vmatpush1.msra.mxu0 0.0
  %985 = vmatprep.subr.mxu0 0.0
  %986 = vmatpush1.msra.mxu0 0.0
  %987 = vmatprep.subr.mxu0 0.0
  %988 = vmatpush1.msra.mxu0 0.0
  %989 = vmatprep.subr.mxu0 0.0
  %990 = vmatpush1.msra.mxu0 0.0
  %991 = vmatprep.subr.mxu0 0.0
  %992 = vmatpush1.msra.mxu0 0.0
  %993 = vmatprep.subr.mxu0 0.0
  %994 = vmatpush1.msra.mxu0 0.0
  %995 = vmatprep.subr.mxu0 0.0
  %996 = vmatpush1.msra.mxu0 0.0
  %997 = vmatprep.subr.mxu0 0.0
  %998 = vmatpush1.msra.mxu0 0.0
  %999 = vmatprep.subr.mxu0 0.0
  %1000 = vmatpush1.msra.mxu0 0.0
  %1001 = vmatprep.subr.mxu0 0.0
  %1002 = vmatpush1.msra.mxu0 0.0
  %1003 = vmatprep.subr.mxu0 0.0
  %1004 = vmatpush1.msra.mxu0 0.0
  %1005 = vmatprep.subr.mxu0 0.0
  %1006 = vmatpush1.msra.mxu0 0.0
  %1007 = vmatprep.mubr.f32.mxu0 0.0
  %1008 = vmatmul.mubr.f32.gmra.mrb[0].mxu0 %v941
  %v1009 = vpop.f32.mrb[0].mxu0
  %v1010 = vadd.f32 0.0, %v1009
  %v1011 = vpop.f32.mrb[0].mxu0
  %1012 = vdwg.mxu0
  %v1014 = vsel %vm91, %v731, 0
  %v1017 = vsel %vm91, %v834, 0
  %v1020 = vsel %vm91, %v839, 0
  %1022 = vmatprep.subr.mxu0 0.0
  %1023 = vmatpush1.xpose.msra.mxu0 %v1017
  %1024 = vmatprep.subr.mxu0 0.0
  %1025 = vmatpush1.xpose.msra.mxu0 %v1020
  %1026 = vmatprep.subr.mxu0 0.0
  %1027 = vmatpush1.xpose.msra.mxu0 0.0
  %1028 = vmatprep.subr.mxu0 0.0
  %1029 = vmatpush1.xpose.msra.mxu0 0.0
  %1030 = vmatprep.subr.mxu0 0.0
  %1031 = vmatpush1.xpose.msra.mxu0 0.0
  %1032 = vmatprep.subr.mxu0 0.0
  %1033 = vmatpush1.xpose.msra.mxu0 0.0
  %1034 = vmatprep.subr.mxu0 0.0
  %1035 = vmatpush1.xpose.msra.mxu0 0.0
  %1036 = vmatprep.subr.mxu0 0.0
  %1037 = vmatpush1.xpose.msra.mxu0 0.0
  %1038 = vmatprep.subr.mxu0 0.0
  %1039 = vmatpush1.xpose.msra.mxu0 0.0
  %1040 = vmatprep.subr.mxu0 0.0
  %1041 = vmatpush1.xpose.msra.mxu0 0.0
  %1042 = vmatprep.subr.mxu0 0.0
  %1043 = vmatpush1.xpose.msra.mxu0 0.0
  %1044 = vmatprep.subr.mxu0 0.0
  %1045 = vmatpush1.xpose.msra.mxu0 0.0
  %1046 = vmatprep.subr.mxu0 0.0
  %1047 = vmatpush1.xpose.msra.mxu0 0.0
  %1048 = vmatprep.subr.mxu0 0.0
  %1049 = vmatpush1.xpose.msra.mxu0 0.0
  %1050 = vmatprep.subr.mxu0 0.0
  %1051 = vmatpush1.xpose.msra.mxu0 0.0
  %1052 = vmatprep.subr.mxu0 0.0
  %1053 = vmatpush1.xpose.msra.mxu0 0.0
  %1054 = vmatprep.subr.mxu0 0.0
  %1055 = vmatpush1.xpose.msra.mxu0 0.0
  %1056 = vmatprep.subr.mxu0 0.0
  %1057 = vmatpush1.xpose.msra.mxu0 0.0
  %1058 = vmatprep.subr.mxu0 0.0
  %1059 = vmatpush1.xpose.msra.mxu0 0.0
  %1060 = vmatprep.subr.mxu0 0.0
  %1061 = vmatpush1.xpose.msra.mxu0 0.0
  %1062 = vmatprep.subr.mxu0 0.0
  %1063 = vmatpush1.xpose.msra.mxu0 0.0
  %1064 = vmatprep.subr.mxu0 0.0
  %1065 = vmatpush1.xpose.msra.mxu0 0.0
  %1066 = vmatprep.subr.mxu0 0.0
  %1067 = vmatpush1.xpose.msra.mxu0 0.0
  %1068 = vmatprep.subr.mxu0 0.0
  %1069 = vmatpush1.xpose.msra.mxu0 0.0
  %1070 = vmatprep.subr.mxu0 0.0
  %1071 = vmatpush1.xpose.msra.mxu0 0.0
  %1072 = vmatprep.subr.mxu0 0.0
  %1073 = vmatpush1.xpose.msra.mxu0 0.0
  %1074 = vmatprep.subr.mxu0 0.0
  %1075 = vmatpush1.xpose.msra.mxu0 0.0
  %1076 = vmatprep.subr.mxu0 0.0
  %1077 = vmatpush1.xpose.msra.mxu0 0.0
  %1078 = vmatprep.subr.mxu0 0.0
  %1079 = vmatpush1.xpose.msra.mxu0 0.0
  %1080 = vmatprep.subr.mxu0 0.0
  %1081 = vmatpush1.xpose.msra.mxu0 0.0
  %1082 = vmatprep.subr.mxu0 0.0
  %1083 = vmatpush1.xpose.msra.mxu0 0.0
  %1084 = vmatprep.subr.mxu0 0.0
  %1085 = vmatpush1.xpose.msra.mxu0 0.0
  %1086 = vmatprep.mubr.f32.mxu0 0.0
  %1087 = vmatmul.mubr.f32.gmra.mrb[0].mxu0 %v1014
  %v1088 = vpop.f32.mrb[0].mxu0
  %v1089 = vadd.f32 0.0, %v1088
  %v1090 = vpop.f32.mrb[0].mxu0
  %1091 = vdwg.mxu0
  %v1092 = vmul.f32 %v1089, 0.17677669
  %v1093 = vsel %vm922, %v1092, -inf
  %1094 = vmax.xlane.f32.xlu0 %v1093
  %v1095 = vpop.xlane.xlu0 %1094
  %v1096 = vsub.f32 %v1092, %v1095
  %v1097 = vmul.f32 %v1096, 1.442695
  %v1098 = vpow.pop %v1097
  %v1099 = vsel %vm922, %v1098, 0.0
  %1100 = vadd.xlane.f32.xlu0 %v1099
  %v1101 = vpop.xlane.xlu0 %1100
  %v1102 = vrcp.pop %v1101
  %v1103 = vmul.f32 %v1098, %v1102
  %1104 = vrot.lane.b32.xlu0 %v834, 96
  %v1105 = vpop.permute.xlu0 %1104
  %1106 = vrot.lane.b32.xlu0 %v839, 96
  %v1107 = vpop.permute.xlu0 %1106
  %v1111 = vsel %vm922, %v1103, 0
  %1113 = vmatprep.subr.mxu0 0.0
  %1114 = vmatpush1.msra.mxu0 %v1105
  %1115 = vmatprep.subr.mxu0 0.0
  %1116 = vmatpush1.msra.mxu0 %v1107
  %1117 = vmatprep.subr.mxu0 0.0
  %1118 = vmatpush1.msra.mxu0 0.0
  %1119 = vmatprep.subr.mxu0 0.0
  %1120 = vmatpush1.msra.mxu0 0.0
  %1121 = vmatprep.subr.mxu0 0.0
  %1122 = vmatpush1.msra.mxu0 0.0
  %1123 = vmatprep.subr.mxu0 0.0
  %1124 = vmatpush1.msra.mxu0 0.0
  %1125 = vmatprep.subr.mxu0 0.0
  %1126 = vmatpush1.msra.mxu0 0.0
  %1127 = vmatprep.subr.mxu0 0.0
  %1128 = vmatpush1.msra.mxu0 0.0
  %1129 = vmatprep.subr.mxu0 0.0
  %1130 = vmatpush1.msra.mxu0 0.0
  %1131 = vmatprep.subr.mxu0 0.0
  %1132 = vmatpush1.msra.mxu0 0.0
  %1133 = vmatprep.subr.mxu0 0.0
  %1134 = vmatpush1.msra.mxu0 0.0
  %1135 = vmatprep.subr.mxu0 0.0
  %1136 = vmatpush1.msra.mxu0 0.0
  %1137 = vmatprep.subr.mxu0 0.0
  %1138 = vmatpush1.msra.mxu0 0.0
  %1139 = vmatprep.subr.mxu0 0.0
  %1140 = vmatpush1.msra.mxu0 0.0
  %1141 = vmatprep.subr.mxu0 0.0
  %1142 = vmatpush1.msra.mxu0 0.0
  %1143 = vmatprep.subr.mxu0 0.0
  %1144 = vmatpush1.msra.mxu0 0.0
  %1145 = vmatprep.subr.mxu0 0.0
  %1146 = vmatpush1.msra.mxu0 0.0
  %1147 = vmatprep.subr.mxu0 0.0
  %1148 = vmatpush1.msra.mxu0 0.0
  %1149 = vmatprep.subr.mxu0 0.0
  %1150 = vmatpush1.msra.mxu0 0.0
  %1151 = vmatprep.subr.mxu0 0.0
  %1152 = vmatpush1.msra.mxu0 0.0
  %1153 = vmatprep.subr.mxu0 0.0
  %1154 = vmatpush1.msra.mxu0 0.0
  %1155 = vmatprep.subr.mxu0 0.0
  %1156 = vmatpush1.msra.mxu0 0.0
  %1157 = vmatprep.subr.mxu0 0.0
  %1158 = vmatpush1.msra.mxu0 0.0
  %1159 = vmatprep.subr.mxu0 0.0
  %1160 = vmatpush1.msra.mxu0 0.0
  %1161 = vmatprep.subr.mxu0 0.0
  %1162 = vmatpush1.msra.mxu0 0.0
  %1163 = vmatprep.subr.mxu0 0.0
  %1164 = vmatpush1.msra.mxu0 0.0
  %1165 = vmatprep.subr.mxu0 0.0
  %1166 = vmatpush1.msra.mxu0 0.0
  %1167 = vmatprep.subr.mxu0 0.0
  %1168 = vmatpush1.msra.mxu0 0.0
  %1169 = vmatprep.subr.mxu0 0.0
  %1170 = vmatpush1.msra.mxu0 0.0
  %1171 = vmatprep.subr.mxu0 0.0
  %1172 = vmatpush1.msra.mxu0 0.0
  %1173 = vmatprep.subr.mxu0 0.0
  %1174 = vmatpush1.msra.mxu0 0.0
  %1175 = vmatprep.subr.mxu0 0.0
  %1176 = vmatpush1.msra.mxu0 0.0
  %1177 = vmatprep.mubr.f32.mxu0 0.0
  %1178 = vmatmul.mubr.f32.gmra.mrb[0].mxu0 %v1111
  %v1179 = vpop.f32.mrb[0].mxu0
  %v1180 = vadd.f32 0.0, %v1179
  %v1181 = vpop.f32.mrb[0].mxu0
  %1182 = vdwg.mxu0
  %v1183 = vld [vmem:[%s11] sm:$0xff]
  %v1184 = vld [vmem:[%s11 + $0x8] sm:$0xff]
  %v1185 = vld [vmem:[%s11 + $0x10] sm:$0xff]
  %v1186 = vld [vmem:[%s11 + $0x18] sm:$0xff]
  %v1187 = vld [vmem:[%s12] sm:$0x1]
  %v1189 = vlaneseq
  %v1190 = vshrl.u32 %v1189, 7
  %v1191 = vsub.s32 0, %v1190
  %v1192 = vrot.slane %v1187, %v1191
  %v1195 = vsel %vm91, %v1010, 0
  %v1198 = vsel %vm91, %v1180, 0
  %1200 = vmatprep.subr.mxu0 0.0
  %1201 = vmatpush1.msra.mxu0 %v1183
  %1202 = vmatprep.subr.mxu0 0.0
  %1203 = vmatpush1.msra.mxu0 %v1184
  %1204 = vmatprep.subr.mxu0 0.0
  %1205 = vmatpush1.msra.mxu0 %v1185
  %1206 = vmatprep.subr.mxu0 0.0
  %1207 = vmatpush1.msra.mxu0 %v1186
  %1208 = vmatprep.subr.mxu0 0.0
  %1209 = vmatpush1.msra.mxu0 0.0
  %1210 = vmatprep.subr.mxu0 0.0
  %1211 = vmatpush1.msra.mxu0 0.0
  %1212 = vmatprep.subr.mxu0 0.0
  %1213 = vmatpush1.msra.mxu0 0.0
  %1214 = vmatprep.subr.mxu0 0.0
  %1215 = vmatpush1.msra.mxu0 0.0
  %1216 = vmatprep.subr.mxu0 0.0
  %1217 = vmatpush1.msra.mxu0 0.0
  %1218 = vmatprep.subr.mxu0 0.0
  %1219 = vmatpush1.msra.mxu0 0.0
  %1220 = vmatprep.subr.mxu0 0.0
  %1221 = vmatpush1.msra.mxu0 0.0
  %1222 = vmatprep.subr.mxu0 0.0
  %1223 = vmatpush1.msra.mxu0 0.0
  %1224 = vmatprep.subr.mxu0 0.0
  %1225 = vmatpush1.msra.mxu0 0.0
  %1226 = vmatprep.subr.mxu0 0.0
  %1227 = vmatpush1.msra.mxu0 0.0
  %1228 = vmatprep.subr.mxu0 0.0
  %1229 = vmatpush1.msra.mxu0 0.0
  %1230 = vmatprep.subr.mxu0 0.0
  %1231 = vmatpush1.msra.mxu0 0.0
  %1232 = vmatprep.subr.mxu0 0.0
  %1233 = vmatpush1.msra.mxu0 0.0
  %1234 = vmatprep.subr.mxu0 0.0
  %1235 = vmatpush1.msra.mxu0 0.0
  %1236 = vmatprep.subr.mxu0 0.0
  %1237 = vmatpush1.msra.mxu0 0.0
  %1238 = vmatprep.subr.mxu0 0.0
  %1239 = vmatpush1.msra.mxu0 0.0
  %1240 = vmatprep.subr.mxu0 0.0
  %1241 = vmatpush1.msra.mxu0 0.0
  %1242 = vmatprep.subr.mxu0 0.0
  %1243 = vmatpush1.msra.mxu0 0.0
  %1244 = vmatprep.subr.mxu0 0.0
  %1245 = vmatpush1.msra.mxu0 0.0
  %1246 = vmatprep.subr.mxu0 0.0
  %1247 = vmatpush1.msra.mxu0 0.0
  %1248 = vmatprep.subr.mxu0 0.0
  %1249 = vmatpush1.msra.mxu0 0.0
  %1250 = vmatprep.subr.mxu0 0.0
  %1251 = vmatpush1.msra.mxu0 0.0
  %1252 = vmatprep.subr.mxu0 0.0
  %1253 = vmatpush1.msra.mxu0 0.0
  %1254 = vmatprep.subr.mxu0 0.0
  %1255 = vmatpush1.msra.mxu0 0.0
  %1256 = vmatprep.subr.mxu0 0.0
  %1257 = vmatpush1.msra.mxu0 0.0
  %1258 = vmatprep.subr.mxu0 0.0
  %1259 = vmatpush1.msra.mxu0 0.0
  %1260 = vmatprep.subr.mxu0 0.0
  %1261 = vmatpush1.msra.mxu0 0.0
  %1262 = vmatprep.subr.mxu0 0.0
  %1263 = vmatpush1.msra.mxu0 0.0
  %1264 = vmatprep.mubr.f32.mxu0 0.0
  %1265 = vmatmul.mubr.f32.gmra.mrb[0].mxu0 %v1195
  %v1266 = vpop.f32.mrb[0].mxu0
  %v1267 = vadd.f32 %v1192, %v1266
  %v1268 = vpop.f32.mrb[0].mxu0
  %1269 = vmatprep.mubr.f32.mxu0 0.0
  %1270 = vmatmul.mubr.f32.gmra.mrb[0].mxu0 %v1198
  %v1271 = vpop.f32.mrb[0].mxu0
  %v1272 = vadd.f32 %v1192, %v1271
  %v1273 = vpop.f32.mrb[0].mxu0
  %1274 = vdwg.mxu0
  %v1275 = vadd.f32 %v640, %v1267
  %v1276 = vadd.f32 %v641, %v1272
  %v1277 = vld [vmem:[%s18] sm:$0x3]
  %v1278 = vsel %vm91, %v1275, 0.0
  %1279 = vadd.xlane.f32.xlu0 %v1278
  %v1280 = vpop.xlane.xlu0 %1279
  %v1281 = vsel %vm91, %v1276, 0.0
  %1282 = vadd.xlane.f32.xlu0 %v1281
  %v1283 = vpop.xlane.xlu0 %1282
  %v1284 = vmul.f32 %v1280, %v609
  %v1285 = vmul.f32 %v1283, %v609
  %v1286 = vsub.f32 %v1275, %v1284
  %v1287 = vsub.f32 %v1276, %v1285
  %v1288 = vmul.f32 %v1286, %v1286
  %v1289 = vmul.f32 %v1287, %v1287
  %v1290 = vsel %vm91, %v1288, 0.0
  %1291 = vadd.xlane.f32.xlu0 %v1290
  %v1292 = vpop.xlane.xlu0 %1291
  %v1293 = vsel %vm91, %v1289, 0.0
  %1294 = vadd.xlane.f32.xlu0 %v1293
  %v1295 = vpop.xlane.xlu0 %1294
  %v1296 = vmul.f32 %v1292, %v609
  %v1297 = vmul.f32 %v1295, %v609
  %v1298 = vadd.f32 %v1296, 1e-05
  %v1299 = vadd.f32 %v1297, 1e-05
  %v1300 = vrsqrt.pop %v1298
  %v1301 = vrsqrt.pop %v1299
  %v1302 = vmul.f32 %v1286, %v1300
  %v1303 = vmul.f32 %v1287, %v1301
  %v1304 = vlaneseq
  %v1305 = vshrl.u32 %v1304, 7
  %v1306 = vsub.s32 0, %v1305
  %v1307 = vrot.slane %v1277, %v1306
  %v1308 = vmul.f32 %v1302, %v1307
  %v1309 = vmul.f32 %v1303, %v1307
  %v1310 = vlaneseq
  %v1311 = vshrl.u32 %v1310, 7
  %v1312 = vsub.s32 1, %v1311
  %v1313 = vrot.slane %v1277, %v1312
  %v1314 = vadd.f32 %v1308, %v1313
  %v1315 = vadd.f32 %v1309, %v1313
  %v1316 = vld [vmem:[%s13] sm:$0xff]
  %v1317 = vld [vmem:[%s13 + $0x8] sm:$0xff]
  %v1318 = vld [vmem:[%s13 + $0x10] sm:$0xff]
  %v1319 = vld [vmem:[%s13 + $0x18] sm:$0xff]
  %v1320 = vld [vmem:[%s13 + $0x20] sm:$0xff]
  %v1321 = vld [vmem:[%s13 + $0x28] sm:$0xff]
  %v1322 = vld [vmem:[%s13 + $0x30] sm:$0xff]
  %v1323 = vld [vmem:[%s13 + $0x38] sm:$0xff]
  %v1324 = vld [vmem:[%s14] sm:$0x3]
  %v1326 = vlaneseq
  %v1327 = vshrl.u32 %v1326, 7
  %v1328 = vsub.s32 0, %v1327
  %v1329 = vrot.slane %v1324, %v1328
  %v1330 = vlaneseq
  %v1331 = vshrl.u32 %v1330, 7
  %v1332 = vsub.s32 1, %v1331
  %v1333 = vrot.slane %v1324, %v1332
  %v1337 = vsel %vm91, %v1314, 0
  %v1340 = vsel %vm91, %v1315, 0
  %1342 = vmatprep.subr.mxu0 %v1317
  %1343 = vmatpush1.msra.mxu0 %v1316
  %1344 = vmatprep.subr.mxu0 %v1319
  %1345 = vmatpush1.msra.mxu0 %v1318
  %1346 = vmatprep.subr.mxu0 %v1321
  %1347 = vmatpush1.msra.mxu0 %v1320
  %1348 = vmatprep.subr.mxu0 %v1323
  %1349 = vmatpush1.msra.mxu0 %v1322
  %1350 = vmatprep.subr.mxu0 0.0
  %1351 = vmatpush1.msra.mxu0 0.0
  %1352 = vmatprep.subr.mxu0 0.0
  %1353 = vmatpush1.msra.mxu0 0.0
  %1354 = vmatprep.subr.mxu0 0.0
  %1355 = vmatpush1.msra.mxu0 0.0
  %1356 = vmatprep.subr.mxu0 0.0
  %1357 = vmatpush1.msra.mxu0 0.0
  %1358 = vmatprep.subr.mxu0 0.0
  %1359 = vmatpush1.msra.mxu0 0.0
  %1360 = vmatprep.subr.mxu0 0.0
  %1361 = vmatpush1.msra.mxu0 0.0
  %1362 = vmatprep.subr.mxu0 0.0
  %1363 = vmatpush1.msra.mxu0 0.0
  %1364 = vmatprep.subr.mxu0 0.0
  %1365 = vmatpush1.msra.mxu0 0.0
  %1366 = vmatprep.subr.mxu0 0.0
  %1367 = vmatpush1.msra.mxu0 0.0
  %1368 = vmatprep.subr.mxu0 0.0
  %1369 = vmatpush1.msra.mxu0 0.0
  %1370 = vmatprep.subr.mxu0 0.0
  %1371 = vmatpush1.msra.mxu0 0.0
  %1372 = vmatprep.subr.mxu0 0.0
  %1373 = vmatpush1.msra.mxu0 0.0
  %1374 = vmatprep.subr.mxu0 0.0
  %1375 = vmatpush1.msra.mxu0 0.0
  %1376 = vmatprep.subr.mxu0 0.0
  %1377 = vmatpush1.msra.mxu0 0.0
  %1378 = vmatprep.subr.mxu0 0.0
  %1379 = vmatpush1.msra.mxu0 0.0
  %1380 = vmatprep.subr.mxu0 0.0
  %1381 = vmatpush1.msra.mxu0 0.0
  %1382 = vmatprep.subr.mxu0 0.0
  %1383 = vmatpush1.msra.mxu0 0.0
  %1384 = vmatprep.subr.mxu0 0.0
  %1385 = vmatpush1.msra.mxu0 0.0
  %1386 = vmatprep.subr.mxu0 0.0
  %1387 = vmatpush1.msra.mxu0 0.0
  %1388 = vmatprep.subr.mxu0 0.0
  %1389 = vmatpush1.msra.mxu0 0.0
  %1390 = vmatprep.subr.mxu0 0.0
  %1391 = vmatpush1.msra.mxu0 0.0
  %1392 = vmatprep.subr.mxu0 0.0
  %1393 = vmatpush1.msra.mxu0 0.0
  %1394 = vmatprep.subr.mxu0 0.0
  %1395 = vmatpush1.msra.mxu0 0.0
  %1396 = vmatprep.subr.mxu0 0.0
  %1397 = vmatpush1.msra.mxu0 0.0
  %1398 = vmatprep.subr.mxu0 0.0
  %1399 = vmatpush1.msra.mxu0 0.0
  %1400 = vmatprep.subr.mxu0 0.0
  %1401 = vmatpush1.msra.mxu0 0.0
  %1402 = vmatprep.subr.mxu0 0.0
  %1403 = vmatpush1.msra.mxu0 0.0
  %1404 = vmatprep.subr.mxu0 0.0
  %1405 = vmatpush1.msra.mxu0 0.0
  %1406 = vmatprep.mubr.f32.mxu0 0.0
  %1407 = vmatmul.mubr.f32.gmra.mrb[0].mxu0 %v1337
  %v1408 = vpop.f32.mrb[0].mxu0
  %v1409 = vadd.f32 %v1329, %v1408
  %v1410 = vpop.f32.mrb[0].mxu0
  %v1411 = vadd.f32 %v1333, %v1410
  %1412 = vmatprep.mubr.f32.mxu0 0.0
  %1413 = vmatmul.mubr.f32.gmra.mrb[0].mxu0 %v1340
  %v1414 = vpop.f32.mrb[0].mxu0
  %v1415 = vadd.f32 %v1329, %v1414
  %v1416 = vpop.f32.mrb[0].mxu0
  %v1417 = vadd.f32 %v1333, %v1416
  %1418 = vdwg.mxu0
  %v1419 = vmax.f32 %v1409, 0.0
  %v1420 = vmax.f32 %v1411, 0.0
  %v1421 = vmax.f32 %v1415, 0.0
  %v1422 = vmax.f32 %v1417, 0.0
  %v1423 = vld [vmem:[%s15] sm:$0xff]
  %v1424 = vld [vmem:[%s15 + $0x8] sm:$0xff]
  %v1425 = vld [vmem:[%s15 + $0x10] sm:$0xff]
  %v1426 = vld [vmem:[%s15 + $0x18] sm:$0xff]
  %v1427 = vld [vmem:[%s15 + $0x20] sm:$0xff]
  %v1428 = vld [vmem:[%s15 + $0x28] sm:$0xff]
  %v1429 = vld [vmem:[%s15 + $0x30] sm:$0xff]
  %v1430 = vld [vmem:[%s15 + $0x38] sm:$0xff]
  %v1431 = vld [vmem:[%s15 + $0x40] sm:$0xff]
  %v1432 = vld [vmem:[%s15 + $0x48] sm:$0xff]
  %v1433 = vld [vmem:[%s15 + $0x50] sm:$0xff]
  %v1434 = vld [vmem:[%s15 + $0x58] sm:$0xff]
  %v1435 = vld [vmem:[%s15 + $0x60] sm:$0xff]
  %v1436 = vld [vmem:[%s15 + $0x68] sm:$0xff]
  %v1437 = vld [vmem:[%s15 + $0x70] sm:$0xff]
  %v1438 = vld [vmem:[%s15 + $0x78] sm:$0xff]
  %v1439 = vld [vmem:[%s15 + $0x80] sm:$0xff]
  %v1440 = vld [vmem:[%s15 + $0x88] sm:$0xff]
  %v1441 = vld [vmem:[%s15 + $0x90] sm:$0xff]
  %v1442 = vld [vmem:[%s15 + $0x98] sm:$0xff]
  %v1443 = vld [vmem:[%s15 + $0xa0] sm:$0xff]
  %v1444 = vld [vmem:[%s15 + $0xa8] sm:$0xff]
  %v1445 = vld [vmem:[%s15 + $0xb0] sm:$0xff]
  %v1446 = vld [vmem:[%s15 + $0xb8] sm:$0xff]
  %v1447 = vld [vmem:[%s15 + $0xc0] sm:$0xff]
  %v1448 = vld [vmem:[%s15 + $0xc8] sm:$0xff]
  %v1449 = vld [vmem:[%s15 + $0xd0] sm:$0xff]
  %v1450 = vld [vmem:[%s15 + $0xd8] sm:$0xff]
  %v1451 = vld [vmem:[%s15 + $0xe0] sm:$0xff]
  %v1452 = vld [vmem:[%s15 + $0xe8] sm:$0xff]
  %v1453 = vld [vmem:[%s15 + $0xf0] sm:$0xff]
  %v1454 = vld [vmem:[%s15 + $0xf8] sm:$0xff]
  %v1455 = vld [vmem:[%s16] sm:$0x1]
  %v1457 = vlaneseq
  %v1458 = vshrl.u32 %v1457, 7
  %v1459 = vsub.s32 0, %v1458
  %v1460 = vrot.slane %v1455, %v1459
  %1462 = vmatprep.subr.mxu0 0.0
  %1463 = vmatpush1.msra.mxu0 %v1423
  %1464 = vmatprep.subr.mxu0 0.0
  %1465 = vmatpush1.msra.mxu0 %v1424
  %1466 = vmatprep.subr.mxu0 0.0
  %1467 = vmatpush1.msra.mxu0 %v1425
  %1468 = vmatprep.subr.mxu0 0.0
  %1469 = vmatpush1.msra.mxu0 %v1426
  %1470 = vmatprep.subr.mxu0 0.0
  %1471 = vmatpush1.msra.mxu0 %v1427
  %1472 = vmatprep.subr.mxu0 0.0
  %1473 = vmatpush1.msra.mxu0 %v1428
  %1474 = vmatprep.subr.mxu0 0.0
  %1475 = vmatpush1.msra.mxu0 %v1429
  %1476 = vmatprep.subr.mxu0 0.0
  %1477 = vmatpush1.msra.mxu0 %v1430
  %1478 = vmatprep.subr.mxu0 0.0
  %1479 = vmatpush1.msra.mxu0 %v1431
  %1480 = vmatprep.subr.mxu0 0.0
  %1481 = vmatpush1.msra.mxu0 %v1432
  %1482 = vmatprep.subr.mxu0 0.0
  %1483 = vmatpush1.msra.mxu0 %v1433
  %1484 = vmatprep.subr.mxu0 0.0
  %1485 = vmatpush1.msra.mxu0 %v1434
  %1486 = vmatprep.subr.mxu0 0.0
  %1487 = vmatpush1.msra.mxu0 %v1435
  %1488 = vmatprep.subr.mxu0 0.0
  %1489 = vmatpush1.msra.mxu0 %v1436
  %1490 = vmatprep.subr.mxu0 0.0
  %1491 = vmatpush1.msra.mxu0 %v1437
  %1492 = vmatprep.subr.mxu0 0.0
  %1493 = vmatpush1.msra.mxu0 %v1438
  %1494 = vmatprep.subr.mxu0 0.0
  %1495 = vmatpush1.msra.mxu0 %v1439
  %1496 = vmatprep.subr.mxu0 0.0
  %1497 = vmatpush1.msra.mxu0 %v1440
  %1498 = vmatprep.subr.mxu0 0.0
  %1499 = vmatpush1.msra.mxu0 %v1441
  %1500 = vmatprep.subr.mxu0 0.0
  %1501 = vmatpush1.msra.mxu0 %v1442
  %1502 = vmatprep.subr.mxu0 0.0
  %1503 = vmatpush1.msra.mxu0 %v1443
  %1504 = vmatprep.subr.mxu0 0.0
  %1505 = vmatpush1.msra.mxu0 %v1444
  %1506 = vmatprep.subr.mxu0 0.0
  %1507 = vmatpush1.msra.mxu0 %v1445
  %1508 = vmatprep.subr.mxu0 0.0
  %1509 = vmatpush1.msra.mxu0 %v1446
  %1510 = vmatprep.subr.mxu0 0.0
  %1511 = vmatpush1.msra.mxu0 %v1447
  %1512 = vmatprep.subr.mxu0 0.0
  %1513 = vmatpush1.msra.mxu0 %v1448
  %1514 = vmatprep.subr.mxu0 0.0
  %1515 = vmatpush1.msra.mxu0 %v1449
  %1516 = vmatprep.subr.mxu0 0.0
  %1517 = vmatpush1.msra.mxu0 %v1450
  %1518 = vmatprep.subr.mxu0 0.0
  %1519 = vmatpush1.msra.mxu0 %v1451
  %1520 = vmatprep.subr.mxu0 0.0
  %1521 = vmatpush1.msra.mxu0 %v1452
  %1522 = vmatprep.subr.mxu0 0.0
  %1523 = vmatpush1.msra.mxu0 %v1453
  %1524 = vmatprep.subr.mxu0 0.0
  %1525 = vmatpush1.msra.mxu0 %v1454
  %1526 = vmatprep.mubr.f32.mxu0 %v1420
  %1527 = vmatmul.mubr.f32.gmra.mrb[0].mxu0 %v1419
  %v1528 = vpop.f32.mrb[0].mxu0
  %v1529 = vadd.f32 %v1460, %v1528
  %v1530 = vpop.f32.mrb[0].mxu0
  %1531 = vmatprep.mubr.f32.mxu0 %v1422
  %1532 = vmatmul.mubr.f32.gmra.mrb[0].mxu0 %v1421
  %v1533 = vpop.f32.mrb[0].mxu0
  %v1534 = vadd.f32 %v1460, %v1533
  %v1535 = vpop.f32.mrb[0].mxu0
  %1536 = vdwg.mxu0
  %v1537 = vadd.f32 %v1314, %v1529
  %v1538 = vadd.f32 %v1315, %v1534
  %v1539 = vld [vmem:[%s19] sm:$0x3]
  %v1540 = vsel %vm91, %v1537, 0.0
  %1541 = vadd.xlane.f32.xlu0 %v1540
  %v1542 = vpop.xlane.xlu0 %1541
  %v1543 = vsel %vm91, %v1538, 0.0
  %1544 = vadd.xlane.f32.xlu0 %v1543
  %v1545 = vpop.xlane.xlu0 %1544
  %v1546 = vmul.f32 %v1542, %v609
  %v1547 = vmul.f32 %v1545, %v609
  %v1548 = vsub.f32 %v1537, %v1546
  %v1549 = vsub.f32 %v1538, %v1547
  %v1550 = vmul.f32 %v1548, %v1548
  %v1551 = vmul.f32 %v1549, %v1549
  %v1552 = vsel %vm91, %v1550, 0.0
  %1553 = vadd.xlane.f32.xlu0 %v1552
  %v1554 = vpop.xlane.xlu0 %1553
  %v1555 = vsel %vm91, %v1551, 0.0
  %1556 = vadd.xlane.f32.xlu0 %v1555
  %v1557 = vpop.xlane.xlu0 %1556
  %v1558 = vmul.f32 %v1554, %v609
  %v1559 = vmul.f32 %v1557, %v609
  %v1560 = vadd.f32 %v1558, 1e-05
  %v1561 = vadd.f32 %v1559, 1e-05
  %v1562 = vrsqrt.pop %v1560
  %v1563 = vrsqrt.pop %v1561
  %v1564 = vmul.f32 %v1548, %v1562
  %v1565 = vmul.f32 %v1549, %v1563
  %v1566 = vlaneseq
  %v1567 = vshrl.u32 %v1566, 7
  %v1568 = vsub.s32 0, %v1567
  %v1569 = vrot.slane %v1539, %v1568
  %v1570 = vmul.f32 %v1564, %v1569
  %v1571 = vmul.f32 %v1565, %v1569
  %v1572 = vlaneseq
  %v1573 = vshrl.u32 %v1572, 7
  %v1574 = vsub.s32 1, %v1573
  %v1575 = vrot.slane %v1539, %v1574
  %v1576 = vadd.f32 %v1570, %v1575
  %v1577 = vadd.f32 %v1571, %v1575
  %v1578 = vld [vmem:[%s20] sm:$0x3]
  %v1579 = vsel %vm91, %v1576, 0.0
  %1580 = vadd.xlane.f32.xlu0 %v1579
  %v1581 = vpop.xlane.xlu0 %1580
  %v1582 = vsel %vm91, %v1577, 0.0
  %1583 = vadd.xlane.f32.xlu0 %v1582
  %v1584 = vpop.xlane.xlu0 %1583
  %v1585 = vmul.f32 %v1581, %v609
  %v1586 = vmul.f32 %v1584, %v609
  %v1587 = vsub.f32 %v1576, %v1585
  %v1588 = vsub.f32 %v1577, %v1586
  %v1589 = vmul.f32 %v1587, %v1587
  %v1590 = vmul.f32 %v1588, %v1588
  %v1591 = vsel %vm91, %v1589, 0.0
  %1592 = vadd.xlane.f32.xlu0 %v1591
  %v1593 = vpop.xlane.xlu0 %1592
  %v1594 = vsel %vm91, %v1590, 0.0
  %1595 = vadd.xlane.f32.xlu0 %v1594
  %v1596 = vpop.xlane.xlu0 %1595
  %v1597 = vmul.f32 %v1593, %v609
  %v1598 = vmul.f32 %v1596, %v609
  %v1599 = vadd.f32 %v1597, 1e-05
  %v1600 = vadd.f32 %v1598, 1e-05
  %v1601 = vrsqrt.pop %v1599
  %v1602 = vrsqrt.pop %v1600
  %v1603 = vmul.f32 %v1587, %v1601
  %v1604 = vmul.f32 %v1588, %v1602
  %v1605 = vlaneseq
  %v1606 = vshrl.u32 %v1605, 7
  %v1607 = vsub.s32 0, %v1606
  %v1608 = vrot.slane %v1578, %v1607
  %v1609 = vmul.f32 %v1603, %v1608
  %v1610 = vmul.f32 %v1604, %v1608
  %v1611 = vlaneseq
  %v1612 = vshrl.u32 %v1611, 7
  %v1613 = vsub.s32 1, %v1612
  %v1614 = vrot.slane %v1578, %v1613
  %v1615 = vadd.f32 %v1609, %v1614
  %v1616 = vadd.f32 %v1610, %v1614
  %v1617 = vld [vmem:[%s21] sm:$0xff]
  %v1618 = vld [vmem:[%s21 + $0x8] sm:$0xff]
  %v1619 = vld [vmem:[%s21 + $0x10] sm:$0xff]
  %v1620 = vld [vmem:[%s21 + $0x18] sm:$0xff]
  %v1621 = vld [vmem:[%s22] sm:$0x1]
  %v1623 = vlaneseq
  %v1624 = vshrl.u32 %v1623, 7
  %v1625 = vsub.s32 0, %v1624
  %v1626 = vrot.slane %v1621, %v1625
  %v1629 = vsel %vm91, %v1615, 0
  %v1632 = vsel %vm91, %v1616, 0
  %1634 = vmatprep.subr.mxu0 0.0
  %1635 = vmatpush1.msra.mxu0 %v1617
  %1636 = vmatprep.subr.mxu0 0.0
  %1637 = vmatpush1.msra.mxu0 %v1618
  %1638 = vmatprep.subr.mxu0 0.0
  %1639 = vmatpush1.msra.mxu0 %v1619
  %1640 = vmatprep.subr.mxu0 0.0
  %1641 = vmatpush1.msra.mxu0 %v1620
  %1642 = vmatprep.subr.mxu0 0.0
  %1643 = vmatpush1.msra.mxu0 0.0
  %1644 = vmatprep.subr.mxu0 0.0
  %1645 = vmatpush1.msra.mxu0 0.0
  %1646 = vmatprep.subr.mxu0 0.0
  %1647 = vmatpush1.msra.mxu0 0.0
  %1648 = vmatprep.subr.mxu0 0.0
  %1649 = vmatpush1.msra.mxu0 0.0
  %1650 = vmatprep.subr.mxu0 0.0
  %1651 = vmatpush1.msra.mxu0 0.0
  %1652 = vmatprep.subr.mxu0 0.0
  %1653 = vmatpush1.msra.mxu0 0.0
  %1654 = vmatprep.subr.mxu0 0.0
  %1655 = vmatpush1.msra.mxu0 0.0
  %1656 = vmatprep.subr.mxu0 0.0
  %1657 = vmatpush1.msra.mxu0 0.0
  %1658 = vmatprep.subr.mxu0 0.0
  %1659 = vmatpush1.msra.mxu0 0.0
  %1660 = vmatprep.subr.mxu0 0.0
  %1661 = vmatpush1.msra.mxu0 0.0
  %1662 = vmatprep.subr.mxu0 0.0
  %1663 = vmatpush1.msra.mxu0 0.0
  %1664 = vmatprep.subr.mxu0 0.0
  %1665 = vmatpush1.msra.mxu0 0.0
  %1666 = vmatprep.subr.mxu0 0.0
  %1667 = vmatpush1.msra.mxu0 0.0
  %1668 = vmatprep.subr.mxu0 0.0
  %1669 = vmatpush1.msra.mxu0 0.0
  %1670 = vmatprep.subr.mxu0 0.0
  %1671 = vmatpush1.msra.mxu0 0.0
  %1672 = vmatprep.subr.mxu0 0.0
  %1673 = vmatpush1.msra.mxu0 0.0
  %1674 = vmatprep.subr.mxu0 0.0
  %1675 = vmatpush1.msra.mxu0 0.0
  %1676 = vmatprep.subr.mxu0 0.0
  %1677 = vmatpush1.msra.mxu0 0.0
  %1678 = vmatprep.subr.mxu0 0.0
  %1679 = vmatpush1.msra.mxu0 0.0
  %1680 = vmatprep.subr.mxu0 0.0
  %1681 = vmatpush1.msra.mxu0 0.0
  %1682 = vmatprep.subr.mxu0 0.0
  %1683 = vmatpush1.msra.mxu0 0.0
  %1684 = vmatprep.subr.mxu0 0.0
  %1685 = vmatpush1.msra.mxu0 0.0
  %1686 = vmatprep.subr.mxu0 0.0
  %1687 = vmatpush1.msra.mxu0 0.0
  %1688 = vmatprep.subr.mxu0 0.0
  %1689 = vmatpush1.msra.mxu0 0.0
  %1690 = vmatprep.subr.mxu0 0.0
  %1691 = vmatpush1.msra.mxu0 0.0
  %1692 = vmatprep.subr.mxu0 0.0
  %1693 = vmatpush1.msra.mxu0 0.0
  %1694 = vmatprep.subr.mxu0 0.0
  %1695 = vmatpush1.msra.mxu0 0.0
  %1696 = vmatprep.subr.mxu0 0.0
  %1697 = vmatpush1.msra.mxu0 0.0
  %1698 = vmatprep.mubr.f32.mxu0 0.0
  %1699 = vmatmul.mubr.f32.gmra.mrb[0].mxu0 %v1629
  %v1700 = vpop.f32.mrb[0].mxu0
  %v1701 = vadd.f32 %v1626, %v1700
  %v1702 = vpop.f32.mrb[0].mxu0
  %1703 = vmatprep.mubr.f32.mxu0 0.0
  %1704 = vmatmul.mubr.f32.gmra.mrb[0].mxu0 %v1632
  %v1705 = vpop.f32.mrb[0].mxu0
  %v1706 = vadd.f32 %v1626, %v1705
  %v1707 = vpop.f32.mrb[0].mxu0
  %1708 = vdwg.mxu0
  %1709 = vst.msk [vmem:[%s23] sm:$0xff] %vm922, %v1701
  %1710 = vst.msk [vmem:[%s23 + $0x8] sm:$0xff] %vm922, %v1706
  // Predicated region
  $region94: #{model_forward.5} parent=0 // pred_check
    _
  $region95: #{model_forward.5} parent=0 // pred_check_branch
    %1712 = sbr.rel (0) target = $region97
  $region96: #{model_forward.5} parent=0 // pred_region
    _
  $region97: #{model_forward.5} parent=0 // pred_fallthru
    _
  // Predicated region
  $region98: #{model_forward.5} parent=0 // pred_check
    _
  $region99: #{model_forward.5} parent=0 // pred_check_branch
    %1714 = sbr.rel (0) target = $region101
  $region100: #{model_forward.5} parent=0 // pred_region
    _
  $region101: #{model_forward.5} parent=0 // pred_fallthru
    _

</llo_original>
